<compile_context>
chip_gen: v5e
topology: v5e:2x2
jax: 0.10.0
libtpu: 0.0.40
codegen_flags: <defaults>
</compile_context>

<pallas_src>
import jax
import jax.numpy as jnp
from jax.experimental import pallas as pl
from jax.experimental.pallas import tpu as pltpu

EPS = 1e-5
LANES = 128


def _round_up_lanes(c):
    return ((c + LANES - 1) // LANES) * LANES


def _pick_row_tile(h):
    if h <= 32:
        return h
    for t in (32, 16, 8):
        if h % t == 0:
            return t
    return h


def _make_conv_kernel(H, W, TR, CP_in, CP_out, pre_norm_relu):
    """One (sample, row-tile) step of a 3x3 'same' convolution.

    Input stage applies the folded BN affine (x*scale + shift) [+ ReLU] in f32,
    fusing the previous layer's BatchNorm+ReLU into this conv.  The conv is 9
    accumulated bf16 MXU matmuls (one per tap).  Emits the pre-BN conv tile
    plus per-tile channel sum / sum-of-squares for the between-call BN fold.
    """

    def kernel(x_ref, w_ref, scale_ref, shift_ref, y_ref, stats_ref, tap_scr):
        f32 = jnp.float32
        r0 = pl.multiple_of(pl.program_id(1) * TR, TR)

        scale = scale_ref[...].reshape(1, 1, CP_in)
        shift = shift_ref[...].reshape(1, 1, CP_in)

        def in_stage(rows):                              # (..., W, CP_in) -> f32
            h = rows.astype(f32) * scale + shift
            return jnp.maximum(h, 0.0) if pre_norm_relu else h

        # Row tile plus a 1-row halo; border rows are zeroed unconditionally
        # (megacore-safe: no cross-grid-step state).
        mid = in_stage(x_ref[0, pl.ds(r0, TR)])                        # (TR, W, CP_in)
        top = in_stage(x_ref[0, pl.ds(jnp.maximum(r0 - 1, 0), 1)])     # (1, W, CP_in)
        top = top * (r0 > 0).astype(f32)
        bot = in_stage(x_ref[0, pl.ds(jnp.minimum(r0 + TR, H - 1), 1)])
        bot = bot * (r0 + TR < H).astype(f32)
        hpad = jnp.concatenate([top, mid, bot], axis=0)                # (TR+2, W, CP_in)

        # dw in {-1, 0, +1} column shifts: XLU roll + one-column zero mask
        # (lane-dense, no unaligned sublane slices / masked column stores).
        col = jax.lax.broadcasted_iota(jnp.int32, (1, W, CP_in), 1)
        mask_l = (col >= 1).astype(f32)
        mask_r = (col <= W - 2).astype(f32)
        tap_scr[0] = (pltpu.roll(hpad, 1, axis=1) * mask_l).astype(jnp.bfloat16)
        tap_scr[1] = hpad.astype(jnp.bfloat16)
        tap_scr[2] = (pltpu.roll(hpad, W - 1, axis=1) * mask_r).astype(jnp.bfloat16)

        # 9 accumulated bf16 matmuls with an f32 accumulator (no im2col buffer).
        acc = jnp.zeros((TR * W, CP_out), f32)
        for dh in range(3):
            for dw in range(3):
                win = tap_scr[dw, dh:dh + TR].reshape(TR * W, CP_in)
                acc = acc + jnp.dot(win, w_ref[dh * 3 + dw],
                                    preferred_element_type=f32)

        # Per-tile channel sum / sum-of-squares from the f32 accumulator
        # (before any bf16 downcast), as skinny ones-matmuls on the MXU.
        ones_row = jnp.ones((1, TR * W), f32)
        s = jnp.dot(ones_row, acc, preferred_element_type=f32)
        sq = jnp.dot(ones_row, acc * acc, preferred_element_type=f32)
        stats_ref[0, 0] = jnp.concatenate([s, sq], axis=0)

        y_ref[...] = acc.reshape(1, TR, W, CP_out).astype(y_ref.dtype)

    return kernel


def double_conv_pallas(x_nchw, w1, b1, g1, be1, w2, b2, g2, be2):
    """x_nchw: (N, Cin, H, W) f32.  Conv weights in HWIO.  Returns (N, Cout, H, W).

    b1/b2 (conv biases) are accepted for interface parity but unused: under
    training-mode (batch-statistics) BatchNorm the mean subtraction cancels a
    per-channel bias exactly.
    """
    del b1, b2
    N, Cin, H, W = x_nchw.shape
    Cout = w1.shape[-1]
    f32, bf16 = jnp.float32, jnp.bfloat16
    CPi, CPo = _round_up_lanes(Cin), _round_up_lanes(Cout)  # separate paddings
    TR = _pick_row_tile(H)
    RT = H // TR

    # NCHW -> NHWC, channel zero-padded, stored bf16 (the matmul operands are
    # bf16 anyway, so this adds no rounding and halves HBM traffic).
    x = jnp.transpose(x_nchw, (0, 2, 3, 1)).astype(f32)
    x = jnp.pad(x, ((0, 0), (0, 0), (0, 0), (0, CPi - Cin))).astype(bf16)

    # Weights as (9, CP_in, CP_out) bf16 per-tap matrices (zero channel pad).
    w1p = jnp.zeros((9, CPi, CPo), f32).at[:, :Cin, :Cout].set(
        w1.astype(f32).reshape(9, Cin, Cout)).astype(bf16)
    w2p = jnp.zeros((9, CPo, CPo), f32).at[:, :Cout, :Cout].set(
        w2.astype(f32).reshape(9, Cout, Cout)).astype(bf16)

    def padc(v, cp):
        return jnp.pad(v.astype(f32), (0, cp - v.shape[0]))

    g1p, be1p = padc(g1, CPo), padc(be1, CPo)
    g2p, be2p = padc(g2, CPo), padc(be2, CPo)

    params = pltpu.CompilerParams(
        dimension_semantics=("parallel", "parallel"))
    # NOTE: per-step VMEM is a few MiB even at large H,W thanks to row tiling;
    # raise vmem_limit_bytes only if row tiles are grown past the 32 MiB
    # default scoped limit.

    def conv_call(cp_in, cp_out, pre_norm_relu, out_dtype):
        return pl.pallas_call(
            _make_conv_kernel(H, W, TR, cp_in, cp_out, pre_norm_relu),
            out_shape=(jax.ShapeDtypeStruct((N, H, W, cp_out), out_dtype),
                       jax.ShapeDtypeStruct((N, RT, 2, cp_out), f32)),
            grid=(N, RT),
            in_specs=[
                pl.BlockSpec((1, H, W, cp_in), lambda n, r: (n, 0, 0, 0)),
                pl.BlockSpec((9, cp_in, cp_out), lambda n, r: (0, 0, 0)),
                pl.BlockSpec((1, cp_in), lambda n, r: (0, 0)),
                pl.BlockSpec((1, cp_in), lambda n, r: (0, 0)),
            ],
            out_specs=(
                pl.BlockSpec((1, TR, W, cp_out), lambda n, r: (n, r, 0, 0)),
                pl.BlockSpec((1, 1, 2, cp_out), lambda n, r: (n, r, 0, 0)),
            ),
            scratch_shapes=[pltpu.VMEM((3, TR + 2, W, cp_in), bf16)],
            compiler_params=params,
        )

    def bn_fold(stats, gamma_p, beta_p):
        # Parallel-variance combine of per-(sample, row-tile) partials —
        # avoids the cancellation of a single global E[y^2] - E[y]^2.
        cp = stats.shape[-1]
        cnt_t = float(TR * W)
        cnt = float(N * H * W)
        sum_t = stats[:, :, 0, :].reshape(-1, cp)
        sq_t = stats[:, :, 1, :].reshape(-1, cp)
        mean_t = sum_t / cnt_t
        m2_t = sq_t - cnt_t * mean_t * mean_t
        mean = jnp.sum(sum_t, axis=0) / cnt
        m2 = jnp.sum(m2_t, axis=0) + cnt_t * jnp.sum(
            jnp.square(mean_t - mean), axis=0)
        var = jnp.maximum(m2 / cnt, 0.0)                  # biased variance
        scale = gamma_p * jax.lax.rsqrt(var + EPS)
        shift = beta_p - mean * scale
        return scale.reshape(1, cp), shift.reshape(1, cp)

    ones_i = jnp.ones((1, CPi), f32)
    zeros_i = jnp.zeros((1, CPi), f32)

    # conv1: pre-BN result stored bf16 + per-tile stats for BN1.
    y1, st1 = conv_call(CPi, CPo, False, bf16)(x, w1p, ones_i, zeros_i)
    scale1, shift1 = bn_fold(st1, g1p, be1p)

    # BN1 + ReLU fused into conv2's input stage (re-applied in f32); conv2
    # output stays f32 + per-tile stats for BN2.
    y2, st2 = conv_call(CPo, CPo, True, f32)(y1, w2p, scale1, shift1)
    scale2, shift2 = bn_fold(st2, g2p, be2p)

    # BN2 + ReLU fused (by XLA) with the slice-to-Cout + NCHW transpose
    # epilogue — no separate elementwise pallas_call / activation round-trip.
    out = jnp.maximum(
        y2 * scale2.reshape(1, 1, 1, CPo) + shift2.reshape(1, 1, 1, CPo), 0.0)
    return jnp.transpose(out[..., :Cout], (0, 3, 1, 2))


def double_conv_reference(x, w1, b1, g1, be1, w2, b2, g2, be2):
    """Pure-JAX reference (NCHW), mirrors PyTorch DoubleConv in training mode."""
    def conv_bn_relu(x, w, b, g, be):
        y = jax.lax.conv_general_dilated(
            x, w, window_strides=(1, 1), padding='SAME',
            dimension_numbers=('NCHW', 'HWIO', 'NCHW'))
        y = y + b.reshape(1, -1, 1, 1)
        mean = jnp.mean(y, axis=(0, 2, 3), keepdims=True)
        var = jnp.mean((y - mean) ** 2, axis=(0, 2, 3), keepdims=True)
        y = (y - mean) * jax.lax.rsqrt(var + EPS)
        y = y * g.reshape(1, -1, 1, 1) + be.reshape(1, -1, 1, 1)
        return jnp.maximum(y, 0.0)

    h = conv_bn_relu(x, w1, b1, g1, be1)
    return conv_bn_relu(h, w2, b2, g2, be2)


if __name__ == "__main__":
    N, Cin, Cout, H, W = 2, 4, 8, 16, 16

    key = jax.random.PRNGKey(0)
    kx, k1, k2, kb1, kb2 = jax.random.split(key, 5)

    x = jax.random.normal(kx, (N, Cin, H, W), jnp.float32)

    # Deterministic synthetic parameters (shapes match nn.Conv2d / nn.BatchNorm2d).
    w1 = 0.1 * jax.random.normal(k1, (3, 3, Cin, Cout), jnp.float32)   # HWIO
    b1 = 0.05 * jax.random.normal(kb1, (Cout,), jnp.float32)
    w2 = 0.1 * jax.random.normal(k2, (3, 3, Cout, Cout), jnp.float32)  # HWIO
    b2 = 0.05 * jax.random.normal(kb2, (Cout,), jnp.float32)
    # BatchNorm affine params (PyTorch init: weight=1, bias=0).
    g1 = jnp.ones((Cout,), jnp.float32)
    be1 = jnp.zeros((Cout,), jnp.float32)
    g2 = jnp.ones((Cout,), jnp.float32)
    be2 = jnp.zeros((Cout,), jnp.float32)

    out = jax.block_until_ready(
        double_conv_pallas(x, w1, b1, g1, be1, w2, b2, g2, be2))
    ref = jax.block_until_ready(
        double_conv_reference(x, w1, b1, g1, be1, w2, b2, g2, be2))

    assert out.shape == (N, Cout, H, W)
    # bf16 MXU operands (weights + activation windows) and a bf16 inter-conv
    # activation imply a looser tolerance than a pure-f32 pipeline; values are
    # O(1) after the final BatchNorm, so 5e-2 still catches real bugs.
    err = float(jnp.max(jnp.abs(out - ref)))
    assert jnp.allclose(out, ref, atol=5e-2, rtol=5e-2), err

    print("KERNEL_OK")
</pallas_src>

<mosaic_0001>
module attributes {stable_mosaic.version = 11 : i64} {
  func.func @kernel(%arg0: i32, %arg1: i32, %arg2: memref<1x16x16x128xbf16, #tpu.memory_space<vmem>>, %arg3: memref<9x128x128xbf16, #tpu.memory_space<vmem>>, %arg4: memref<1x128xf32, #tpu.memory_space<vmem>>, %arg5: memref<1x128xf32, #tpu.memory_space<vmem>>, %arg6: memref<1x16x16x128xbf16, #tpu.memory_space<vmem>>, %arg7: memref<1x1x2x128xf32, #tpu.memory_space<vmem>>, %arg8: memref<3x18x16x128xbf16, #tpu.memory_space<vmem>>) attributes {dimension_semantics = [#tpu.dimension_semantics<parallel>, #tpu.dimension_semantics<parallel>], iteration_bounds = array<i64: 2, 1>, scalar_prefetch = 0 : i64, scratch_operands = 1 : i64, tpu.core_type = #tpu.core_type<tc>, window_params = [{transform_indices = @transform_0, window_bounds = array<i64: 1, 16, 16, 128>}, {pipeline_mode = #tpu.pipeline_mode<synchronous>, transform_indices = @transform_1, window_bounds = array<i64: 9, 128, 128>}, {pipeline_mode = #tpu.pipeline_mode<synchronous>, transform_indices = @transform_2, window_bounds = array<i64: 1, 128>}, {pipeline_mode = #tpu.pipeline_mode<synchronous>, transform_indices = @transform_3, window_bounds = array<i64: 1, 128>}, {transform_indices = @transform_4, window_bounds = array<i64: 1, 16, 16, 128>}, {transform_indices = @transform_5, window_bounds = array<i64: 1, 1, 2, 128>}]} {
    %c16_i32 = arith.constant 16 : i32
    %0 = arith.muli %arg1, %c16_i32 : i32
    %1 = tpu.assume_multiple %0, 16 : i32
    %c0 = arith.constant 0 : index
    %c0_0 = arith.constant 0 : index
    %2 = vector.load %arg4[%c0, %c0_0] : memref<1x128xf32, #tpu.memory_space<vmem>>, vector<1x128xf32>
    %3 = vector.shape_cast %2 : vector<1x128xf32> to vector<1x1x128xf32>
    %c0_1 = arith.constant 0 : index
    %c0_2 = arith.constant 0 : index
    %4 = vector.load %arg5[%c0_1, %c0_2] : memref<1x128xf32, #tpu.memory_space<vmem>>, vector<1x128xf32>
    %5 = vector.shape_cast %4 : vector<1x128xf32> to vector<1x1x128xf32>
    %c0_3 = arith.constant 0 : index
    %6 = arith.index_cast %1 : i32 to index
    %c0_4 = arith.constant 0 : index
    %c0_5 = arith.constant 0 : index
    %7 = vector.load %arg2[%c0_3, %6, %c0_4, %c0_5] : memref<1x16x16x128xbf16, #tpu.memory_space<vmem>>, vector<1x16x16x128xbf16>
    %8 = vector.shape_cast %7 : vector<1x16x16x128xbf16> to vector<16x16x128xbf16>
    %9 = arith.extf %8 : vector<16x16x128xbf16> to vector<16x16x128xf32>
    %10 = vector.broadcast %3 : vector<1x1x128xf32> to vector<16x16x128xf32>
    %11 = arith.mulf %9, %10 : vector<16x16x128xf32>
    %12 = vector.broadcast %5 : vector<1x1x128xf32> to vector<16x16x128xf32>
    %13 = arith.addf %11, %12 : vector<16x16x128xf32>
    %c1_i32 = arith.constant 1 : i32
    %14 = arith.subi %1, %c1_i32 : i32
    %c0_i32 = arith.constant 0 : i32
    %15 = arith.maxsi %14, %c0_i32 : i32
    %c0_6 = arith.constant 0 : index
    %16 = arith.index_cast %15 : i32 to index
    %c0_7 = arith.constant 0 : index
    %c0_8 = arith.constant 0 : index
    %17 = vector.load %arg2[%c0_6, %16, %c0_7, %c0_8] : memref<1x16x16x128xbf16, #tpu.memory_space<vmem>>, vector<1x1x16x128xbf16>
    %18 = vector.shape_cast %17 : vector<1x1x16x128xbf16> to vector<1x16x128xbf16>
    %19 = arith.extf %18 : vector<1x16x128xbf16> to vector<1x16x128xf32>
    %20 = vector.broadcast %3 : vector<1x1x128xf32> to vector<1x16x128xf32>
    %21 = arith.mulf %19, %20 : vector<1x16x128xf32>
    %22 = vector.broadcast %5 : vector<1x1x128xf32> to vector<1x16x128xf32>
    %23 = arith.addf %21, %22 : vector<1x16x128xf32>
    %c0_i32_9 = arith.constant 0 : i32
    %24 = arith.cmpi sgt, %1, %c0_i32_9 : i32
    %25 = arith.extui %24 : i1 to i32
    %26 = arith.sitofp %25 : i32 to f32
    %27 = vector.broadcast %26 : f32 to vector<1x16x128xf32>
    %28 = arith.mulf %23, %27 : vector<1x16x128xf32>
    %c16_i32_10 = arith.constant 16 : i32
    %29 = arith.addi %1, %c16_i32_10 : i32
    %c15_i32 = arith.constant 15 : i32
    %30 = arith.minsi %29, %c15_i32 : i32
    %c0_11 = arith.constant 0 : index
    %31 = arith.index_cast %30 : i32 to index
    %c0_12 = arith.constant 0 : index
    %c0_13 = arith.constant 0 : index
    %32 = vector.load %arg2[%c0_11, %31, %c0_12, %c0_13] : memref<1x16x16x128xbf16, #tpu.memory_space<vmem>>, vector<1x1x16x128xbf16>
    %33 = vector.shape_cast %32 : vector<1x1x16x128xbf16> to vector<1x16x128xbf16>
    %34 = arith.extf %33 : vector<1x16x128xbf16> to vector<1x16x128xf32>
    %35 = vector.broadcast %3 : vector<1x1x128xf32> to vector<1x16x128xf32>
    %36 = arith.mulf %34, %35 : vector<1x16x128xf32>
    %37 = vector.broadcast %5 : vector<1x1x128xf32> to vector<1x16x128xf32>
    %38 = arith.addf %36, %37 : vector<1x16x128xf32>
    %c16_i32_14 = arith.constant 16 : i32
    %39 = arith.addi %1, %c16_i32_14 : i32
    %c16_i32_15 = arith.constant 16 : i32
    %40 = arith.cmpi slt, %39, %c16_i32_15 : i32
    %41 = arith.extui %40 : i1 to i32
    %42 = arith.sitofp %41 : i32 to f32
    %43 = vector.broadcast %42 : f32 to vector<1x16x128xf32>
    %44 = arith.mulf %38, %43 : vector<1x16x128xf32>
    %45 = tpu.concatenate %28, %13, %44 in 0 : vector<1x16x128xf32>, vector<16x16x128xf32>, vector<1x16x128xf32> -> vector<18x16x128xf32>
    %46 = tpu.iota {dimensions = array<i32: 1>} : vector<1x16x128xi32>
    %c1_i32_16 = arith.constant 1 : i32
    %47 = vector.broadcast %c1_i32_16 : i32 to vector<1x16x128xi32>
    %48 = arith.cmpi sge, %46, %47 : vector<1x16x128xi32>
    %49 = arith.extui %48 : vector<1x16x128xi1> to vector<1x16x128xi32>
    %50 = arith.sitofp %49 : vector<1x16x128xi32> to vector<1x16x128xf32>
    %c14_i32 = arith.constant 14 : i32
    %51 = vector.broadcast %c14_i32 : i32 to vector<1x16x128xi32>
    %52 = arith.cmpi sle, %46, %51 : vector<1x16x128xi32>
    %53 = arith.extui %52 : vector<1x16x128xi1> to vector<1x16x128xi32>
    %54 = arith.sitofp %53 : vector<1x16x128xi32> to vector<1x16x128xf32>
    %c1_i32_17 = arith.constant 1 : i32
    %55 = tpu.dynamic_rotate %45 by %c1_i32_17 dim 1 : vector<18x16x128xf32>, i32 -> vector<18x16x128xf32>
    %56 = vector.broadcast %50 : vector<1x16x128xf32> to vector<18x16x128xf32>
    %57 = arith.mulf %55, %56 : vector<18x16x128xf32>
    %58 = arith.truncf %57 : vector<18x16x128xf32> to vector<18x16x128xbf16>
    %c0_18 = arith.constant 0 : index
    %c0_19 = arith.constant 0 : index
    %c0_20 = arith.constant 0 : index
    %c0_21 = arith.constant 0 : index
    %59 = vector.load %arg8[%c0_18, %c0_19, %c0_20, %c0_21] : memref<3x18x16x128xbf16, #tpu.memory_space<vmem>>, vector<1x18x16x128xbf16>
    %60 = vector.shape_cast %59 : vector<1x18x16x128xbf16> to vector<18x16x128xbf16>
    %61 = vector.shape_cast %58 : vector<18x16x128xbf16> to vector<1x18x16x128xbf16>
    tpu.vector_store %arg8[%c0_18, %c0_19, %c0_20, %c0_21], %61 {strides = array<i32>} : memref<3x18x16x128xbf16, #tpu.memory_space<vmem>>, vector<1x18x16x128xbf16>,
    %62 = arith.truncf %45 : vector<18x16x128xf32> to vector<18x16x128xbf16>
    %c1 = arith.constant 1 : index
    %c0_22 = arith.constant 0 : index
    %c0_23 = arith.constant 0 : index
    %c0_24 = arith.constant 0 : index
    %63 = vector.load %arg8[%c1, %c0_22, %c0_23, %c0_24] : memref<3x18x16x128xbf16, #tpu.memory_space<vmem>>, vector<1x18x16x128xbf16>
    %64 = vector.shape_cast %63 : vector<1x18x16x128xbf16> to vector<18x16x128xbf16>
    %65 = vector.shape_cast %62 : vector<18x16x128xbf16> to vector<1x18x16x128xbf16>
    tpu.vector_store %arg8[%c1, %c0_22, %c0_23, %c0_24], %65 {strides = array<i32>} : memref<3x18x16x128xbf16, #tpu.memory_space<vmem>>, vector<1x18x16x128xbf16>,
    %c15_i32_25 = arith.constant 15 : i32
    %66 = tpu.dynamic_rotate %45 by %c15_i32_25 dim 1 : vector<18x16x128xf32>, i32 -> vector<18x16x128xf32>
    %67 = vector.broadcast %54 : vector<1x16x128xf32> to vector<18x16x128xf32>
    %68 = arith.mulf %66, %67 : vector<18x16x128xf32>
    %69 = arith.truncf %68 : vector<18x16x128xf32> to vector<18x16x128xbf16>
    %c2 = arith.constant 2 : index
    %c0_26 = arith.constant 0 : index
    %c0_27 = arith.constant 0 : index
    %c0_28 = arith.constant 0 : index
    %70 = vector.load %arg8[%c2, %c0_26, %c0_27, %c0_28] : memref<3x18x16x128xbf16, #tpu.memory_space<vmem>>, vector<1x18x16x128xbf16>
    %71 = vector.shape_cast %70 : vector<1x18x16x128xbf16> to vector<18x16x128xbf16>
    %72 = vector.shape_cast %69 : vector<18x16x128xbf16> to vector<1x18x16x128xbf16>
    tpu.vector_store %arg8[%c2, %c0_26, %c0_27, %c0_28], %72 {strides = array<i32>} : memref<3x18x16x128xbf16, #tpu.memory_space<vmem>>, vector<1x18x16x128xbf16>,
    %cst = arith.constant 0.000000e+00 : f32
    %73 = vector.broadcast %cst : f32 to vector<256x128xf32>
    %c0_29 = arith.constant 0 : index
    %c0_30 = arith.constant 0 : index
    %c0_31 = arith.constant 0 : index
    %c0_32 = arith.constant 0 : index
    %74 = vector.load %arg8[%c0_29, %c0_30, %c0_31, %c0_32] : memref<3x18x16x128xbf16, #tpu.memory_space<vmem>>, vector<1x16x16x128xbf16>
    %75 = vector.shape_cast %74 : vector<1x16x16x128xbf16> to vector<16x16x128xbf16>
    %76 = vector.shape_cast %75 : vector<16x16x128xbf16> to vector<256x128xbf16>
    %c0_33 = arith.constant 0 : index
    %c0_34 = arith.constant 0 : index
    %c0_35 = arith.constant 0 : index
    %77 = vector.load %arg3[%c0_33, %c0_34, %c0_35] : memref<9x128x128xbf16, #tpu.memory_space<vmem>>, vector<1x128x128xbf16>
    %78 = vector.shape_cast %77 : vector<1x128x128xbf16> to vector<128x128xbf16>
    %cst_36 = arith.constant dense<0.000000e+00> : vector<256x128xf32>
    %79 = tpu.matmul %76, %78, %cst_36 {dimension_numbers = #tpu.dot_dimension_numbers<[1], [0], [0], [1], [0, 0, 1, 1], [], []>} : vector<256x128xbf16>, vector<128x128xbf16>, vector<256x128xf32> -> vector<256x128xf32>
    %80 = arith.addf %73, %79 : vector<256x128xf32>
    %c1_37 = arith.constant 1 : index
    %c0_38 = arith.constant 0 : index
    %c0_39 = arith.constant 0 : index
    %c0_40 = arith.constant 0 : index
    %81 = vector.load %arg8[%c1_37, %c0_38, %c0_39, %c0_40] : memref<3x18x16x128xbf16, #tpu.memory_space<vmem>>, vector<1x16x16x128xbf16>
    %82 = vector.shape_cast %81 : vector<1x16x16x128xbf16> to vector<16x16x128xbf16>
    %83 = vector.shape_cast %82 : vector<16x16x128xbf16> to vector<256x128xbf16>
    %c1_41 = arith.constant 1 : index
    %c0_42 = arith.constant 0 : index
    %c0_43 = arith.constant 0 : index
    %84 = vector.load %arg3[%c1_41, %c0_42, %c0_43] : memref<9x128x128xbf16, #tpu.memory_space<vmem>>, vector<1x128x128xbf16>
    %85 = vector.shape_cast %84 : vector<1x128x128xbf16> to vector<128x128xbf16>
    %cst_44 = arith.constant dense<0.000000e+00> : vector<256x128xf32>
    %86 = tpu.matmul %83, %85, %cst_44 {dimension_numbers = #tpu.dot_dimension_numbers<[1], [0], [0], [1], [0, 0, 1, 1], [], []>} : vector<256x128xbf16>, vector<128x128xbf16>, vector<256x128xf32> -> vector<256x128xf32>
    %87 = arith.addf %80, %86 : vector<256x128xf32>
    %c2_45 = arith.constant 2 : index
    %c0_46 = arith.constant 0 : index
    %c0_47 = arith.constant 0 : index
    %c0_48 = arith.constant 0 : index
    %88 = vector.load %arg8[%c2_45, %c0_46, %c0_47, %c0_48] : memref<3x18x16x128xbf16, #tpu.memory_space<vmem>>, vector<1x16x16x128xbf16>
    %89 = vector.shape_cast %88 : vector<1x16x16x128xbf16> to vector<16x16x128xbf16>
    %90 = vector.shape_cast %89 : vector<16x16x128xbf16> to vector<256x128xbf16>
    %c2_49 = arith.constant 2 : index
    %c0_50 = arith.constant 0 : index
    %c0_51 = arith.constant 0 : index
    %91 = vector.load %arg3[%c2_49, %c0_50, %c0_51] : memref<9x128x128xbf16, #tpu.memory_space<vmem>>, vector<1x128x128xbf16>
    %92 = vector.shape_cast %91 : vector<1x128x128xbf16> to vector<128x128xbf16>
    %cst_52 = arith.constant dense<0.000000e+00> : vector<256x128xf32>
    %93 = tpu.matmul %90, %92, %cst_52 {dimension_numbers = #tpu.dot_dimension_numbers<[1], [0], [0], [1], [0, 0, 1, 1], [], []>} : vector<256x128xbf16>, vector<128x128xbf16>, vector<256x128xf32> -> vector<256x128xf32>
    %94 = arith.addf %87, %93 : vector<256x128xf32>
    %c0_53 = arith.constant 0 : index
    %c1_54 = arith.constant 1 : index
    %c0_55 = arith.constant 0 : index
    %c0_56 = arith.constant 0 : index
    %95 = vector.load %arg8[%c0_53, %c1_54, %c0_55, %c0_56] : memref<3x18x16x128xbf16, #tpu.memory_space<vmem>>, vector<1x16x16x128xbf16>
    %96 = vector.shape_cast %95 : vector<1x16x16x128xbf16> to vector<16x16x128xbf16>
    %97 = vector.shape_cast %96 : vector<16x16x128xbf16> to vector<256x128xbf16>
    %c3 = arith.constant 3 : index
    %c0_57 = arith.constant 0 : index
    %c0_58 = arith.constant 0 : index
    %98 = vector.load %arg3[%c3, %c0_57, %c0_58] : memref<9x128x128xbf16, #tpu.memory_space<vmem>>, vector<1x128x128xbf16>
    %99 = vector.shape_cast %98 : vector<1x128x128xbf16> to vector<128x128xbf16>
    %cst_59 = arith.constant dense<0.000000e+00> : vector<256x128xf32>
    %100 = tpu.matmul %97, %99, %cst_59 {dimension_numbers = #tpu.dot_dimension_numbers<[1], [0], [0], [1], [0, 0, 1, 1], [], []>} : vector<256x128xbf16>, vector<128x128xbf16>, vector<256x128xf32> -> vector<256x128xf32>
    %101 = arith.addf %94, %100 : vector<256x128xf32>
    %c1_60 = arith.constant 1 : index
    %c1_61 = arith.constant 1 : index
    %c0_62 = arith.constant 0 : index
    %c0_63 = arith.constant 0 : index
    %102 = vector.load %arg8[%c1_60, %c1_61, %c0_62, %c0_63] : memref<3x18x16x128xbf16, #tpu.memory_space<vmem>>, vector<1x16x16x128xbf16>
    %103 = vector.shape_cast %102 : vector<1x16x16x128xbf16> to vector<16x16x128xbf16>
    %104 = vector.shape_cast %103 : vector<16x16x128xbf16> to vector<256x128xbf16>
    %c4 = arith.constant 4 : index
    %c0_64 = arith.constant 0 : index
    %c0_65 = arith.constant 0 : index
    %105 = vector.load %arg3[%c4, %c0_64, %c0_65] : memref<9x128x128xbf16, #tpu.memory_space<vmem>>, vector<1x128x128xbf16>
    %106 = vector.shape_cast %105 : vector<1x128x128xbf16> to vector<128x128xbf16>
    %cst_66 = arith.constant dense<0.000000e+00> : vector<256x128xf32>
    %107 = tpu.matmul %104, %106, %cst_66 {dimension_numbers = #tpu.dot_dimension_numbers<[1], [0], [0], [1], [0, 0, 1, 1], [], []>} : vector<256x128xbf16>, vector<128x128xbf16>, vector<256x128xf32> -> vector<256x128xf32>
    %108 = arith.addf %101, %107 : vector<256x128xf32>
    %c2_67 = arith.constant 2 : index
    %c1_68 = arith.constant 1 : index
    %c0_69 = arith.constant 0 : index
    %c0_70 = arith.constant 0 : index
    %109 = vector.load %arg8[%c2_67, %c1_68, %c0_69, %c0_70] : memref<3x18x16x128xbf16, #tpu.memory_space<vmem>>, vector<1x16x16x128xbf16>
    %110 = vector.shape_cast %109 : vector<1x16x16x128xbf16> to vector<16x16x128xbf16>
    %111 = vector.shape_cast %110 : vector<16x16x128xbf16> to vector<256x128xbf16>
    %c5 = arith.constant 5 : index
    %c0_71 = arith.constant 0 : index
    %c0_72 = arith.constant 0 : index
    %112 = vector.load %arg3[%c5, %c0_71, %c0_72] : memref<9x128x128xbf16, #tpu.memory_space<vmem>>, vector<1x128x128xbf16>
    %113 = vector.shape_cast %112 : vector<1x128x128xbf16> to vector<128x128xbf16>
    %cst_73 = arith.constant dense<0.000000e+00> : vector<256x128xf32>
    %114 = tpu.matmul %111, %113, %cst_73 {dimension_numbers = #tpu.dot_dimension_numbers<[1], [0], [0], [1], [0, 0, 1, 1], [], []>} : vector<256x128xbf16>, vector<128x128xbf16>, vector<256x128xf32> -> vector<256x128xf32>
    %115 = arith.addf %108, %114 : vector<256x128xf32>
    %c0_74 = arith.constant 0 : index
    %c2_75 = arith.constant 2 : index
    %c0_76 = arith.constant 0 : index
    %c0_77 = arith.constant 0 : index
    %116 = vector.load %arg8[%c0_74, %c2_75, %c0_76, %c0_77] : memref<3x18x16x128xbf16, #tpu.memory_space<vmem>>, vector<1x16x16x128xbf16>
    %117 = vector.shape_cast %116 : vector<1x16x16x128xbf16> to vector<16x16x128xbf16>
    %118 = vector.shape_cast %117 : vector<16x16x128xbf16> to vector<256x128xbf16>
    %c6 = arith.constant 6 : index
    %c0_78 = arith.constant 0 : index
    %c0_79 = arith.constant 0 : index
    %119 = vector.load %arg3[%c6, %c0_78, %c0_79] : memref<9x128x128xbf16, #tpu.memory_space<vmem>>, vector<1x128x128xbf16>
    %120 = vector.shape_cast %119 : vector<1x128x128xbf16> to vector<128x128xbf16>
    %cst_80 = arith.constant dense<0.000000e+00> : vector<256x128xf32>
    %121 = tpu.matmul %118, %120, %cst_80 {dimension_numbers = #tpu.dot_dimension_numbers<[1], [0], [0], [1], [0, 0, 1, 1], [], []>} : vector<256x128xbf16>, vector<128x128xbf16>, vector<256x128xf32> -> vector<256x128xf32>
    %122 = arith.addf %115, %121 : vector<256x128xf32>
    %c1_81 = arith.constant 1 : index
    %c2_82 = arith.constant 2 : index
    %c0_83 = arith.constant 0 : index
    %c0_84 = arith.constant 0 : index
    %123 = vector.load %arg8[%c1_81, %c2_82, %c0_83, %c0_84] : memref<3x18x16x128xbf16, #tpu.memory_space<vmem>>, vector<1x16x16x128xbf16>
    %124 = vector.shape_cast %123 : vector<1x16x16x128xbf16> to vector<16x16x128xbf16>
    %125 = vector.shape_cast %124 : vector<16x16x128xbf16> to vector<256x128xbf16>
    %c7 = arith.constant 7 : index
    %c0_85 = arith.constant 0 : index
    %c0_86 = arith.constant 0 : index
    %126 = vector.load %arg3[%c7, %c0_85, %c0_86] : memref<9x128x128xbf16, #tpu.memory_space<vmem>>, vector<1x128x128xbf16>
    %127 = vector.shape_cast %126 : vector<1x128x128xbf16> to vector<128x128xbf16>
    %cst_87 = arith.constant dense<0.000000e+00> : vector<256x128xf32>
    %128 = tpu.matmul %125, %127, %cst_87 {dimension_numbers = #tpu.dot_dimension_numbers<[1], [0], [0], [1], [0, 0, 1, 1], [], []>} : vector<256x128xbf16>, vector<128x128xbf16>, vector<256x128xf32> -> vector<256x128xf32>
    %129 = arith.addf %122, %128 : vector<256x128xf32>
    %c2_88 = arith.constant 2 : index
    %c2_89 = arith.constant 2 : index
    %c0_90 = arith.constant 0 : index
    %c0_91 = arith.constant 0 : index
    %130 = vector.load %arg8[%c2_88, %c2_89, %c0_90, %c0_91] : memref<3x18x16x128xbf16, #tpu.memory_space<vmem>>, vector<1x16x16x128xbf16>
    %131 = vector.shape_cast %130 : vector<1x16x16x128xbf16> to vector<16x16x128xbf16>
    %132 = vector.shape_cast %131 : vector<16x16x128xbf16> to vector<256x128xbf16>
    %c8 = arith.constant 8 : index
    %c0_92 = arith.constant 0 : index
    %c0_93 = arith.constant 0 : index
    %133 = vector.load %arg3[%c8, %c0_92, %c0_93] : memref<9x128x128xbf16, #tpu.memory_space<vmem>>, vector<1x128x128xbf16>
    %134 = vector.shape_cast %133 : vector<1x128x128xbf16> to vector<128x128xbf16>
    %cst_94 = arith.constant dense<0.000000e+00> : vector<256x128xf32>
    %135 = tpu.matmul %132, %134, %cst_94 {dimension_numbers = #tpu.dot_dimension_numbers<[1], [0], [0], [1], [0, 0, 1, 1], [], []>} : vector<256x128xbf16>, vector<128x128xbf16>, vector<256x128xf32> -> vector<256x128xf32>
    %136 = arith.addf %129, %135 : vector<256x128xf32>
    %cst_95 = arith.constant 1.000000e+00 : f32
    %137 = vector.broadcast %cst_95 : f32 to vector<1x256xf32>
    %cst_96 = arith.constant dense<0.000000e+00> : vector<1x128xf32>
    %138 = tpu.matmul %137, %136, %cst_96 {dimension_numbers = #tpu.dot_dimension_numbers<[1], [0], [0], [1], [0, 0, 1, 1], [], []>} : vector<1x256xf32>, vector<256x128xf32>, vector<1x128xf32> -> vector<1x128xf32>
    %139 = arith.mulf %136, %136 : vector<256x128xf32>
    %cst_97 = arith.constant dense<0.000000e+00> : vector<1x128xf32>
    %140 = tpu.matmul %137, %139, %cst_97 {dimension_numbers = #tpu.dot_dimension_numbers<[1], [0], [0], [1], [0, 0, 1, 1], [], []>} : vector<1x256xf32>, vector<256x128xf32>, vector<1x128xf32> -> vector<1x128xf32>
    %141 = tpu.concatenate %138, %140 in 0 : vector<1x128xf32>, vector<1x128xf32> -> vector<2x128xf32>
    %c0_98 = arith.constant 0 : index
    %c0_99 = arith.constant 0 : index
    %c0_100 = arith.constant 0 : index
    %c0_101 = arith.constant 0 : index
    %142 = vector.load %arg7[%c0_98, %c0_99, %c0_100, %c0_101] : memref<1x1x2x128xf32, #tpu.memory_space<vmem>>, vector<1x1x2x128xf32>
    %143 = vector.shape_cast %142 : vector<1x1x2x128xf32> to vector<2x128xf32>
    %144 = vector.shape_cast %141 : vector<2x128xf32> to vector<1x1x2x128xf32>
    tpu.vector_store %arg7[%c0_98, %c0_99, %c0_100, %c0_101], %144 {strides = array<i32>} : memref<1x1x2x128xf32, #tpu.memory_space<vmem>>, vector<1x1x2x128xf32>,
    %145 = vector.shape_cast %136 : vector<256x128xf32> to vector<1x16x16x128xf32>
    %146 = arith.truncf %145 : vector<1x16x16x128xf32> to vector<1x16x16x128xbf16>
    %c0_102 = arith.constant 0 : index
    %c0_103 = arith.constant 0 : index
    %c0_104 = arith.constant 0 : index
    %c0_105 = arith.constant 0 : index
    %147 = vector.load %arg6[%c0_102, %c0_103, %c0_104, %c0_105] : memref<1x16x16x128xbf16, #tpu.memory_space<vmem>>, vector<1x16x16x128xbf16>
    tpu.vector_store %arg6[%c0_102, %c0_103, %c0_104, %c0_105], %146 {strides = array<i32>} : memref<1x16x16x128xbf16, #tpu.memory_space<vmem>>, vector<1x16x16x128xbf16>,
    return
  }
  func.func @transform_0(%arg0: i32, %arg1: i32) -> (i32, i32, i32, i32) {
    %c0_i32 = arith.constant 0 : i32
    %c0_i32_0 = arith.constant 0 : i32
    %c0_i32_1 = arith.constant 0 : i32
    %c0_i32_2 = arith.constant 0 : i32
    return %arg0, %c0_i32, %c0_i32_0, %c0_i32_1 : i32, i32, i32, i32
  }
  func.func @transform_1(%arg0: i32, %arg1: i32) -> (i32, i32, i32) {
    %c0_i32 = arith.constant 0 : i32
    %c0_i32_0 = arith.constant 0 : i32
    %c0_i32_1 = arith.constant 0 : i32
    %c0_i32_2 = arith.constant 0 : i32
    return %c0_i32, %c0_i32_0, %c0_i32_1 : i32, i32, i32
  }
  func.func @transform_2(%arg0: i32, %arg1: i32) -> (i32, i32) {
    %c0_i32 = arith.constant 0 : i32
    %c0_i32_0 = arith.constant 0 : i32
    %c0_i32_1 = arith.constant 0 : i32
    return %c0_i32, %c0_i32_0 : i32, i32
  }
  func.func @transform_3(%arg0: i32, %arg1: i32) -> (i32, i32) {
    %c0_i32 = arith.constant 0 : i32
    %c0_i32_0 = arith.constant 0 : i32
    %c0_i32_1 = arith.constant 0 : i32
    return %c0_i32, %c0_i32_0 : i32, i32
  }
  func.func @transform_4(%arg0: i32, %arg1: i32) -> (i32, i32, i32, i32) {
    %c0_i32 = arith.constant 0 : i32
    %c0_i32_0 = arith.constant 0 : i32
    %c0_i32_1 = arith.constant 0 : i32
    return %arg0, %arg1, %c0_i32, %c0_i32_0 : i32, i32, i32, i32
  }
  func.func @transform_5(%arg0: i32, %arg1: i32) -> (i32, i32, i32, i32) {
    %c0_i32 = arith.constant 0 : i32
    %c0_i32_0 = arith.constant 0 : i32
    %c0_i32_1 = arith.constant 0 : i32
    return %arg0, %arg1, %c0_i32, %c0_i32_0 : i32, i32, i32, i32
  }
}

</mosaic_0001>

<llo_original>
// kernel: tpu_custom_call.1
$region0: #{tpu_custom_call.1}
  #allocation0 [shape = 'u32[]', space=smem, size = 0x4, offset = 0x4, fixed_abs, tag = 'smem constant byte address 0x4 - core index']
  #allocation1 [shape = 'u32[72,128]{1,0:T(1,128)}', space=vmem, size = 0x9000, scoped, tag = 'internal scratch']
  #allocation2 [shape = 'bf16[3,18,16,128]{3,2,1,0:T(8,128)(2,1)}', space=vmem, size = 0x36000, scoped, tag = 'scratch operand']
  %s0 = inlined_call_operand.hbm [shape: bf16[2,16,16,128], index: 0, kind: input, shape index: {}]
  %s1 = inlined_call_operand.hbm [shape: bf16[9,128,128], index: 1, kind: input, shape index: {}]
  %s2 = inlined_call_operand.vmem [shape: f32[1,128], index: 2, kind: input, shape index: {}]
  %s3 = inlined_call_operand.vmem [shape: f32[1,128], index: 3, kind: input, shape index: {}]
  %s4 = inlined_call_operand.hbm [shape: bf16[2,16,16,128], index: 4, kind: output, shape index: {0}]
  %s5 = inlined_call_operand.hbm [shape: f32[2,1,2,128], index: 5, kind: output, shape index: {1}]
  %6 = xla_tuple %s4, %s5
  %s7 = sld [smem:[#allocation0]]
  $region65: #{tpu_custom_call.1} parent=0
    _
  %s9 = ssub.s32 1, %s7
  %s10 = scalar_select 0, %s9, %s7
  $region1: #{tpu_custom_call.1} parent=0
    #allocation3 [shape = 'u8[131072]{0}', space=vmem, size = 0x20000, scoped, tag = 'input window, operand 0']
    #allocation4 [shape = 's32[2]{0}', space=sflag, size = 0x8, scoped, tag = 'scoped memory for tpu_custom_call.1']
    #allocation5 [shape = 's32[2]{0}', space=sflag, size = 0x8, scoped, tag = 'scoped memory for tpu_custom_call.1']
    #allocation6 [shape = 'u8[294912]{0}', space=vmem, size = 0x48000, scoped, tag = 'input window, operand 1, single buffered']
    #allocation7 [shape = 's32[1]{0}', space=sflag, size = 0x4, scoped, tag = 'scoped memory for tpu_custom_call.1']
    #allocation8 [shape = 'u8[131072]{0}', space=vmem, size = 0x20000, scoped, tag = 'output window, operand 0']
    #allocation9 [shape = 'u8[2048]{0}', space=vmem, size = 0x800, scoped, tag = 'output window, operand 1']
    #allocation10 [shape = 's32[2]{0}', space=sflag, size = 0x8, scoped, tag = 'scoped memory for tpu_custom_call.1']
    %11 = vsyncpa [#allocation4], 0
    %s12 = scalar_lea.sflag [#allocation4], 1
    %13 = vsyncpa %s12, 0
    %14 = vsyncpa [#allocation7], 0
    %15 = vsyncpa [#allocation5], 0
    %s16 = scalar_lea.sflag [#allocation5], 1
    %17 = vsyncpa %s16, 0
    %18 = vsyncpa [#allocation10], 0
    %s19 = scalar_lea.sflag [#allocation10], 1
    %20 = vsyncpa %s19, 0
    loop: start=0, step=1, limit=4
    $region2: #{tpu_custom_call.1} parent=1 // loop_pre_header
      _
    $region3: #{tpu_custom_call.1} parent=1 // loop_header
      %s22 = sphi 0, %s26
      %p23 = scmp.ge.s32.totalorder %s22, 4
      %s29 = sphi 0, %s41
      %s30 = sphi 0, %s37
      %s31 = sphi 0, %s29
      %s32 = sphi 0, %s30
      %s33 = sphi 0, %s31
      %s34 = sphi 0, %s32
      %s44 = sphi 0, %s46
      %s47 = sphi 0, %s44
      %s48 = sphi 0, %s47
      %s64 = sphi 0, %s48
      %s68 = sphi 0, %s68
      %s70 = sphi 0, %s68
      %s71 = sphi 0, %s70
      %s85 = sphi 0, %s71
      %s89 = sphi 0, %s89
      %s91 = sphi 0, %s89
      %s92 = sphi 0, %s91
      %s106 = sphi 0, %s92
      %s110 = sphi 0, %s110
      %s112 = sphi 0, %s110
      %s113 = sphi 0, %s112
      %s127 = sphi 0, %s113
      %s135 = sphi 0, %s137
      %s138 = sphi 0, %s135
      %s139 = sphi 0, %s138
      %s155 = sphi 0, %s139
      %s163 = sphi 0, %s165
      %s166 = sphi 0, %s163
      %s167 = sphi 0, %s166
      %s183 = sphi 0, %s167
    $region4: #{tpu_custom_call.1} parent=1 // loop_header_branch
      %25 = sbr.rel (%p23) target = $region8
    $region5: #{tpu_custom_call.1} parent=1 // loop_body
      %s27 = ssub.s32 %s22, 1
      %s28 = ssub.s32 %s22, 2
      %s35 = sadd.s32 1, %s30
      %p36 = scmp.ge.s32.totalorder %s35, 1
      %s37 = scalar_select %p36, 0, %s35
      %s38 = sadd.s32 1, %s29
      %s39 = scalar_select %p36, %s38, %s29
      %p40 = scmp.ge.s32.totalorder %s39, 2
      %s41 = scalar_select %p40, 0, %s39
      %s42 = ssub.s32 %s29, %s41
      %p43 = scmp.eq.s32.totalorder %s42, 0
      %s45 = sadd.s32 %s44, 1
      %s46 = scalar_select %p43, %s44, %s45
      %p49 = pneg %p43
      %p50 = scmp.eq.s32.totalorder %s22, 1
      %p51 = por %p49, %p50
      %p52 = scmp.ne.s32.totalorder %s44, %s47
      %p53 = scmp.eq.s32.totalorder %s22, 0
      %p54 = por %p52, %p53
      %p55 = scmp.ne.s32.totalorder %s44, %s47
      %p56 = scmp.eq.s32.totalorder %s27, 1
      %p57 = por %p55, %p56
      %p58 = scmp.ne.s32.totalorder %s47, %s48
      %p59 = scmp.eq.s32.totalorder %s27, 0
      %p60 = por %p58, %p59
      %p61 = scmp.ne.s32.totalorder %s47, %s48
      %p62 = scmp.eq.s32.totalorder %s28, 1
      %p63 = por %p61, %p62
      %p65 = scmp.ne.s32.totalorder %s48, %s64
      %p66 = scmp.eq.s32.totalorder %s28, 0
      %p67 = por %p65, %p66
      %s69 = sadd.s32 %s68, 1
      %p72 = scmp.eq.s32.totalorder %s22, 1
      %p73 = scmp.ne.s32.totalorder %s68, %s70
      %p74 = scmp.eq.s32.totalorder %s22, 0
      %p75 = por %p73, %p74
      %p76 = scmp.ne.s32.totalorder %s68, %s70
      %p77 = scmp.eq.s32.totalorder %s27, 1
      %p78 = por %p76, %p77
      %p79 = scmp.ne.s32.totalorder %s70, %s71
      %p80 = scmp.eq.s32.totalorder %s27, 0
      %p81 = por %p79, %p80
      %p82 = scmp.ne.s32.totalorder %s70, %s71
      %p83 = scmp.eq.s32.totalorder %s28, 1
      %p84 = por %p82, %p83
      %p86 = scmp.ne.s32.totalorder %s71, %s85
      %p87 = scmp.eq.s32.totalorder %s28, 0
      %p88 = por %p86, %p87
      %s90 = sadd.s32 %s89, 1
      %p93 = scmp.eq.s32.totalorder %s22, 1
      %p94 = scmp.ne.s32.totalorder %s89, %s91
      %p95 = scmp.eq.s32.totalorder %s22, 0
      %p96 = por %p94, %p95
      %p97 = scmp.ne.s32.totalorder %s89, %s91
      %p98 = scmp.eq.s32.totalorder %s27, 1
      %p99 = por %p97, %p98
      %p100 = scmp.ne.s32.totalorder %s91, %s92
      %p101 = scmp.eq.s32.totalorder %s27, 0
      %p102 = por %p100, %p101
      %p103 = scmp.ne.s32.totalorder %s91, %s92
      %p104 = scmp.eq.s32.totalorder %s28, 1
      %p105 = por %p103, %p104
      %p107 = scmp.ne.s32.totalorder %s92, %s106
      %p108 = scmp.eq.s32.totalorder %s28, 0
      %p109 = por %p107, %p108
      %s111 = sadd.s32 %s110, 1
      %p114 = scmp.eq.s32.totalorder %s22, 1
      %p115 = scmp.ne.s32.totalorder %s110, %s112
      %p116 = scmp.eq.s32.totalorder %s22, 0
      %p117 = por %p115, %p116
      %p118 = scmp.ne.s32.totalorder %s110, %s112
      %p119 = scmp.eq.s32.totalorder %s27, 1
      %p120 = por %p118, %p119
      %p121 = scmp.ne.s32.totalorder %s112, %s113
      %p122 = scmp.eq.s32.totalorder %s27, 0
      %p123 = por %p121, %p122
      %p124 = scmp.ne.s32.totalorder %s112, %s113
      %p125 = scmp.eq.s32.totalorder %s28, 1
      %p126 = por %p124, %p125
      %p128 = scmp.ne.s32.totalorder %s113, %s127
      %p129 = scmp.eq.s32.totalorder %s28, 0
      %p130 = por %p128, %p129
      %s131 = ssub.s32 %s29, %s41
      %s132 = ssub.s32 %s30, %s37
      %s133 = sor.u32 %s131, %s132
      %p134 = scmp.eq.s32.totalorder %s133, 0
      %s136 = sadd.s32 %s135, 1
      %s137 = scalar_select %p134, %s135, %s136
      %p140 = pneg %p134
      %p141 = scmp.eq.s32.totalorder %s22, 1
      %p142 = por %p140, %p141
      %p143 = scmp.ne.s32.totalorder %s135, %s138
      %p144 = scmp.eq.s32.totalorder %s22, 0
      %p145 = por %p143, %p144
      %p146 = scmp.ne.s32.totalorder %s135, %s138
      %p147 = scmp.eq.s32.totalorder %s27, 1
      %p148 = por %p146, %p147
      %p149 = scmp.ne.s32.totalorder %s138, %s139
      %p150 = scmp.eq.s32.totalorder %s27, 0
      %p151 = por %p149, %p150
      %p152 = scmp.ne.s32.totalorder %s138, %s139
      %p153 = scmp.eq.s32.totalorder %s28, 1
      %p154 = por %p152, %p153
      %p156 = scmp.ne.s32.totalorder %s139, %s155
      %p157 = scmp.eq.s32.totalorder %s28, 0
      %p158 = por %p156, %p157
      %s159 = ssub.s32 %s29, %s41
      %s160 = ssub.s32 %s30, %s37
      %s161 = sor.u32 %s159, %s160
      %p162 = scmp.eq.s32.totalorder %s161, 0
      %s164 = sadd.s32 %s163, 1
      %s165 = scalar_select %p162, %s163, %s164
      %p168 = pneg %p162
      %p169 = scmp.eq.s32.totalorder %s22, 1
      %p170 = por %p168, %p169
      %p171 = scmp.ne.s32.totalorder %s163, %s166
      %p172 = scmp.eq.s32.totalorder %s22, 0
      %p173 = por %p171, %p172
      %p174 = scmp.ne.s32.totalorder %s163, %s166
      %p175 = scmp.eq.s32.totalorder %s27, 1
      %p176 = por %p174, %p175
      %p177 = scmp.ne.s32.totalorder %s166, %s167
      %p178 = scmp.eq.s32.totalorder %s27, 0
      %p179 = por %p177, %p178
      %p180 = scmp.ne.s32.totalorder %s166, %s167
      %p181 = scmp.eq.s32.totalorder %s28, 1
      %p182 = por %p180, %p181
      %p184 = scmp.ne.s32.totalorder %s167, %s183
      %p185 = scmp.eq.s32.totalorder %s28, 0
      %p186 = por %p184, %p185
      %p187 = scmp.le.s32.totalorder 1, %s22
      %p188 = scmp.lt.s32.totalorder %s22, 3
      %p189 = pnand %p187, %p188
      %p190 = pneg %p189
      // Predicated region
      $region9: #{tpu_custom_call.1} parent=5 // pred_check
        _
      $region10: #{tpu_custom_call.1} parent=5 // pred_check_branch
        %192 = sbr.rel (%p189) target = $region12
      $region11: #{tpu_custom_call.1} parent=5 // pred_region
        %s193 = ssub.s32 %s22, 1
        // Predicated region
        $region13: #{tpu_custom_call.1} parent=11 // pred_check
          %p194 = pneg %p81
        $region14: #{tpu_custom_call.1} parent=11 // pred_check_branch
          %196 = sbr.rel (%p194) target = $region16
        $region15: #{tpu_custom_call.1} parent=11 // pred_region
          %198 = vsyncadd [#allocation7], 0
          %s199 = sshll.u32 %s1, 4
          %s200 = int_to_ptr.hbm [resolvable:$true] %s199
          %s201 = sshll.u32 [#allocation6], 4
          %s202 = int_to_ptr.vmem [resolvable:$true] %s201
          %207 = dma.hbm_to_vmem [thread:$0]  %s200, 9216, %s202, [#allocation7], 64, 64, 4
        $region16: #{tpu_custom_call.1} parent=11 // pred_fallthru
          _
        // Predicated region
        $region17: #{tpu_custom_call.1} parent=11 // pred_check
          %p208 = pneg %p102
        $region18: #{tpu_custom_call.1} parent=11 // pred_check_branch
          %210 = sbr.rel (%p208) target = $region20
        $region19: #{tpu_custom_call.1} parent=11 // pred_region
          _
        $region20: #{tpu_custom_call.1} parent=11 // pred_fallthru
          _
        // Predicated region
        $region21: #{tpu_custom_call.1} parent=11 // pred_check
          %p211 = pneg %p123
        $region22: #{tpu_custom_call.1} parent=11 // pred_check_branch
          %213 = sbr.rel (%p211) target = $region24
        $region23: #{tpu_custom_call.1} parent=11 // pred_region
          _
        $region24: #{tpu_custom_call.1} parent=11 // pred_fallthru
          _
      $region12: #{tpu_custom_call.1} parent=5 // pred_fallthru
        _
      %p214 = scmp.lt.s32.totalorder %s22, 2
      // Predicated region
      $region25: #{tpu_custom_call.1} parent=5 // pred_check
        %p215 = pneg %p214
      $region26: #{tpu_custom_call.1} parent=5 // pred_check_branch
        %217 = sbr.rel (%p215) target = $region28
      $region27: #{tpu_custom_call.1} parent=5 // pred_region
        // Predicated region
        $region29: #{tpu_custom_call.1} parent=27 // pred_check
          %p218 = pneg %p54
        $region30: #{tpu_custom_call.1} parent=27 // pred_check_branch
          %220 = sbr.rel (%p218) target = $region32
        $region31: #{tpu_custom_call.1} parent=27 // pred_region
          %s221 = sand.u32 %s44, 1
          %s222 = scalar_lea.sflag [#allocation4], %s221
          %s223 = sand.u32 %s44, 1
          %s224 = smul.addr %s223, 128
          %s225 = scalar_lea.vmem [#allocation3], %s224
          %227 = vsyncadd %s222, 0
          %s228 = smul.addr %s29, 32
          %s229 = smul.addr %s228, 4
          %s230 = scalar_lea.hbm %s0, %s229
          %s231 = sshll.u32 %s230, 4
          %s232 = int_to_ptr.hbm [resolvable:$true] %s231
          %s233 = sshll.u32 %s225, 4
          %s234 = int_to_ptr.vmem [resolvable:$true] %s233
          %239 = dma.hbm_to_vmem [thread:$0]  %s232, 2048, %s234, %s222, 64, 64, 4
        $region32: #{tpu_custom_call.1} parent=27 // pred_fallthru
          _
      $region28: #{tpu_custom_call.1} parent=5 // pred_fallthru
        _
      %p240 = scmp.le.s32.totalorder 1, %s22
      %p241 = scmp.lt.s32.totalorder %s22, 3
      %p242 = pnand %p240, %p241
      %p243 = pneg %p242
      // Predicated region
      $region33: #{tpu_custom_call.1} parent=5 // pred_check
        _
      $region34: #{tpu_custom_call.1} parent=5 // pred_check_branch
        %245 = sbr.rel (%p242) target = $region36
      $region35: #{tpu_custom_call.1} parent=5 // pred_region
        %s246 = ssub.s32 %s22, 1
        %s247 = sand.u32 %s47, 1
        %s248 = scalar_lea.sflag [#allocation4], %s247
        %s249 = sand.u32 %s47, 1
        %s250 = smul.addr %s249, 128
        %s251 = scalar_lea.vmem [#allocation3], %s250
        // Predicated region
        $region37: #{tpu_custom_call.1} parent=35 // pred_check
          %p252 = pneg %p60
        $region38: #{tpu_custom_call.1} parent=35 // pred_check_branch
          %254 = sbr.rel (%p252) target = $region40
        $region39: #{tpu_custom_call.1} parent=35 // pred_region
          %256 = dma.done %s248, 2048
        $region40: #{tpu_custom_call.1} parent=35 // pred_fallthru
          _
        // Predicated region
        $region41: #{tpu_custom_call.1} parent=35 // pred_check
          %p257 = pneg %p81
        $region42: #{tpu_custom_call.1} parent=35 // pred_check_branch
          %259 = sbr.rel (%p257) target = $region44
        $region43: #{tpu_custom_call.1} parent=35 // pred_region
          %261 = dma.done [#allocation7], 9216
        $region44: #{tpu_custom_call.1} parent=35 // pred_fallthru
          _
        %s262 = sand.u32 %s47, 1
        %s263 = scalar_lea.sflag [#allocation4], %s262
        %s264 = sand.u32 %s47, 1
        %s265 = smul.addr %s264, 128
        %s266 = scalar_lea.vmem [#allocation3], %s265
        %p267 = pneg %p60
        %p268 = pneg %p57
        %p269 = pneg %p81
        %p270 = pneg %p78
        %p271 = pneg %p102
        %p272 = pneg %p99
        %p273 = pneg %p123
        %p274 = pneg %p120
        %p275 = pneg %p151
        %p276 = pneg %p148
        %s277 = sand.u32 %s138, 1
        %s278 = scalar_lea.sflag [#allocation5], %s277
        %s279 = sand.u32 %s138, 1
        %s280 = smul.addr %s279, 128
        %s281 = scalar_lea.vmem [#allocation8], %s280
        %p282 = pneg %p179
        %p283 = pneg %p176
        %s284 = sand.u32 %s166, 1
        %s285 = scalar_lea.sflag [#allocation10], %s284
        %s286 = sand.u32 %s166, 1
        %s287 = smul.addr %s286, 2
        %s288 = scalar_lea.vmem [#allocation9], %s287
        %s289 = smul.u32 16, %s32
        %s290 = smul.u32 %s32, 16
        %v291 = vld [vmem:[%s2] sm:$0x1]
        %v292 = vld [vmem:[%s3] sm:$0x1]
        %s293 = smul.u32 %s290, 2
        %s294 = smul.addr %s293, 4
        %s295 = scalar_lea.vmem %s251, %s294 [#allocation3]
        %v296 = vld [vmem:[%s295] sm:$0xf]
        %v297 = vld [vmem:[%s295 + $0x4] sm:$0xf]
        %v298 = vld [vmem:[%s295 + $0x8] sm:$0xf]
        %v299 = vld [vmem:[%s295 + $0xc] sm:$0xf]
        %v300 = vld [vmem:[%s295 + $0x10] sm:$0xf]
        %v301 = vld [vmem:[%s295 + $0x14] sm:$0xf]
        %v302 = vld [vmem:[%s295 + $0x18] sm:$0xf]
        %v303 = vld [vmem:[%s295 + $0x1c] sm:$0xf]
        %v304 = vld [vmem:[%s295 + $0x20] sm:$0xf]
        %v305 = vld [vmem:[%s295 + $0x24] sm:$0xf]
        %v306 = vld [vmem:[%s295 + $0x28] sm:$0xf]
        %v307 = vld [vmem:[%s295 + $0x2c] sm:$0xf]
        %v308 = vld [vmem:[%s295 + $0x30] sm:$0xf]
        %v309 = vld [vmem:[%s295 + $0x34] sm:$0xf]
        %v310 = vld [vmem:[%s295 + $0x38] sm:$0xf]
        %v311 = vld [vmem:[%s295 + $0x3c] sm:$0xf]
        %v312 = vld [vmem:[%s295 + $0x40] sm:$0xf]
        %v313 = vld [vmem:[%s295 + $0x44] sm:$0xf]
        %v314 = vld [vmem:[%s295 + $0x48] sm:$0xf]
        %v315 = vld [vmem:[%s295 + $0x4c] sm:$0xf]
        %v316 = vld [vmem:[%s295 + $0x50] sm:$0xf]
        %v317 = vld [vmem:[%s295 + $0x54] sm:$0xf]
        %v318 = vld [vmem:[%s295 + $0x58] sm:$0xf]
        %v319 = vld [vmem:[%s295 + $0x5c] sm:$0xf]
        %v320 = vld [vmem:[%s295 + $0x60] sm:$0xf]
        %v321 = vld [vmem:[%s295 + $0x64] sm:$0xf]
        %v322 = vld [vmem:[%s295 + $0x68] sm:$0xf]
        %v323 = vld [vmem:[%s295 + $0x6c] sm:$0xf]
        %v324 = vld [vmem:[%s295 + $0x70] sm:$0xf]
        %v325 = vld [vmem:[%s295 + $0x74] sm:$0xf]
        %v326 = vld [vmem:[%s295 + $0x78] sm:$0xf]
        %v327 = vld [vmem:[%s295 + $0x7c] sm:$0xf]
        %v328 = vunpack.c.l.bf16 %v296
        %v329 = vunpack.c.l.bf16 %v297
        %v330 = vunpack.c.l.bf16 %v298
        %v331 = vunpack.c.l.bf16 %v299
        %v332 = vunpack.c.l.bf16 %v300
        %v333 = vunpack.c.l.bf16 %v301
        %v334 = vunpack.c.l.bf16 %v302
        %v335 = vunpack.c.l.bf16 %v303
        %v336 = vunpack.c.l.bf16 %v304
        %v337 = vunpack.c.l.bf16 %v305
        %v338 = vunpack.c.l.bf16 %v306
        %v339 = vunpack.c.l.bf16 %v307
        %v340 = vunpack.c.l.bf16 %v308
        %v341 = vunpack.c.l.bf16 %v309
        %v342 = vunpack.c.l.bf16 %v310
        %v343 = vunpack.c.l.bf16 %v311
        %v344 = vunpack.c.l.bf16 %v312
        %v345 = vunpack.c.l.bf16 %v313
        %v346 = vunpack.c.l.bf16 %v314
        %v347 = vunpack.c.l.bf16 %v315
        %v348 = vunpack.c.l.bf16 %v316
        %v349 = vunpack.c.l.bf16 %v317
        %v350 = vunpack.c.l.bf16 %v318
        %v351 = vunpack.c.l.bf16 %v319
        %v352 = vunpack.c.l.bf16 %v320
        %v353 = vunpack.c.l.bf16 %v321
        %v354 = vunpack.c.l.bf16 %v322
        %v355 = vunpack.c.l.bf16 %v323
        %v356 = vunpack.c.l.bf16 %v324
        %v357 = vunpack.c.l.bf16 %v325
        %v358 = vunpack.c.l.bf16 %v326
        %v359 = vunpack.c.l.bf16 %v327
        %v361 = vperm.slane %v291, 0
        %v363 = vmul.f32 %v328, %v361
        %v364 = vmul.f32 %v329, %v361
        %v365 = vmul.f32 %v330, %v361
        %v366 = vmul.f32 %v331, %v361
        %v367 = vmul.f32 %v332, %v361
        %v368 = vmul.f32 %v333, %v361
        %v369 = vmul.f32 %v334, %v361
        %v370 = vmul.f32 %v335, %v361
        %v371 = vmul.f32 %v336, %v361
        %v372 = vmul.f32 %v337, %v361
        %v373 = vmul.f32 %v338, %v361
        %v374 = vmul.f32 %v339, %v361
        %v375 = vmul.f32 %v340, %v361
        %v376 = vmul.f32 %v341, %v361
        %v377 = vmul.f32 %v342, %v361
        %v378 = vmul.f32 %v343, %v361
        %v379 = vmul.f32 %v344, %v361
        %v380 = vmul.f32 %v345, %v361
        %v381 = vmul.f32 %v346, %v361
        %v382 = vmul.f32 %v347, %v361
        %v383 = vmul.f32 %v348, %v361
        %v384 = vmul.f32 %v349, %v361
        %v385 = vmul.f32 %v350, %v361
        %v386 = vmul.f32 %v351, %v361
        %v387 = vmul.f32 %v352, %v361
        %v388 = vmul.f32 %v353, %v361
        %v389 = vmul.f32 %v354, %v361
        %v390 = vmul.f32 %v355, %v361
        %v391 = vmul.f32 %v356, %v361
        %v392 = vmul.f32 %v357, %v361
        %v393 = vmul.f32 %v358, %v361
        %v394 = vmul.f32 %v359, %v361
        %v396 = vperm.slane %v292, 0
        %v398 = vadd.f32 %v363, %v396
        %v399 = vadd.f32 %v364, %v396
        %v400 = vadd.f32 %v365, %v396
        %v401 = vadd.f32 %v366, %v396
        %v402 = vadd.f32 %v367, %v396
        %v403 = vadd.f32 %v368, %v396
        %v404 = vadd.f32 %v369, %v396
        %v405 = vadd.f32 %v370, %v396
        %v406 = vadd.f32 %v371, %v396
        %v407 = vadd.f32 %v372, %v396
        %v408 = vadd.f32 %v373, %v396
        %v409 = vadd.f32 %v374, %v396
        %v410 = vadd.f32 %v375, %v396
        %v411 = vadd.f32 %v376, %v396
        %v412 = vadd.f32 %v377, %v396
        %v413 = vadd.f32 %v378, %v396
        %v414 = vadd.f32 %v379, %v396
        %v415 = vadd.f32 %v380, %v396
        %v416 = vadd.f32 %v381, %v396
        %v417 = vadd.f32 %v382, %v396
        %v418 = vadd.f32 %v383, %v396
        %v419 = vadd.f32 %v384, %v396
        %v420 = vadd.f32 %v385, %v396
        %v421 = vadd.f32 %v386, %v396
        %v422 = vadd.f32 %v387, %v396
        %v423 = vadd.f32 %v388, %v396
        %v424 = vadd.f32 %v389, %v396
        %v425 = vadd.f32 %v390, %v396
        %v426 = vadd.f32 %v391, %v396
        %v427 = vadd.f32 %v392, %v396
        %v428 = vadd.f32 %v393, %v396
        %v429 = vadd.f32 %v394, %v396
        %s430 = ssub.s32 %s290, 1
        %p431 = scmp.gt.s32.totalorder %s430, 0
        %s432 = scalar_select %p431, %s430, 0
        %s433 = smul.u32 %s432, 2
        %s434 = smul.addr %s433, 4
        %s435 = scalar_lea.vmem %s251, %s434 [#allocation3]
        %v436 = vld [vmem:[%s435] sm:$0xf]
        %v437 = vld [vmem:[%s435 + $0x4] sm:$0xf]
        %v438 = vunpack.c.l.bf16 %v436
        %v439 = vunpack.c.l.bf16 %v437
        %v440 = vmul.f32 %v438, %v361
        %v441 = vmul.f32 %v439, %v361
        %v442 = vadd.f32 %v440, %v396
        %v443 = vadd.f32 %v441, %v396
        %p444 = scmp.gt.s32.totalorder %s290, 0
        %s445 = scalar_select %p444, 1, 0
        %s446 = scvt.s32.f32 %s445
        %v447 = vstv %s446
        %v448 = vmul.f32 %v442, %v447
        %v449 = vmul.f32 %v443, %v447
        %s450 = sadd.s32 %s290, 16
        %p451 = scmp.lt.s32.totalorder %s450, 15
        %s452 = scalar_select %p451, %s450, 15
        %s453 = smul.u32 %s452, 2
        %s454 = smul.addr %s453, 4
        %s455 = scalar_lea.vmem %s251, %s454 [#allocation3]
        %v456 = vld [vmem:[%s455] sm:$0xf]
        %v457 = vld [vmem:[%s455 + $0x4] sm:$0xf]
        %v458 = vunpack.c.l.bf16 %v456
        %v459 = vunpack.c.l.bf16 %v457
        %v460 = vmul.f32 %v458, %v361
        %v461 = vmul.f32 %v459, %v361
        %v462 = vadd.f32 %v460, %v396
        %v463 = vadd.f32 %v461, %v396
        %p464 = scmp.lt.s32.totalorder %s450, 16
        %s465 = scalar_select %p464, 1, 0
        %s466 = scvt.s32.f32 %s465
        %v467 = vstv %s466
        %v468 = vmul.f32 %v462, %v467
        %v469 = vmul.f32 %v463, %v467
        %v470 = vlaneseq
        %v471 = vshrl.u32 %v470, 7
        %v472 = vadd.s32 %v471, 8
        %vm473 = vcmp.ge.s32.totalorder %v471, 1
        %vm474 = vcmp.ge.s32.totalorder %v472, 1
        %v475 = vsel %vm473, 1, 0
        %v476 = vsel %vm474, 1, 0
        %v477 = vcvt.s32.f32 %v475
        %v478 = vcvt.s32.f32 %v476
        %vm479 = vcmp.le.s32.totalorder %v471, 14
        %vm480 = vcmp.le.s32.totalorder %v472, 14
        %v481 = vsel %vm479, 1, 0
        %v482 = vsel %vm480, 1, 0
        %v483 = vcvt.s32.f32 %v481
        %v484 = vcvt.s32.f32 %v482
        %v485 = vrot.slane %v448, 7
        %v486 = vrot.slane %v398, 7
        %v487 = vrot.slane %v400, 7
        %v488 = vrot.slane %v402, 7
        %v489 = vrot.slane %v404, 7
        %v490 = vrot.slane %v406, 7
        %v491 = vrot.slane %v408, 7
        %v492 = vrot.slane %v410, 7
        %v493 = vrot.slane %v412, 7
        %v494 = vrot.slane %v414, 7
        %v495 = vrot.slane %v416, 7
        %v496 = vrot.slane %v418, 7
        %v497 = vrot.slane %v420, 7
        %v498 = vrot.slane %v422, 7
        %v499 = vrot.slane %v424, 7
        %v500 = vrot.slane %v426, 7
        %v501 = vrot.slane %v428, 7
        %v502 = vrot.slane %v468, 7
        %v503 = vrot.slane %v449, 7
        %v504 = vrot.slane %v399, 7
        %v505 = vrot.slane %v401, 7
        %v506 = vrot.slane %v403, 7
        %v507 = vrot.slane %v405, 7
        %v508 = vrot.slane %v407, 7
        %v509 = vrot.slane %v409, 7
        %v510 = vrot.slane %v411, 7
        %v511 = vrot.slane %v413, 7
        %v512 = vrot.slane %v415, 7
        %v513 = vrot.slane %v417, 7
        %v514 = vrot.slane %v419, 7
        %v515 = vrot.slane %v421, 7
        %v516 = vrot.slane %v423, 7
        %v517 = vrot.slane %v425, 7
        %v518 = vrot.slane %v427, 7
        %v519 = vrot.slane %v429, 7
        %v520 = vrot.slane %v469, 7
        %vm521 = vcmp.lt.s32.totalorder %v471, 1
        %v522 = vsel %vm521, %v485, %v503
        %v523 = vsel %vm521, %v486, %v504
        %v524 = vsel %vm521, %v487, %v505
        %v525 = vsel %vm521, %v488, %v506
        %v526 = vsel %vm521, %v489, %v507
        %v527 = vsel %vm521, %v490, %v508
        %v528 = vsel %vm521, %v491, %v509
        %v529 = vsel %vm521, %v492, %v510
        %v530 = vsel %vm521, %v493, %v511
        %v531 = vsel %vm521, %v494, %v512
        %v532 = vsel %vm521, %v495, %v513
        %v533 = vsel %vm521, %v496, %v514
        %v534 = vsel %vm521, %v497, %v515
        %v535 = vsel %vm521, %v498, %v516
        %v536 = vsel %vm521, %v499, %v517
        %v537 = vsel %vm521, %v500, %v518
        %v538 = vsel %vm521, %v501, %v519
        %v539 = vsel %vm521, %v502, %v520
        %v540 = vsel %vm521, %v503, %v485
        %v541 = vsel %vm521, %v504, %v486
        %v542 = vsel %vm521, %v505, %v487
        %v543 = vsel %vm521, %v506, %v488
        %v544 = vsel %vm521, %v507, %v489
        %v545 = vsel %vm521, %v508, %v490
        %v546 = vsel %vm521, %v509, %v491
        %v547 = vsel %vm521, %v510, %v492
        %v548 = vsel %vm521, %v511, %v493
        %v549 = vsel %vm521, %v512, %v494
        %v550 = vsel %vm521, %v513, %v495
        %v551 = vsel %vm521, %v514, %v496
        %v552 = vsel %vm521, %v515, %v497
        %v553 = vsel %vm521, %v516, %v498
        %v554 = vsel %vm521, %v517, %v499
        %v555 = vsel %vm521, %v518, %v500
        %v556 = vsel %vm521, %v519, %v501
        %v557 = vsel %vm521, %v520, %v502
        %v558 = vmul.f32 %v540, %v477
        %v559 = vmul.f32 %v522, %v478
        %v560 = vmul.f32 %v541, %v477
        %v561 = vmul.f32 %v523, %v478
        %v562 = vmul.f32 %v542, %v477
        %v563 = vmul.f32 %v524, %v478
        %v564 = vmul.f32 %v543, %v477
        %v565 = vmul.f32 %v525, %v478
        %v566 = vmul.f32 %v544, %v477
        %v567 = vmul.f32 %v526, %v478
        %v568 = vmul.f32 %v545, %v477
        %v569 = vmul.f32 %v527, %v478
        %v570 = vmul.f32 %v546, %v477
        %v571 = vmul.f32 %v528, %v478
        %v572 = vmul.f32 %v547, %v477
        %v573 = vmul.f32 %v529, %v478
        %v574 = vmul.f32 %v548, %v477
        %v575 = vmul.f32 %v530, %v478
        %v576 = vmul.f32 %v549, %v477
        %v577 = vmul.f32 %v531, %v478
        %v578 = vmul.f32 %v550, %v477
        %v579 = vmul.f32 %v532, %v478
        %v580 = vmul.f32 %v551, %v477
        %v581 = vmul.f32 %v533, %v478
        %v582 = vmul.f32 %v552, %v477
        %v583 = vmul.f32 %v534, %v478
        %v584 = vmul.f32 %v553, %v477
        %v585 = vmul.f32 %v535, %v478
        %v586 = vmul.f32 %v554, %v477
        %v587 = vmul.f32 %v536, %v478
        %v588 = vmul.f32 %v555, %v477
        %v589 = vmul.f32 %v537, %v478
        %v590 = vmul.f32 %v556, %v477
        %v591 = vmul.f32 %v538, %v478
        %v592 = vmul.f32 %v557, %v477
        %v593 = vmul.f32 %v539, %v478
        %v594 = vpack.c.bf16 %v558, %v558
        %v595 = vpack.c.bf16 %v559, %v559
        %v596 = vpack.c.bf16 %v560, %v560
        %v597 = vpack.c.bf16 %v561, %v561
        %v598 = vpack.c.bf16 %v562, %v562
        %v599 = vpack.c.bf16 %v563, %v563
        %v600 = vpack.c.bf16 %v564, %v564
        %v601 = vpack.c.bf16 %v565, %v565
        %v602 = vpack.c.bf16 %v566, %v566
        %v603 = vpack.c.bf16 %v567, %v567
        %v604 = vpack.c.bf16 %v568, %v568
        %v605 = vpack.c.bf16 %v569, %v569
        %v606 = vpack.c.bf16 %v570, %v570
        %v607 = vpack.c.bf16 %v571, %v571
        %v608 = vpack.c.bf16 %v572, %v572
        %v609 = vpack.c.bf16 %v573, %v573
        %v610 = vpack.c.bf16 %v574, %v574
        %v611 = vpack.c.bf16 %v575, %v575
        %v612 = vpack.c.bf16 %v576, %v576
        %v613 = vpack.c.bf16 %v577, %v577
        %v614 = vpack.c.bf16 %v578, %v578
        %v615 = vpack.c.bf16 %v579, %v579
        %v616 = vpack.c.bf16 %v580, %v580
        %v617 = vpack.c.bf16 %v581, %v581
        %v618 = vpack.c.bf16 %v582, %v582
        %v619 = vpack.c.bf16 %v583, %v583
        %v620 = vpack.c.bf16 %v584, %v584
        %v621 = vpack.c.bf16 %v585, %v585
        %v622 = vpack.c.bf16 %v586, %v586
        %v623 = vpack.c.bf16 %v587, %v587
        %v624 = vpack.c.bf16 %v588, %v588
        %v625 = vpack.c.bf16 %v589, %v589
        %v626 = vpack.c.bf16 %v590, %v590
        %v627 = vpack.c.bf16 %v591, %v591
        %v628 = vpack.c.bf16 %v592, %v592
        %v629 = vpack.c.bf16 %v593, %v593
        %630 = vst [vmem:[#allocation2] sm:$0xf] %v594
        %631 = vst [vmem:[#allocation2 + $0x4] sm:$0xf] %v595
        %632 = vst [vmem:[#allocation2 + $0x8] sm:$0xf] %v596
        %633 = vst [vmem:[#allocation2 + $0xc] sm:$0xf] %v597
        %634 = vst [vmem:[#allocation2 + $0x10] sm:$0xf] %v598
        %635 = vst [vmem:[#allocation2 + $0x14] sm:$0xf] %v599
        %636 = vst [vmem:[#allocation2 + $0x18] sm:$0xf] %v600
        %637 = vst [vmem:[#allocation2 + $0x1c] sm:$0xf] %v601
        %638 = vst [vmem:[#allocation2 + $0x20] sm:$0xf] %v602
        %639 = vst [vmem:[#allocation2 + $0x24] sm:$0xf] %v603
        %640 = vst [vmem:[#allocation2 + $0x28] sm:$0xf] %v604
        %641 = vst [vmem:[#allocation2 + $0x2c] sm:$0xf] %v605
        %642 = vst [vmem:[#allocation2 + $0x30] sm:$0xf] %v606
        %643 = vst [vmem:[#allocation2 + $0x34] sm:$0xf] %v607
        %644 = vst [vmem:[#allocation2 + $0x38] sm:$0xf] %v608
        %645 = vst [vmem:[#allocation2 + $0x3c] sm:$0xf] %v609
        %646 = vst [vmem:[#allocation2 + $0x40] sm:$0xf] %v610
        %647 = vst [vmem:[#allocation2 + $0x44] sm:$0xf] %v611
        %648 = vst [vmem:[#allocation2 + $0x48] sm:$0xf] %v612
        %649 = vst [vmem:[#allocation2 + $0x4c] sm:$0xf] %v613
        %650 = vst [vmem:[#allocation2 + $0x50] sm:$0xf] %v614
        %651 = vst [vmem:[#allocation2 + $0x54] sm:$0xf] %v615
        %652 = vst [vmem:[#allocation2 + $0x58] sm:$0xf] %v616
        %653 = vst [vmem:[#allocation2 + $0x5c] sm:$0xf] %v617
        %654 = vst [vmem:[#allocation2 + $0x60] sm:$0xf] %v618
        %655 = vst [vmem:[#allocation2 + $0x64] sm:$0xf] %v619
        %656 = vst [vmem:[#allocation2 + $0x68] sm:$0xf] %v620
        %657 = vst [vmem:[#allocation2 + $0x6c] sm:$0xf] %v621
        %658 = vst [vmem:[#allocation2 + $0x70] sm:$0xf] %v622
        %659 = vst [vmem:[#allocation2 + $0x74] sm:$0xf] %v623
        %660 = vst [vmem:[#allocation2 + $0x78] sm:$0xf] %v624
        %661 = vst [vmem:[#allocation2 + $0x7c] sm:$0xf] %v625
        %662 = vst [vmem:[#allocation2 + $0x80] sm:$0xf] %v626
        %663 = vst [vmem:[#allocation2 + $0x84] sm:$0xf] %v627
        %664 = vst [vmem:[#allocation2 + $0x88] sm:$0xf] %v628
        %665 = vst [vmem:[#allocation2 + $0x8c] sm:$0xf] %v629
        %v666 = vpack.c.bf16 %v448, %v448
        %v667 = vpack.c.bf16 %v449, %v449
        %v668 = vpack.c.bf16 %v398, %v398
        %v669 = vpack.c.bf16 %v399, %v399
        %v670 = vpack.c.bf16 %v400, %v400
        %v671 = vpack.c.bf16 %v401, %v401
        %v672 = vpack.c.bf16 %v402, %v402
        %v673 = vpack.c.bf16 %v403, %v403
        %v674 = vpack.c.bf16 %v404, %v404
        %v675 = vpack.c.bf16 %v405, %v405
        %v676 = vpack.c.bf16 %v406, %v406
        %v677 = vpack.c.bf16 %v407, %v407
        %v678 = vpack.c.bf16 %v408, %v408
        %v679 = vpack.c.bf16 %v409, %v409
        %v680 = vpack.c.bf16 %v410, %v410
        %v681 = vpack.c.bf16 %v411, %v411
        %v682 = vpack.c.bf16 %v412, %v412
        %v683 = vpack.c.bf16 %v413, %v413
        %v684 = vpack.c.bf16 %v414, %v414
        %v685 = vpack.c.bf16 %v415, %v415
        %v686 = vpack.c.bf16 %v416, %v416
        %v687 = vpack.c.bf16 %v417, %v417
        %v688 = vpack.c.bf16 %v418, %v418
        %v689 = vpack.c.bf16 %v419, %v419
        %v690 = vpack.c.bf16 %v420, %v420
        %v691 = vpack.c.bf16 %v421, %v421
        %v692 = vpack.c.bf16 %v422, %v422
        %v693 = vpack.c.bf16 %v423, %v423
        %v694 = vpack.c.bf16 %v424, %v424
        %v695 = vpack.c.bf16 %v425, %v425
        %v696 = vpack.c.bf16 %v426, %v426
        %v697 = vpack.c.bf16 %v427, %v427
        %v698 = vpack.c.bf16 %v428, %v428
        %v699 = vpack.c.bf16 %v429, %v429
        %v700 = vpack.c.bf16 %v468, %v468
        %v701 = vpack.c.bf16 %v469, %v469
        %s702 = scalar_lea.vmem [#allocation2], 144
        %703 = vst [vmem:[%s702] sm:$0xf] %v666
        %704 = vst [vmem:[%s702 + $0x4] sm:$0xf] %v667
        %705 = vst [vmem:[%s702 + $0x8] sm:$0xf] %v668
        %706 = vst [vmem:[%s702 + $0xc] sm:$0xf] %v669
        %707 = vst [vmem:[%s702 + $0x10] sm:$0xf] %v670
        %708 = vst [vmem:[%s702 + $0x14] sm:$0xf] %v671
        %709 = vst [vmem:[%s702 + $0x18] sm:$0xf] %v672
        %710 = vst [vmem:[%s702 + $0x1c] sm:$0xf] %v673
        %711 = vst [vmem:[%s702 + $0x20] sm:$0xf] %v674
        %712 = vst [vmem:[%s702 + $0x24] sm:$0xf] %v675
        %713 = vst [vmem:[%s702 + $0x28] sm:$0xf] %v676
        %714 = vst [vmem:[%s702 + $0x2c] sm:$0xf] %v677
        %715 = vst [vmem:[%s702 + $0x30] sm:$0xf] %v678
        %716 = vst [vmem:[%s702 + $0x34] sm:$0xf] %v679
        %717 = vst [vmem:[%s702 + $0x38] sm:$0xf] %v680
        %718 = vst [vmem:[%s702 + $0x3c] sm:$0xf] %v681
        %719 = vst [vmem:[%s702 + $0x40] sm:$0xf] %v682
        %720 = vst [vmem:[%s702 + $0x44] sm:$0xf] %v683
        %721 = vst [vmem:[%s702 + $0x48] sm:$0xf] %v684
        %722 = vst [vmem:[%s702 + $0x4c] sm:$0xf] %v685
        %723 = vst [vmem:[%s702 + $0x50] sm:$0xf] %v686
        %724 = vst [vmem:[%s702 + $0x54] sm:$0xf] %v687
        %725 = vst [vmem:[%s702 + $0x58] sm:$0xf] %v688
        %726 = vst [vmem:[%s702 + $0x5c] sm:$0xf] %v689
        %727 = vst [vmem:[%s702 + $0x60] sm:$0xf] %v690
        %728 = vst [vmem:[%s702 + $0x64] sm:$0xf] %v691
        %729 = vst [vmem:[%s702 + $0x68] sm:$0xf] %v692
        %730 = vst [vmem:[%s702 + $0x6c] sm:$0xf] %v693
        %731 = vst [vmem:[%s702 + $0x70] sm:$0xf] %v694
        %732 = vst [vmem:[%s702 + $0x74] sm:$0xf] %v695
        %733 = vst [vmem:[%s702 + $0x78] sm:$0xf] %v696
        %734 = vst [vmem:[%s702 + $0x7c] sm:$0xf] %v697
        %735 = vst [vmem:[%s702 + $0x80] sm:$0xf] %v698
        %736 = vst [vmem:[%s702 + $0x84] sm:$0xf] %v699
        %737 = vst [vmem:[%s702 + $0x88] sm:$0xf] %v700
        %738 = vst [vmem:[%s702 + $0x8c] sm:$0xf] %v701
        %v739 = vrot.slane %v448, 1
        %v740 = vrot.slane %v398, 1
        %v741 = vrot.slane %v400, 1
        %v742 = vrot.slane %v402, 1
        %v743 = vrot.slane %v404, 1
        %v744 = vrot.slane %v406, 1
        %v745 = vrot.slane %v408, 1
        %v746 = vrot.slane %v410, 1
        %v747 = vrot.slane %v412, 1
        %v748 = vrot.slane %v414, 1
        %v749 = vrot.slane %v416, 1
        %v750 = vrot.slane %v418, 1
        %v751 = vrot.slane %v420, 1
        %v752 = vrot.slane %v422, 1
        %v753 = vrot.slane %v424, 1
        %v754 = vrot.slane %v426, 1
        %v755 = vrot.slane %v428, 1
        %v756 = vrot.slane %v468, 1
        %v757 = vrot.slane %v449, 1
        %v758 = vrot.slane %v399, 1
        %v759 = vrot.slane %v401, 1
        %v760 = vrot.slane %v403, 1
        %v761 = vrot.slane %v405, 1
        %v762 = vrot.slane %v407, 1
        %v763 = vrot.slane %v409, 1
        %v764 = vrot.slane %v411, 1
        %v765 = vrot.slane %v413, 1
        %v766 = vrot.slane %v415, 1
        %v767 = vrot.slane %v417, 1
        %v768 = vrot.slane %v419, 1
        %v769 = vrot.slane %v421, 1
        %v770 = vrot.slane %v423, 1
        %v771 = vrot.slane %v425, 1
        %v772 = vrot.slane %v427, 1
        %v773 = vrot.slane %v429, 1
        %v774 = vrot.slane %v469, 1
        %vm775 = vcmp.lt.s32.totalorder %v471, 7
        %v776 = vsel %vm775, %v739, %v757
        %v777 = vsel %vm775, %v740, %v758
        %v778 = vsel %vm775, %v741, %v759
        %v779 = vsel %vm775, %v742, %v760
        %v780 = vsel %vm775, %v743, %v761
        %v781 = vsel %vm775, %v744, %v762
        %v782 = vsel %vm775, %v745, %v763
        %v783 = vsel %vm775, %v746, %v764
        %v784 = vsel %vm775, %v747, %v765
        %v785 = vsel %vm775, %v748, %v766
        %v786 = vsel %vm775, %v749, %v767
        %v787 = vsel %vm775, %v750, %v768
        %v788 = vsel %vm775, %v751, %v769
        %v789 = vsel %vm775, %v752, %v770
        %v790 = vsel %vm775, %v753, %v771
        %v791 = vsel %vm775, %v754, %v772
        %v792 = vsel %vm775, %v755, %v773
        %v793 = vsel %vm775, %v756, %v774
        %v794 = vsel %vm775, %v757, %v739
        %v795 = vsel %vm775, %v758, %v740
        %v796 = vsel %vm775, %v759, %v741
        %v797 = vsel %vm775, %v760, %v742
        %v798 = vsel %vm775, %v761, %v743
        %v799 = vsel %vm775, %v762, %v744
        %v800 = vsel %vm775, %v763, %v745
        %v801 = vsel %vm775, %v764, %v746
        %v802 = vsel %vm775, %v765, %v747
        %v803 = vsel %vm775, %v766, %v748
        %v804 = vsel %vm775, %v767, %v749
        %v805 = vsel %vm775, %v768, %v750
        %v806 = vsel %vm775, %v769, %v751
        %v807 = vsel %vm775, %v770, %v752
        %v808 = vsel %vm775, %v771, %v753
        %v809 = vsel %vm775, %v772, %v754
        %v810 = vsel %vm775, %v773, %v755
        %v811 = vsel %vm775, %v774, %v756
        %v812 = vmul.f32 %v776, %v483
        %v813 = vmul.f32 %v794, %v484
        %v814 = vmul.f32 %v777, %v483
        %v815 = vmul.f32 %v795, %v484
        %v816 = vmul.f32 %v778, %v483
        %v817 = vmul.f32 %v796, %v484
        %v818 = vmul.f32 %v779, %v483
        %v819 = vmul.f32 %v797, %v484
        %v820 = vmul.f32 %v780, %v483
        %v821 = vmul.f32 %v798, %v484
        %v822 = vmul.f32 %v781, %v483
        %v823 = vmul.f32 %v799, %v484
        %v824 = vmul.f32 %v782, %v483
        %v825 = vmul.f32 %v800, %v484
        %v826 = vmul.f32 %v783, %v483
        %v827 = vmul.f32 %v801, %v484
        %v828 = vmul.f32 %v784, %v483
        %v829 = vmul.f32 %v802, %v484
        %v830 = vmul.f32 %v785, %v483
        %v831 = vmul.f32 %v803, %v484
        %v832 = vmul.f32 %v786, %v483
        %v833 = vmul.f32 %v804, %v484
        %v834 = vmul.f32 %v787, %v483
        %v835 = vmul.f32 %v805, %v484
        %v836 = vmul.f32 %v788, %v483
        %v837 = vmul.f32 %v806, %v484
        %v838 = vmul.f32 %v789, %v483
        %v839 = vmul.f32 %v807, %v484
        %v840 = vmul.f32 %v790, %v483
        %v841 = vmul.f32 %v808, %v484
        %v842 = vmul.f32 %v791, %v483
        %v843 = vmul.f32 %v809, %v484
        %v844 = vmul.f32 %v792, %v483
        %v845 = vmul.f32 %v810, %v484
        %v846 = vmul.f32 %v793, %v483
        %v847 = vmul.f32 %v811, %v484
        %v848 = vpack.c.bf16 %v812, %v812
        %v849 = vpack.c.bf16 %v813, %v813
        %v850 = vpack.c.bf16 %v814, %v814
        %v851 = vpack.c.bf16 %v815, %v815
        %v852 = vpack.c.bf16 %v816, %v816
        %v853 = vpack.c.bf16 %v817, %v817
        %v854 = vpack.c.bf16 %v818, %v818
        %v855 = vpack.c.bf16 %v819, %v819
        %v856 = vpack.c.bf16 %v820, %v820
        %v857 = vpack.c.bf16 %v821, %v821
        %v858 = vpack.c.bf16 %v822, %v822
        %v859 = vpack.c.bf16 %v823, %v823
        %v860 = vpack.c.bf16 %v824, %v824
        %v861 = vpack.c.bf16 %v825, %v825
        %v862 = vpack.c.bf16 %v826, %v826
        %v863 = vpack.c.bf16 %v827, %v827
        %v864 = vpack.c.bf16 %v828, %v828
        %v865 = vpack.c.bf16 %v829, %v829
        %v866 = vpack.c.bf16 %v830, %v830
        %v867 = vpack.c.bf16 %v831, %v831
        %v868 = vpack.c.bf16 %v832, %v832
        %v869 = vpack.c.bf16 %v833, %v833
        %v870 = vpack.c.bf16 %v834, %v834
        %v871 = vpack.c.bf16 %v835, %v835
        %v872 = vpack.c.bf16 %v836, %v836
        %v873 = vpack.c.bf16 %v837, %v837
        %v874 = vpack.c.bf16 %v838, %v838
        %v875 = vpack.c.bf16 %v839, %v839
        %v876 = vpack.c.bf16 %v840, %v840
        %v877 = vpack.c.bf16 %v841, %v841
        %v878 = vpack.c.bf16 %v842, %v842
        %v879 = vpack.c.bf16 %v843, %v843
        %v880 = vpack.c.bf16 %v844, %v844
        %v881 = vpack.c.bf16 %v845, %v845
        %v882 = vpack.c.bf16 %v846, %v846
        %v883 = vpack.c.bf16 %v847, %v847
        %s884 = scalar_lea.vmem [#allocation2], 288
        %885 = vst [vmem:[%s884] sm:$0xf] %v848
        %886 = vst [vmem:[%s884 + $0x4] sm:$0xf] %v849
        %887 = vst [vmem:[%s884 + $0x8] sm:$0xf] %v850
        %888 = vst [vmem:[%s884 + $0xc] sm:$0xf] %v851
        %889 = vst [vmem:[%s884 + $0x10] sm:$0xf] %v852
        %890 = vst [vmem:[%s884 + $0x14] sm:$0xf] %v853
        %891 = vst [vmem:[%s884 + $0x18] sm:$0xf] %v854
        %892 = vst [vmem:[%s884 + $0x1c] sm:$0xf] %v855
        %893 = vst [vmem:[%s884 + $0x20] sm:$0xf] %v856
        %894 = vst [vmem:[%s884 + $0x24] sm:$0xf] %v857
        %895 = vst [vmem:[%s884 + $0x28] sm:$0xf] %v858
        %896 = vst [vmem:[%s884 + $0x2c] sm:$0xf] %v859
        %897 = vst [vmem:[%s884 + $0x30] sm:$0xf] %v860
        %898 = vst [vmem:[%s884 + $0x34] sm:$0xf] %v861
        %899 = vst [vmem:[%s884 + $0x38] sm:$0xf] %v862
        %900 = vst [vmem:[%s884 + $0x3c] sm:$0xf] %v863
        %901 = vst [vmem:[%s884 + $0x40] sm:$0xf] %v864
        %902 = vst [vmem:[%s884 + $0x44] sm:$0xf] %v865
        %903 = vst [vmem:[%s884 + $0x48] sm:$0xf] %v866
        %904 = vst [vmem:[%s884 + $0x4c] sm:$0xf] %v867
        %905 = vst [vmem:[%s884 + $0x50] sm:$0xf] %v868
        %906 = vst [vmem:[%s884 + $0x54] sm:$0xf] %v869
        %907 = vst [vmem:[%s884 + $0x58] sm:$0xf] %v870
        %908 = vst [vmem:[%s884 + $0x5c] sm:$0xf] %v871
        %909 = vst [vmem:[%s884 + $0x60] sm:$0xf] %v872
        %910 = vst [vmem:[%s884 + $0x64] sm:$0xf] %v873
        %911 = vst [vmem:[%s884 + $0x68] sm:$0xf] %v874
        %912 = vst [vmem:[%s884 + $0x6c] sm:$0xf] %v875
        %913 = vst [vmem:[%s884 + $0x70] sm:$0xf] %v876
        %914 = vst [vmem:[%s884 + $0x74] sm:$0xf] %v877
        %915 = vst [vmem:[%s884 + $0x78] sm:$0xf] %v878
        %916 = vst [vmem:[%s884 + $0x7c] sm:$0xf] %v879
        %917 = vst [vmem:[%s884 + $0x80] sm:$0xf] %v880
        %918 = vst [vmem:[%s884 + $0x84] sm:$0xf] %v881
        %919 = vst [vmem:[%s884 + $0x88] sm:$0xf] %v882
        %920 = vst [vmem:[%s884 + $0x8c] sm:$0xf] %v883
        %v921 = vld [vmem:[#allocation2] sm:$0xf]
        %v922 = vld [vmem:[#allocation2 + $0x4] sm:$0xf]
        %v923 = vld [vmem:[#allocation2 + $0x8] sm:$0xf]
        %v924 = vld [vmem:[#allocation2 + $0xc] sm:$0xf]
        %v925 = vld [vmem:[#allocation2 + $0x10] sm:$0xf]
        %v926 = vld [vmem:[#allocation2 + $0x14] sm:$0xf]
        %v927 = vld [vmem:[#allocation2 + $0x18] sm:$0xf]
        %v928 = vld [vmem:[#allocation2 + $0x1c] sm:$0xf]
        %v929 = vld [vmem:[#allocation2 + $0x20] sm:$0xf]
        %v930 = vld [vmem:[#allocation2 + $0x24] sm:$0xf]
        %v931 = vld [vmem:[#allocation2 + $0x28] sm:$0xf]
        %v932 = vld [vmem:[#allocation2 + $0x2c] sm:$0xf]
        %v933 = vld [vmem:[#allocation2 + $0x30] sm:$0xf]
        %v934 = vld [vmem:[#allocation2 + $0x34] sm:$0xf]
        %v935 = vld [vmem:[#allocation2 + $0x38] sm:$0xf]
        %v936 = vld [vmem:[#allocation2 + $0x3c] sm:$0xf]
        %v937 = vld [vmem:[#allocation2 + $0x40] sm:$0xf]
        %v938 = vld [vmem:[#allocation2 + $0x44] sm:$0xf]
        %v939 = vld [vmem:[#allocation2 + $0x48] sm:$0xf]
        %v940 = vld [vmem:[#allocation2 + $0x4c] sm:$0xf]
        %v941 = vld [vmem:[#allocation2 + $0x50] sm:$0xf]
        %v942 = vld [vmem:[#allocation2 + $0x54] sm:$0xf]
        %v943 = vld [vmem:[#allocation2 + $0x58] sm:$0xf]
        %v944 = vld [vmem:[#allocation2 + $0x5c] sm:$0xf]
        %v945 = vld [vmem:[#allocation2 + $0x60] sm:$0xf]
        %v946 = vld [vmem:[#allocation2 + $0x64] sm:$0xf]
        %v947 = vld [vmem:[#allocation2 + $0x68] sm:$0xf]
        %v948 = vld [vmem:[#allocation2 + $0x6c] sm:$0xf]
        %v949 = vld [vmem:[#allocation2 + $0x70] sm:$0xf]
        %v950 = vld [vmem:[#allocation2 + $0x74] sm:$0xf]
        %v951 = vld [vmem:[#allocation2 + $0x78] sm:$0xf]
        %v952 = vld [vmem:[#allocation2 + $0x7c] sm:$0xf]
        %v953 = vld [vmem:[#allocation6] sm:$0xf]
        %v954 = vld [vmem:[#allocation6 + $0x4] sm:$0xf]
        %v955 = vld [vmem:[#allocation6 + $0x8] sm:$0xf]
        %v956 = vld [vmem:[#allocation6 + $0xc] sm:$0xf]
        %v957 = vld [vmem:[#allocation6 + $0x10] sm:$0xf]
        %v958 = vld [vmem:[#allocation6 + $0x14] sm:$0xf]
        %v959 = vld [vmem:[#allocation6 + $0x18] sm:$0xf]
        %v960 = vld [vmem:[#allocation6 + $0x1c] sm:$0xf]
        %v961 = vld [vmem:[#allocation6 + $0x20] sm:$0xf]
        %v962 = vld [vmem:[#allocation6 + $0x24] sm:$0xf]
        %v963 = vld [vmem:[#allocation6 + $0x28] sm:$0xf]
        %v964 = vld [vmem:[#allocation6 + $0x2c] sm:$0xf]
        %v965 = vld [vmem:[#allocation6 + $0x30] sm:$0xf]
        %v966 = vld [vmem:[#allocation6 + $0x34] sm:$0xf]
        %v967 = vld [vmem:[#allocation6 + $0x38] sm:$0xf]
        %v968 = vld [vmem:[#allocation6 + $0x3c] sm:$0xf]
        %v969 = vld [vmem:[%s702] sm:$0xf]
        %v970 = vld [vmem:[%s702 + $0x4] sm:$0xf]
        %v971 = vld [vmem:[%s702 + $0x8] sm:$0xf]
        %v972 = vld [vmem:[%s702 + $0xc] sm:$0xf]
        %v973 = vld [vmem:[%s702 + $0x10] sm:$0xf]
        %v974 = vld [vmem:[%s702 + $0x14] sm:$0xf]
        %v975 = vld [vmem:[%s702 + $0x18] sm:$0xf]
        %v976 = vld [vmem:[%s702 + $0x1c] sm:$0xf]
        %v977 = vld [vmem:[%s702 + $0x20] sm:$0xf]
        %v978 = vld [vmem:[%s702 + $0x24] sm:$0xf]
        %v979 = vld [vmem:[%s702 + $0x28] sm:$0xf]
        %v980 = vld [vmem:[%s702 + $0x2c] sm:$0xf]
        %v981 = vld [vmem:[%s702 + $0x30] sm:$0xf]
        %v982 = vld [vmem:[%s702 + $0x34] sm:$0xf]
        %v983 = vld [vmem:[%s702 + $0x38] sm:$0xf]
        %v984 = vld [vmem:[%s702 + $0x3c] sm:$0xf]
        %v985 = vld [vmem:[%s702 + $0x40] sm:$0xf]
        %v986 = vld [vmem:[%s702 + $0x44] sm:$0xf]
        %v987 = vld [vmem:[%s702 + $0x48] sm:$0xf]
        %v988 = vld [vmem:[%s702 + $0x4c] sm:$0xf]
        %v989 = vld [vmem:[%s702 + $0x50] sm:$0xf]
        %v990 = vld [vmem:[%s702 + $0x54] sm:$0xf]
        %v991 = vld [vmem:[%s702 + $0x58] sm:$0xf]
        %v992 = vld [vmem:[%s702 + $0x5c] sm:$0xf]
        %v993 = vld [vmem:[%s702 + $0x60] sm:$0xf]
        %v994 = vld [vmem:[%s702 + $0x64] sm:$0xf]
        %v995 = vld [vmem:[%s702 + $0x68] sm:$0xf]
        %v996 = vld [vmem:[%s702 + $0x6c] sm:$0xf]
        %v997 = vld [vmem:[%s702 + $0x70] sm:$0xf]
        %v998 = vld [vmem:[%s702 + $0x74] sm:$0xf]
        %v999 = vld [vmem:[%s702 + $0x78] sm:$0xf]
        %v1000 = vld [vmem:[%s702 + $0x7c] sm:$0xf]
        %s1001 = scalar_lea.vmem [#allocation6], 64
        %v1002 = vld [vmem:[%s1001] sm:$0xf]
        %v1003 = vld [vmem:[%s1001 + $0x4] sm:$0xf]
        %v1004 = vld [vmem:[%s1001 + $0x8] sm:$0xf]
        %v1005 = vld [vmem:[%s1001 + $0xc] sm:$0xf]
        %v1006 = vld [vmem:[%s1001 + $0x10] sm:$0xf]
        %v1007 = vld [vmem:[%s1001 + $0x14] sm:$0xf]
        %v1008 = vld [vmem:[%s1001 + $0x18] sm:$0xf]
        %v1009 = vld [vmem:[%s1001 + $0x1c] sm:$0xf]
        %v1010 = vld [vmem:[%s1001 + $0x20] sm:$0xf]
        %v1011 = vld [vmem:[%s1001 + $0x24] sm:$0xf]
        %v1012 = vld [vmem:[%s1001 + $0x28] sm:$0xf]
        %v1013 = vld [vmem:[%s1001 + $0x2c] sm:$0xf]
        %v1014 = vld [vmem:[%s1001 + $0x30] sm:$0xf]
        %v1015 = vld [vmem:[%s1001 + $0x34] sm:$0xf]
        %v1016 = vld [vmem:[%s1001 + $0x38] sm:$0xf]
        %v1017 = vld [vmem:[%s1001 + $0x3c] sm:$0xf]
        %v1050 = vunpack.c.l.b16 %v969
        %v1051 = vunpack.c.l.b16 %v970
        %v1052 = vunpack.c.l.b16 %v971
        %v1053 = vunpack.c.l.b16 %v972
        %v1054 = vunpack.c.l.b16 %v973
        %v1055 = vunpack.c.l.b16 %v974
        %v1056 = vunpack.c.l.b16 %v975
        %v1057 = vunpack.c.l.b16 %v976
        %v1058 = vunpack.c.l.b16 %v977
        %v1059 = vunpack.c.l.b16 %v978
        %v1060 = vunpack.c.l.b16 %v979
        %v1061 = vunpack.c.l.b16 %v980
        %v1062 = vunpack.c.l.b16 %v981
        %v1063 = vunpack.c.l.b16 %v982
        %v1064 = vunpack.c.l.b16 %v983
        %v1065 = vunpack.c.l.b16 %v984
        %v1066 = vunpack.c.l.b16 %v985
        %v1067 = vunpack.c.l.b16 %v986
        %v1068 = vunpack.c.l.b16 %v987
        %v1069 = vunpack.c.l.b16 %v988
        %v1070 = vunpack.c.l.b16 %v989
        %v1071 = vunpack.c.l.b16 %v990
        %v1072 = vunpack.c.l.b16 %v991
        %v1073 = vunpack.c.l.b16 %v992
        %v1074 = vunpack.c.l.b16 %v993
        %v1075 = vunpack.c.l.b16 %v994
        %v1076 = vunpack.c.l.b16 %v995
        %v1077 = vunpack.c.l.b16 %v996
        %v1078 = vunpack.c.l.b16 %v997
        %v1079 = vunpack.c.l.b16 %v998
        %v1080 = vunpack.c.l.b16 %v999
        %v1081 = vunpack.c.l.b16 %v1000
        %v1082 = vpack.c.b16 %v1051, %v1050
        %v1083 = vpack.c.b16 %v1053, %v1052
        %v1084 = vpack.c.b16 %v1055, %v1054
        %v1085 = vpack.c.b16 %v1057, %v1056
        %v1086 = vpack.c.b16 %v1059, %v1058
        %v1087 = vpack.c.b16 %v1061, %v1060
        %v1088 = vpack.c.b16 %v1063, %v1062
        %v1089 = vpack.c.b16 %v1065, %v1064
        %v1090 = vpack.c.b16 %v1067, %v1066
        %v1091 = vpack.c.b16 %v1069, %v1068
        %v1092 = vpack.c.b16 %v1071, %v1070
        %v1093 = vpack.c.b16 %v1073, %v1072
        %v1094 = vpack.c.b16 %v1075, %v1074
        %v1095 = vpack.c.b16 %v1077, %v1076
        %v1096 = vpack.c.b16 %v1079, %v1078
        %v1097 = vpack.c.b16 %v1081, %v1080
        %v1130 = vunpack.c.l.b16 %v1002
        %v1131 = vunpack.c.l.b16 %v1003
        %v1132 = vunpack.c.l.b16 %v1004
        %v1133 = vunpack.c.l.b16 %v1005
        %v1134 = vunpack.c.l.b16 %v1006
        %v1135 = vunpack.c.l.b16 %v1007
        %v1136 = vunpack.c.l.b16 %v1008
        %v1137 = vunpack.c.l.b16 %v1009
        %v1138 = vunpack.c.l.b16 %v1010
        %v1139 = vunpack.c.l.b16 %v1011
        %v1140 = vunpack.c.l.b16 %v1012
        %v1141 = vunpack.c.l.b16 %v1013
        %v1142 = vunpack.c.l.b16 %v1014
        %v1143 = vunpack.c.l.b16 %v1015
        %v1144 = vunpack.c.l.b16 %v1016
        %v1145 = vunpack.c.l.b16 %v1017
        %v1146 = vpack.c.b16 %v1131, %v1130
        %v1147 = vpack.c.b16 %v1133, %v1132
        %v1148 = vpack.c.b16 %v1135, %v1134
        %v1149 = vpack.c.b16 %v1137, %v1136
        %v1150 = vpack.c.b16 %v1139, %v1138
        %v1151 = vpack.c.b16 %v1141, %v1140
        %v1152 = vpack.c.b16 %v1143, %v1142
        %v1153 = vpack.c.b16 %v1145, %v1144
        %1162 = vmatpush.bf16.msra.mxu0 %v1153
        %1163 = vmatpush.bf16.msra.mxu0 %v1152
        %1164 = vmatpush.bf16.msra.mxu0 %v1151
        %1165 = vmatpush.bf16.msra.mxu0 %v1150
        %1166 = vmatpush.bf16.msra.mxu0 %v1149
        %1167 = vmatpush.bf16.msra.mxu0 %v1148
        %1168 = vmatpush.bf16.msra.mxu0 %v1147
        %1169 = vmatpush.bf16.msra.mxu0 %v1146
        %1170 = vmatmul.bf16.gmra.mxu0 %v1082
        %v1171 = vpop.f32.mrf.mxu0
        %v1172 = vadd.f32 0.0, %v1171
        %v1173 = vpop.f32.mrf.mxu0
        %v1174 = vadd.f32 0.0, %v1173
        %1175 = vmatmul.bf16.gmra.mxu0 %v1083
        %v1176 = vpop.f32.mrf.mxu0
        %v1177 = vadd.f32 0.0, %v1176
        %v1178 = vpop.f32.mrf.mxu0
        %v1179 = vadd.f32 0.0, %v1178
        %1180 = vmatmul.bf16.gmra.mxu0 %v1084
        %v1181 = vpop.f32.mrf.mxu0
        %v1182 = vadd.f32 0.0, %v1181
        %v1183 = vpop.f32.mrf.mxu0
        %v1184 = vadd.f32 0.0, %v1183
        %1185 = vmatmul.bf16.gmra.mxu0 %v1085
        %v1186 = vpop.f32.mrf.mxu0
        %v1187 = vadd.f32 0.0, %v1186
        %v1188 = vpop.f32.mrf.mxu0
        %v1189 = vadd.f32 0.0, %v1188
        %1190 = vmatmul.bf16.gmra.mxu0 %v1086
        %v1191 = vpop.f32.mrf.mxu0
        %v1192 = vadd.f32 0.0, %v1191
        %v1193 = vpop.f32.mrf.mxu0
        %v1194 = vadd.f32 0.0, %v1193
        %1195 = vmatmul.bf16.gmra.mxu0 %v1087
        %v1196 = vpop.f32.mrf.mxu0
        %v1197 = vadd.f32 0.0, %v1196
        %v1198 = vpop.f32.mrf.mxu0
        %v1199 = vadd.f32 0.0, %v1198
        %1200 = vmatmul.bf16.gmra.mxu0 %v1088
        %v1201 = vpop.f32.mrf.mxu0
        %v1202 = vadd.f32 0.0, %v1201
        %v1203 = vpop.f32.mrf.mxu0
        %v1204 = vadd.f32 0.0, %v1203
        %1205 = vmatmul.bf16.gmra.mxu0 %v1089
        %v1206 = vpop.f32.mrf.mxu0
        %v1207 = vadd.f32 0.0, %v1206
        %v1208 = vpop.f32.mrf.mxu0
        %v1209 = vadd.f32 0.0, %v1208
        %1210 = vmatmul.bf16.gmra.mxu0 %v1090
        %v1211 = vpop.f32.mrf.mxu0
        %v1212 = vadd.f32 0.0, %v1211
        %v1213 = vpop.f32.mrf.mxu0
        %v1214 = vadd.f32 0.0, %v1213
        %1215 = vmatmul.bf16.gmra.mxu0 %v1091
        %v1216 = vpop.f32.mrf.mxu0
        %v1217 = vadd.f32 0.0, %v1216
        %v1218 = vpop.f32.mrf.mxu0
        %v1219 = vadd.f32 0.0, %v1218
        %1220 = vmatmul.bf16.gmra.mxu0 %v1092
        %v1221 = vpop.f32.mrf.mxu0
        %v1222 = vadd.f32 0.0, %v1221
        %v1223 = vpop.f32.mrf.mxu0
        %v1224 = vadd.f32 0.0, %v1223
        %1225 = vmatmul.bf16.gmra.mxu0 %v1093
        %v1226 = vpop.f32.mrf.mxu0
        %v1227 = vadd.f32 0.0, %v1226
        %v1228 = vpop.f32.mrf.mxu0
        %v1229 = vadd.f32 0.0, %v1228
        %1230 = vmatmul.bf16.gmra.mxu0 %v1094
        %v1231 = vpop.f32.mrf.mxu0
        %v1232 = vadd.f32 0.0, %v1231
        %v1233 = vpop.f32.mrf.mxu0
        %v1234 = vadd.f32 0.0, %v1233
        %1235 = vmatmul.bf16.gmra.mxu0 %v1095
        %v1236 = vpop.f32.mrf.mxu0
        %v1237 = vadd.f32 0.0, %v1236
        %v1238 = vpop.f32.mrf.mxu0
        %v1239 = vadd.f32 0.0, %v1238
        %1240 = vmatmul.bf16.gmra.mxu0 %v1096
        %v1241 = vpop.f32.mrf.mxu0
        %v1242 = vadd.f32 0.0, %v1241
        %v1243 = vpop.f32.mrf.mxu0
        %v1244 = vadd.f32 0.0, %v1243
        %1245 = vmatmul.bf16.gmra.mxu0 %v1097
        %v1246 = vpop.f32.mrf.mxu0
        %v1247 = vadd.f32 0.0, %v1246
        %v1248 = vpop.f32.mrf.mxu0
        %v1249 = vadd.f32 0.0, %v1248
        %1250 = vdwg.mxu0
        %v1283 = vunpack.c.l.b16 %v921
        %v1284 = vunpack.c.l.b16 %v922
        %v1285 = vunpack.c.l.b16 %v923
        %v1286 = vunpack.c.l.b16 %v924
        %v1287 = vunpack.c.l.b16 %v925
        %v1288 = vunpack.c.l.b16 %v926
        %v1289 = vunpack.c.l.b16 %v927
        %v1290 = vunpack.c.l.b16 %v928
        %v1291 = vunpack.c.l.b16 %v929
        %v1292 = vunpack.c.l.b16 %v930
        %v1293 = vunpack.c.l.b16 %v931
        %v1294 = vunpack.c.l.b16 %v932
        %v1295 = vunpack.c.l.b16 %v933
        %v1296 = vunpack.c.l.b16 %v934
        %v1297 = vunpack.c.l.b16 %v935
        %v1298 = vunpack.c.l.b16 %v936
        %v1299 = vunpack.c.l.b16 %v937
        %v1300 = vunpack.c.l.b16 %v938
        %v1301 = vunpack.c.l.b16 %v939
        %v1302 = vunpack.c.l.b16 %v940
        %v1303 = vunpack.c.l.b16 %v941
        %v1304 = vunpack.c.l.b16 %v942
        %v1305 = vunpack.c.l.b16 %v943
        %v1306 = vunpack.c.l.b16 %v944
        %v1307 = vunpack.c.l.b16 %v945
        %v1308 = vunpack.c.l.b16 %v946
        %v1309 = vunpack.c.l.b16 %v947
        %v1310 = vunpack.c.l.b16 %v948
        %v1311 = vunpack.c.l.b16 %v949
        %v1312 = vunpack.c.l.b16 %v950
        %v1313 = vunpack.c.l.b16 %v951
        %v1314 = vunpack.c.l.b16 %v952
        %v1315 = vpack.c.b16 %v1284, %v1283
        %v1316 = vpack.c.b16 %v1286, %v1285
        %v1317 = vpack.c.b16 %v1288, %v1287
        %v1318 = vpack.c.b16 %v1290, %v1289
        %v1319 = vpack.c.b16 %v1292, %v1291
        %v1320 = vpack.c.b16 %v1294, %v1293
        %v1321 = vpack.c.b16 %v1296, %v1295
        %v1322 = vpack.c.b16 %v1298, %v1297
        %v1323 = vpack.c.b16 %v1300, %v1299
        %v1324 = vpack.c.b16 %v1302, %v1301
        %v1325 = vpack.c.b16 %v1304, %v1303
        %v1326 = vpack.c.b16 %v1306, %v1305
        %v1327 = vpack.c.b16 %v1308, %v1307
        %v1328 = vpack.c.b16 %v1310, %v1309
        %v1329 = vpack.c.b16 %v1312, %v1311
        %v1330 = vpack.c.b16 %v1314, %v1313
        %v1363 = vunpack.c.l.b16 %v953
        %v1364 = vunpack.c.l.b16 %v954
        %v1365 = vunpack.c.l.b16 %v955
        %v1366 = vunpack.c.l.b16 %v956
        %v1367 = vunpack.c.l.b16 %v957
        %v1368 = vunpack.c.l.b16 %v958
        %v1369 = vunpack.c.l.b16 %v959
        %v1370 = vunpack.c.l.b16 %v960
        %v1371 = vunpack.c.l.b16 %v961
        %v1372 = vunpack.c.l.b16 %v962
        %v1373 = vunpack.c.l.b16 %v963
        %v1374 = vunpack.c.l.b16 %v964
        %v1375 = vunpack.c.l.b16 %v965
        %v1376 = vunpack.c.l.b16 %v966
        %v1377 = vunpack.c.l.b16 %v967
        %v1378 = vunpack.c.l.b16 %v968
        %v1379 = vpack.c.b16 %v1364, %v1363
        %v1380 = vpack.c.b16 %v1366, %v1365
        %v1381 = vpack.c.b16 %v1368, %v1367
        %v1382 = vpack.c.b16 %v1370, %v1369
        %v1383 = vpack.c.b16 %v1372, %v1371
        %v1384 = vpack.c.b16 %v1374, %v1373
        %v1385 = vpack.c.b16 %v1376, %v1375
        %v1386 = vpack.c.b16 %v1378, %v1377
        %1395 = vmatpush.bf16.msra.mxu0 %v1386
        %1396 = vmatpush.bf16.msra.mxu0 %v1385
        %1397 = vmatpush.bf16.msra.mxu0 %v1384
        %1398 = vmatpush.bf16.msra.mxu0 %v1383
        %1399 = vmatpush.bf16.msra.mxu0 %v1382
        %1400 = vmatpush.bf16.msra.mxu0 %v1381
        %1401 = vmatpush.bf16.msra.mxu0 %v1380
        %1402 = vmatpush.bf16.msra.mxu0 %v1379
        %1403 = vmatmul.bf16.gmra.mxu0 %v1315
        %v1404 = vpop.f32.mrf.mxu0
        %v1405 = vadd.f32 %v1172, %v1404
        %v1406 = vpop.f32.mrf.mxu0
        %v1407 = vadd.f32 %v1174, %v1406
        %1408 = vmatmul.bf16.gmra.mxu0 %v1316
        %v1409 = vpop.f32.mrf.mxu0
        %v1410 = vadd.f32 %v1177, %v1409
        %v1411 = vpop.f32.mrf.mxu0
        %v1412 = vadd.f32 %v1179, %v1411
        %1413 = vmatmul.bf16.gmra.mxu0 %v1317
        %v1414 = vpop.f32.mrf.mxu0
        %v1415 = vadd.f32 %v1182, %v1414
        %v1416 = vpop.f32.mrf.mxu0
        %v1417 = vadd.f32 %v1184, %v1416
        %1418 = vmatmul.bf16.gmra.mxu0 %v1318
        %v1419 = vpop.f32.mrf.mxu0
        %v1420 = vadd.f32 %v1187, %v1419
        %v1421 = vpop.f32.mrf.mxu0
        %v1422 = vadd.f32 %v1189, %v1421
        %1423 = vmatmul.bf16.gmra.mxu0 %v1319
        %v1424 = vpop.f32.mrf.mxu0
        %v1425 = vadd.f32 %v1192, %v1424
        %v1426 = vpop.f32.mrf.mxu0
        %v1427 = vadd.f32 %v1194, %v1426
        %1428 = vmatmul.bf16.gmra.mxu0 %v1320
        %v1429 = vpop.f32.mrf.mxu0
        %v1430 = vadd.f32 %v1197, %v1429
        %v1431 = vpop.f32.mrf.mxu0
        %v1432 = vadd.f32 %v1199, %v1431
        %1433 = vmatmul.bf16.gmra.mxu0 %v1321
        %v1434 = vpop.f32.mrf.mxu0
        %v1435 = vadd.f32 %v1202, %v1434
        %v1436 = vpop.f32.mrf.mxu0
        %v1437 = vadd.f32 %v1204, %v1436
        %1438 = vmatmul.bf16.gmra.mxu0 %v1322
        %v1439 = vpop.f32.mrf.mxu0
        %v1440 = vadd.f32 %v1207, %v1439
        %v1441 = vpop.f32.mrf.mxu0
        %v1442 = vadd.f32 %v1209, %v1441
        %1443 = vmatmul.bf16.gmra.mxu0 %v1323
        %v1444 = vpop.f32.mrf.mxu0
        %v1445 = vadd.f32 %v1212, %v1444
        %v1446 = vpop.f32.mrf.mxu0
        %v1447 = vadd.f32 %v1214, %v1446
        %1448 = vmatmul.bf16.gmra.mxu0 %v1324
        %v1449 = vpop.f32.mrf.mxu0
        %v1450 = vadd.f32 %v1217, %v1449
        %v1451 = vpop.f32.mrf.mxu0
        %v1452 = vadd.f32 %v1219, %v1451
        %1453 = vmatmul.bf16.gmra.mxu0 %v1325
        %v1454 = vpop.f32.mrf.mxu0
        %v1455 = vadd.f32 %v1222, %v1454
        %v1456 = vpop.f32.mrf.mxu0
        %v1457 = vadd.f32 %v1224, %v1456
        %1458 = vmatmul.bf16.gmra.mxu0 %v1326
        %v1459 = vpop.f32.mrf.mxu0
        %v1460 = vadd.f32 %v1227, %v1459
        %v1461 = vpop.f32.mrf.mxu0
        %v1462 = vadd.f32 %v1229, %v1461
        %1463 = vmatmul.bf16.gmra.mxu0 %v1327
        %v1464 = vpop.f32.mrf.mxu0
        %v1465 = vadd.f32 %v1232, %v1464
        %v1466 = vpop.f32.mrf.mxu0
        %v1467 = vadd.f32 %v1234, %v1466
        %1468 = vmatmul.bf16.gmra.mxu0 %v1328
        %v1469 = vpop.f32.mrf.mxu0
        %v1470 = vadd.f32 %v1237, %v1469
        %v1471 = vpop.f32.mrf.mxu0
        %v1472 = vadd.f32 %v1239, %v1471
        %1473 = vmatmul.bf16.gmra.mxu0 %v1329
        %v1474 = vpop.f32.mrf.mxu0
        %v1475 = vadd.f32 %v1242, %v1474
        %v1476 = vpop.f32.mrf.mxu0
        %v1477 = vadd.f32 %v1244, %v1476
        %1478 = vmatmul.bf16.gmra.mxu0 %v1330
        %v1479 = vpop.f32.mrf.mxu0
        %v1480 = vadd.f32 %v1247, %v1479
        %v1481 = vpop.f32.mrf.mxu0
        %v1482 = vadd.f32 %v1249, %v1481
        %1483 = vdwg.mxu0
        %v1484 = vld [vmem:[%s884] sm:$0xf]
        %v1485 = vld [vmem:[%s884 + $0x4] sm:$0xf]
        %v1486 = vld [vmem:[%s884 + $0x8] sm:$0xf]
        %v1487 = vld [vmem:[%s884 + $0xc] sm:$0xf]
        %v1488 = vld [vmem:[%s884 + $0x10] sm:$0xf]
        %v1489 = vld [vmem:[%s884 + $0x14] sm:$0xf]
        %v1490 = vld [vmem:[%s884 + $0x18] sm:$0xf]
        %v1491 = vld [vmem:[%s884 + $0x1c] sm:$0xf]
        %v1492 = vld [vmem:[%s884 + $0x20] sm:$0xf]
        %v1493 = vld [vmem:[%s884 + $0x24] sm:$0xf]
        %v1494 = vld [vmem:[%s884 + $0x28] sm:$0xf]
        %v1495 = vld [vmem:[%s884 + $0x2c] sm:$0xf]
        %v1496 = vld [vmem:[%s884 + $0x30] sm:$0xf]
        %v1497 = vld [vmem:[%s884 + $0x34] sm:$0xf]
        %v1498 = vld [vmem:[%s884 + $0x38] sm:$0xf]
        %v1499 = vld [vmem:[%s884 + $0x3c] sm:$0xf]
        %v1500 = vld [vmem:[%s884 + $0x40] sm:$0xf]
        %v1501 = vld [vmem:[%s884 + $0x44] sm:$0xf]
        %v1502 = vld [vmem:[%s884 + $0x48] sm:$0xf]
        %v1503 = vld [vmem:[%s884 + $0x4c] sm:$0xf]
        %v1504 = vld [vmem:[%s884 + $0x50] sm:$0xf]
        %v1505 = vld [vmem:[%s884 + $0x54] sm:$0xf]
        %v1506 = vld [vmem:[%s884 + $0x58] sm:$0xf]
        %v1507 = vld [vmem:[%s884 + $0x5c] sm:$0xf]
        %v1508 = vld [vmem:[%s884 + $0x60] sm:$0xf]
        %v1509 = vld [vmem:[%s884 + $0x64] sm:$0xf]
        %v1510 = vld [vmem:[%s884 + $0x68] sm:$0xf]
        %v1511 = vld [vmem:[%s884 + $0x6c] sm:$0xf]
        %v1512 = vld [vmem:[%s884 + $0x70] sm:$0xf]
        %v1513 = vld [vmem:[%s884 + $0x74] sm:$0xf]
        %v1514 = vld [vmem:[%s884 + $0x78] sm:$0xf]
        %v1515 = vld [vmem:[%s884 + $0x7c] sm:$0xf]
        %s1516 = scalar_lea.vmem [#allocation6], 128
        %v1517 = vld [vmem:[%s1516] sm:$0xf]
        %v1518 = vld [vmem:[%s1516 + $0x4] sm:$0xf]
        %v1519 = vld [vmem:[%s1516 + $0x8] sm:$0xf]
        %v1520 = vld [vmem:[%s1516 + $0xc] sm:$0xf]
        %v1521 = vld [vmem:[%s1516 + $0x10] sm:$0xf]
        %v1522 = vld [vmem:[%s1516 + $0x14] sm:$0xf]
        %v1523 = vld [vmem:[%s1516 + $0x18] sm:$0xf]
        %v1524 = vld [vmem:[%s1516 + $0x1c] sm:$0xf]
        %v1525 = vld [vmem:[%s1516 + $0x20] sm:$0xf]
        %v1526 = vld [vmem:[%s1516 + $0x24] sm:$0xf]
        %v1527 = vld [vmem:[%s1516 + $0x28] sm:$0xf]
        %v1528 = vld [vmem:[%s1516 + $0x2c] sm:$0xf]
        %v1529 = vld [vmem:[%s1516 + $0x30] sm:$0xf]
        %v1530 = vld [vmem:[%s1516 + $0x34] sm:$0xf]
        %v1531 = vld [vmem:[%s1516 + $0x38] sm:$0xf]
        %v1532 = vld [vmem:[%s1516 + $0x3c] sm:$0xf]
        %v1565 = vunpack.c.l.b16 %v1484
        %v1566 = vunpack.c.l.b16 %v1485
        %v1567 = vunpack.c.l.b16 %v1486
        %v1568 = vunpack.c.l.b16 %v1487
        %v1569 = vunpack.c.l.b16 %v1488
        %v1570 = vunpack.c.l.b16 %v1489
        %v1571 = vunpack.c.l.b16 %v1490
        %v1572 = vunpack.c.l.b16 %v1491
        %v1573 = vunpack.c.l.b16 %v1492
        %v1574 = vunpack.c.l.b16 %v1493
        %v1575 = vunpack.c.l.b16 %v1494
        %v1576 = vunpack.c.l.b16 %v1495
        %v1577 = vunpack.c.l.b16 %v1496
        %v1578 = vunpack.c.l.b16 %v1497
        %v1579 = vunpack.c.l.b16 %v1498
        %v1580 = vunpack.c.l.b16 %v1499
        %v1581 = vunpack.c.l.b16 %v1500
        %v1582 = vunpack.c.l.b16 %v1501
        %v1583 = vunpack.c.l.b16 %v1502
        %v1584 = vunpack.c.l.b16 %v1503
        %v1585 = vunpack.c.l.b16 %v1504
        %v1586 = vunpack.c.l.b16 %v1505
        %v1587 = vunpack.c.l.b16 %v1506
        %v1588 = vunpack.c.l.b16 %v1507
        %v1589 = vunpack.c.l.b16 %v1508
        %v1590 = vunpack.c.l.b16 %v1509
        %v1591 = vunpack.c.l.b16 %v1510
        %v1592 = vunpack.c.l.b16 %v1511
        %v1593 = vunpack.c.l.b16 %v1512
        %v1594 = vunpack.c.l.b16 %v1513
        %v1595 = vunpack.c.l.b16 %v1514
        %v1596 = vunpack.c.l.b16 %v1515
        %v1597 = vpack.c.b16 %v1566, %v1565
        %v1598 = vpack.c.b16 %v1568, %v1567
        %v1599 = vpack.c.b16 %v1570, %v1569
        %v1600 = vpack.c.b16 %v1572, %v1571
        %v1601 = vpack.c.b16 %v1574, %v1573
        %v1602 = vpack.c.b16 %v1576, %v1575
        %v1603 = vpack.c.b16 %v1578, %v1577
        %v1604 = vpack.c.b16 %v1580, %v1579
        %v1605 = vpack.c.b16 %v1582, %v1581
        %v1606 = vpack.c.b16 %v1584, %v1583
        %v1607 = vpack.c.b16 %v1586, %v1585
        %v1608 = vpack.c.b16 %v1588, %v1587
        %v1609 = vpack.c.b16 %v1590, %v1589
        %v1610 = vpack.c.b16 %v1592, %v1591
        %v1611 = vpack.c.b16 %v1594, %v1593
        %v1612 = vpack.c.b16 %v1596, %v1595
        %v1645 = vunpack.c.l.b16 %v1517
        %v1646 = vunpack.c.l.b16 %v1518
        %v1647 = vunpack.c.l.b16 %v1519
        %v1648 = vunpack.c.l.b16 %v1520
        %v1649 = vunpack.c.l.b16 %v1521
        %v1650 = vunpack.c.l.b16 %v1522
        %v1651 = vunpack.c.l.b16 %v1523
        %v1652 = vunpack.c.l.b16 %v1524
        %v1653 = vunpack.c.l.b16 %v1525
        %v1654 = vunpack.c.l.b16 %v1526
        %v1655 = vunpack.c.l.b16 %v1527
        %v1656 = vunpack.c.l.b16 %v1528
        %v1657 = vunpack.c.l.b16 %v1529
        %v1658 = vunpack.c.l.b16 %v1530
        %v1659 = vunpack.c.l.b16 %v1531
        %v1660 = vunpack.c.l.b16 %v1532
        %v1661 = vpack.c.b16 %v1646, %v1645
        %v1662 = vpack.c.b16 %v1648, %v1647
        %v1663 = vpack.c.b16 %v1650, %v1649
        %v1664 = vpack.c.b16 %v1652, %v1651
        %v1665 = vpack.c.b16 %v1654, %v1653
        %v1666 = vpack.c.b16 %v1656, %v1655
        %v1667 = vpack.c.b16 %v1658, %v1657
        %v1668 = vpack.c.b16 %v1660, %v1659
        %1677 = vmatpush.bf16.msra.mxu0 %v1668
        %1678 = vmatpush.bf16.msra.mxu0 %v1667
        %1679 = vmatpush.bf16.msra.mxu0 %v1666
        %1680 = vmatpush.bf16.msra.mxu0 %v1665
        %1681 = vmatpush.bf16.msra.mxu0 %v1664
        %1682 = vmatpush.bf16.msra.mxu0 %v1663
        %1683 = vmatpush.bf16.msra.mxu0 %v1662
        %1684 = vmatpush.bf16.msra.mxu0 %v1661
        %1685 = vmatmul.bf16.gmra.mxu0 %v1597
        %v1686 = vpop.f32.mrf.mxu0
        %v1687 = vadd.f32 0.0, %v1686
        %v1688 = vpop.f32.mrf.mxu0
        %v1689 = vadd.f32 0.0, %v1688
        %1690 = vmatmul.bf16.gmra.mxu0 %v1598
        %v1691 = vpop.f32.mrf.mxu0
        %v1692 = vadd.f32 0.0, %v1691
        %v1693 = vpop.f32.mrf.mxu0
        %v1694 = vadd.f32 0.0, %v1693
        %1695 = vmatmul.bf16.gmra.mxu0 %v1599
        %v1696 = vpop.f32.mrf.mxu0
        %v1697 = vadd.f32 0.0, %v1696
        %v1698 = vpop.f32.mrf.mxu0
        %v1699 = vadd.f32 0.0, %v1698
        %1700 = vmatmul.bf16.gmra.mxu0 %v1600
        %v1701 = vpop.f32.mrf.mxu0
        %v1702 = vadd.f32 0.0, %v1701
        %v1703 = vpop.f32.mrf.mxu0
        %v1704 = vadd.f32 0.0, %v1703
        %1705 = vmatmul.bf16.gmra.mxu0 %v1601
        %v1706 = vpop.f32.mrf.mxu0
        %v1707 = vadd.f32 0.0, %v1706
        %v1708 = vpop.f32.mrf.mxu0
        %v1709 = vadd.f32 0.0, %v1708
        %1710 = vmatmul.bf16.gmra.mxu0 %v1602
        %v1711 = vpop.f32.mrf.mxu0
        %v1712 = vadd.f32 0.0, %v1711
        %v1713 = vpop.f32.mrf.mxu0
        %v1714 = vadd.f32 0.0, %v1713
        %1715 = vmatmul.bf16.gmra.mxu0 %v1603
        %v1716 = vpop.f32.mrf.mxu0
        %v1717 = vadd.f32 0.0, %v1716
        %v1718 = vpop.f32.mrf.mxu0
        %v1719 = vadd.f32 0.0, %v1718
        %1720 = vmatmul.bf16.gmra.mxu0 %v1604
        %v1721 = vpop.f32.mrf.mxu0
        %v1722 = vadd.f32 0.0, %v1721
        %v1723 = vpop.f32.mrf.mxu0
        %v1724 = vadd.f32 0.0, %v1723
        %1725 = vmatmul.bf16.gmra.mxu0 %v1605
        %v1726 = vpop.f32.mrf.mxu0
        %v1727 = vadd.f32 0.0, %v1726
        %v1728 = vpop.f32.mrf.mxu0
        %v1729 = vadd.f32 0.0, %v1728
        %1730 = vmatmul.bf16.gmra.mxu0 %v1606
        %v1731 = vpop.f32.mrf.mxu0
        %v1732 = vadd.f32 0.0, %v1731
        %v1733 = vpop.f32.mrf.mxu0
        %v1734 = vadd.f32 0.0, %v1733
        %1735 = vmatmul.bf16.gmra.mxu0 %v1607
        %v1736 = vpop.f32.mrf.mxu0
        %v1737 = vadd.f32 0.0, %v1736
        %v1738 = vpop.f32.mrf.mxu0
        %v1739 = vadd.f32 0.0, %v1738
        %1740 = vmatmul.bf16.gmra.mxu0 %v1608
        %v1741 = vpop.f32.mrf.mxu0
        %v1742 = vadd.f32 0.0, %v1741
        %v1743 = vpop.f32.mrf.mxu0
        %v1744 = vadd.f32 0.0, %v1743
        %1745 = vmatmul.bf16.gmra.mxu0 %v1609
        %v1746 = vpop.f32.mrf.mxu0
        %v1747 = vadd.f32 0.0, %v1746
        %v1748 = vpop.f32.mrf.mxu0
        %v1749 = vadd.f32 0.0, %v1748
        %1750 = vmatmul.bf16.gmra.mxu0 %v1610
        %v1751 = vpop.f32.mrf.mxu0
        %v1752 = vadd.f32 0.0, %v1751
        %v1753 = vpop.f32.mrf.mxu0
        %v1754 = vadd.f32 0.0, %v1753
        %1755 = vmatmul.bf16.gmra.mxu0 %v1611
        %v1756 = vpop.f32.mrf.mxu0
        %v1757 = vadd.f32 0.0, %v1756
        %v1758 = vpop.f32.mrf.mxu0
        %v1759 = vadd.f32 0.0, %v1758
        %1760 = vmatmul.bf16.gmra.mxu0 %v1612
        %v1761 = vpop.f32.mrf.mxu0
        %v1762 = vadd.f32 0.0, %v1761
        %v1763 = vpop.f32.mrf.mxu0
        %v1764 = vadd.f32 0.0, %v1763
        %1765 = vdwg.mxu0
        %v1766 = vadd.f32 %v1405, %v1687
        %v1767 = vadd.f32 %v1407, %v1689
        %v1768 = vadd.f32 %v1410, %v1692
        %v1769 = vadd.f32 %v1412, %v1694
        %v1770 = vadd.f32 %v1415, %v1697
        %v1771 = vadd.f32 %v1417, %v1699
        %v1772 = vadd.f32 %v1420, %v1702
        %v1773 = vadd.f32 %v1422, %v1704
        %v1774 = vadd.f32 %v1425, %v1707
        %v1775 = vadd.f32 %v1427, %v1709
        %v1776 = vadd.f32 %v1430, %v1712
        %v1777 = vadd.f32 %v1432, %v1714
        %v1778 = vadd.f32 %v1435, %v1717
        %v1779 = vadd.f32 %v1437, %v1719
        %v1780 = vadd.f32 %v1440, %v1722
        %v1781 = vadd.f32 %v1442, %v1724
        %v1782 = vadd.f32 %v1445, %v1727
        %v1783 = vadd.f32 %v1447, %v1729
        %v1784 = vadd.f32 %v1450, %v1732
        %v1785 = vadd.f32 %v1452, %v1734
        %v1786 = vadd.f32 %v1455, %v1737
        %v1787 = vadd.f32 %v1457, %v1739
        %v1788 = vadd.f32 %v1460, %v1742
        %v1789 = vadd.f32 %v1462, %v1744
        %v1790 = vadd.f32 %v1465, %v1747
        %v1791 = vadd.f32 %v1467, %v1749
        %v1792 = vadd.f32 %v1470, %v1752
        %v1793 = vadd.f32 %v1472, %v1754
        %v1794 = vadd.f32 %v1475, %v1757
        %v1795 = vadd.f32 %v1477, %v1759
        %v1796 = vadd.f32 %v1480, %v1762
        %v1797 = vadd.f32 %v1482, %v1764
        %s1798 = scalar_lea.vmem [#allocation2], 8
        %v1799 = vld [vmem:[%s1798] sm:$0xf]
        %v1800 = vld [vmem:[%s1798 + $0x4] sm:$0xf]
        %v1801 = vld [vmem:[%s1798 + $0x8] sm:$0xf]
        %v1802 = vld [vmem:[%s1798 + $0xc] sm:$0xf]
        %v1803 = vld [vmem:[%s1798 + $0x10] sm:$0xf]
        %v1804 = vld [vmem:[%s1798 + $0x14] sm:$0xf]
        %v1805 = vld [vmem:[%s1798 + $0x18] sm:$0xf]
        %v1806 = vld [vmem:[%s1798 + $0x1c] sm:$0xf]
        %v1807 = vld [vmem:[%s1798 + $0x20] sm:$0xf]
        %v1808 = vld [vmem:[%s1798 + $0x24] sm:$0xf]
        %v1809 = vld [vmem:[%s1798 + $0x28] sm:$0xf]
        %v1810 = vld [vmem:[%s1798 + $0x2c] sm:$0xf]
        %v1811 = vld [vmem:[%s1798 + $0x30] sm:$0xf]
        %v1812 = vld [vmem:[%s1798 + $0x34] sm:$0xf]
        %v1813 = vld [vmem:[%s1798 + $0x38] sm:$0xf]
        %v1814 = vld [vmem:[%s1798 + $0x3c] sm:$0xf]
        %v1815 = vld [vmem:[%s1798 + $0x40] sm:$0xf]
        %v1816 = vld [vmem:[%s1798 + $0x44] sm:$0xf]
        %v1817 = vld [vmem:[%s1798 + $0x48] sm:$0xf]
        %v1818 = vld [vmem:[%s1798 + $0x4c] sm:$0xf]
        %v1819 = vld [vmem:[%s1798 + $0x50] sm:$0xf]
        %v1820 = vld [vmem:[%s1798 + $0x54] sm:$0xf]
        %v1821 = vld [vmem:[%s1798 + $0x58] sm:$0xf]
        %v1822 = vld [vmem:[%s1798 + $0x5c] sm:$0xf]
        %v1823 = vld [vmem:[%s1798 + $0x60] sm:$0xf]
        %v1824 = vld [vmem:[%s1798 + $0x64] sm:$0xf]
        %v1825 = vld [vmem:[%s1798 + $0x68] sm:$0xf]
        %v1826 = vld [vmem:[%s1798 + $0x6c] sm:$0xf]
        %v1827 = vld [vmem:[%s1798 + $0x70] sm:$0xf]
        %v1828 = vld [vmem:[%s1798 + $0x74] sm:$0xf]
        %v1829 = vld [vmem:[%s1798 + $0x78] sm:$0xf]
        %v1830 = vld [vmem:[%s1798 + $0x7c] sm:$0xf]
        %s1831 = scalar_lea.vmem [#allocation6], 192
        %v1832 = vld [vmem:[%s1831] sm:$0xf]
        %v1833 = vld [vmem:[%s1831 + $0x4] sm:$0xf]
        %v1834 = vld [vmem:[%s1831 + $0x8] sm:$0xf]
        %v1835 = vld [vmem:[%s1831 + $0xc] sm:$0xf]
        %v1836 = vld [vmem:[%s1831 + $0x10] sm:$0xf]
        %v1837 = vld [vmem:[%s1831 + $0x14] sm:$0xf]
        %v1838 = vld [vmem:[%s1831 + $0x18] sm:$0xf]
        %v1839 = vld [vmem:[%s1831 + $0x1c] sm:$0xf]
        %v1840 = vld [vmem:[%s1831 + $0x20] sm:$0xf]
        %v1841 = vld [vmem:[%s1831 + $0x24] sm:$0xf]
        %v1842 = vld [vmem:[%s1831 + $0x28] sm:$0xf]
        %v1843 = vld [vmem:[%s1831 + $0x2c] sm:$0xf]
        %v1844 = vld [vmem:[%s1831 + $0x30] sm:$0xf]
        %v1845 = vld [vmem:[%s1831 + $0x34] sm:$0xf]
        %v1846 = vld [vmem:[%s1831 + $0x38] sm:$0xf]
        %v1847 = vld [vmem:[%s1831 + $0x3c] sm:$0xf]
        %v1880 = vunpack.c.l.b16 %v1799
        %v1881 = vunpack.c.l.b16 %v1800
        %v1882 = vunpack.c.l.b16 %v1801
        %v1883 = vunpack.c.l.b16 %v1802
        %v1884 = vunpack.c.l.b16 %v1803
        %v1885 = vunpack.c.l.b16 %v1804
        %v1886 = vunpack.c.l.b16 %v1805
        %v1887 = vunpack.c.l.b16 %v1806
        %v1888 = vunpack.c.l.b16 %v1807
        %v1889 = vunpack.c.l.b16 %v1808
        %v1890 = vunpack.c.l.b16 %v1809
        %v1891 = vunpack.c.l.b16 %v1810
        %v1892 = vunpack.c.l.b16 %v1811
        %v1893 = vunpack.c.l.b16 %v1812
        %v1894 = vunpack.c.l.b16 %v1813
        %v1895 = vunpack.c.l.b16 %v1814
        %v1896 = vunpack.c.l.b16 %v1815
        %v1897 = vunpack.c.l.b16 %v1816
        %v1898 = vunpack.c.l.b16 %v1817
        %v1899 = vunpack.c.l.b16 %v1818
        %v1900 = vunpack.c.l.b16 %v1819
        %v1901 = vunpack.c.l.b16 %v1820
        %v1902 = vunpack.c.l.b16 %v1821
        %v1903 = vunpack.c.l.b16 %v1822
        %v1904 = vunpack.c.l.b16 %v1823
        %v1905 = vunpack.c.l.b16 %v1824
        %v1906 = vunpack.c.l.b16 %v1825
        %v1907 = vunpack.c.l.b16 %v1826
        %v1908 = vunpack.c.l.b16 %v1827
        %v1909 = vunpack.c.l.b16 %v1828
        %v1910 = vunpack.c.l.b16 %v1829
        %v1911 = vunpack.c.l.b16 %v1830
        %v1912 = vpack.c.b16 %v1881, %v1880
        %v1913 = vpack.c.b16 %v1883, %v1882
        %v1914 = vpack.c.b16 %v1885, %v1884
        %v1915 = vpack.c.b16 %v1887, %v1886
        %v1916 = vpack.c.b16 %v1889, %v1888
        %v1917 = vpack.c.b16 %v1891, %v1890
        %v1918 = vpack.c.b16 %v1893, %v1892
        %v1919 = vpack.c.b16 %v1895, %v1894
        %v1920 = vpack.c.b16 %v1897, %v1896
        %v1921 = vpack.c.b16 %v1899, %v1898
        %v1922 = vpack.c.b16 %v1901, %v1900
        %v1923 = vpack.c.b16 %v1903, %v1902
        %v1924 = vpack.c.b16 %v1905, %v1904
        %v1925 = vpack.c.b16 %v1907, %v1906
        %v1926 = vpack.c.b16 %v1909, %v1908
        %v1927 = vpack.c.b16 %v1911, %v1910
        %v1960 = vunpack.c.l.b16 %v1832
        %v1961 = vunpack.c.l.b16 %v1833
        %v1962 = vunpack.c.l.b16 %v1834
        %v1963 = vunpack.c.l.b16 %v1835
        %v1964 = vunpack.c.l.b16 %v1836
        %v1965 = vunpack.c.l.b16 %v1837
        %v1966 = vunpack.c.l.b16 %v1838
        %v1967 = vunpack.c.l.b16 %v1839
        %v1968 = vunpack.c.l.b16 %v1840
        %v1969 = vunpack.c.l.b16 %v1841
        %v1970 = vunpack.c.l.b16 %v1842
        %v1971 = vunpack.c.l.b16 %v1843
        %v1972 = vunpack.c.l.b16 %v1844
        %v1973 = vunpack.c.l.b16 %v1845
        %v1974 = vunpack.c.l.b16 %v1846
        %v1975 = vunpack.c.l.b16 %v1847
        %v1976 = vpack.c.b16 %v1961, %v1960
        %v1977 = vpack.c.b16 %v1963, %v1962
        %v1978 = vpack.c.b16 %v1965, %v1964
        %v1979 = vpack.c.b16 %v1967, %v1966
        %v1980 = vpack.c.b16 %v1969, %v1968
        %v1981 = vpack.c.b16 %v1971, %v1970
        %v1982 = vpack.c.b16 %v1973, %v1972
        %v1983 = vpack.c.b16 %v1975, %v1974
        %1992 = vmatpush.bf16.msra.mxu0 %v1983
        %1993 = vmatpush.bf16.msra.mxu0 %v1982
        %1994 = vmatpush.bf16.msra.mxu0 %v1981
        %1995 = vmatpush.bf16.msra.mxu0 %v1980
        %1996 = vmatpush.bf16.msra.mxu0 %v1979
        %1997 = vmatpush.bf16.msra.mxu0 %v1978
        %1998 = vmatpush.bf16.msra.mxu0 %v1977
        %1999 = vmatpush.bf16.msra.mxu0 %v1976
        %2000 = vmatmul.bf16.gmra.mxu0 %v1912
        %v2001 = vpop.f32.mrf.mxu0
        %v2002 = vadd.f32 0.0, %v2001
        %v2003 = vpop.f32.mrf.mxu0
        %v2004 = vadd.f32 0.0, %v2003
        %2005 = vmatmul.bf16.gmra.mxu0 %v1913
        %v2006 = vpop.f32.mrf.mxu0
        %v2007 = vadd.f32 0.0, %v2006
        %v2008 = vpop.f32.mrf.mxu0
        %v2009 = vadd.f32 0.0, %v2008
        %2010 = vmatmul.bf16.gmra.mxu0 %v1914
        %v2011 = vpop.f32.mrf.mxu0
        %v2012 = vadd.f32 0.0, %v2011
        %v2013 = vpop.f32.mrf.mxu0
        %v2014 = vadd.f32 0.0, %v2013
        %2015 = vmatmul.bf16.gmra.mxu0 %v1915
        %v2016 = vpop.f32.mrf.mxu0
        %v2017 = vadd.f32 0.0, %v2016
        %v2018 = vpop.f32.mrf.mxu0
        %v2019 = vadd.f32 0.0, %v2018
        %2020 = vmatmul.bf16.gmra.mxu0 %v1916
        %v2021 = vpop.f32.mrf.mxu0
        %v2022 = vadd.f32 0.0, %v2021
        %v2023 = vpop.f32.mrf.mxu0
        %v2024 = vadd.f32 0.0, %v2023
        %2025 = vmatmul.bf16.gmra.mxu0 %v1917
        %v2026 = vpop.f32.mrf.mxu0
        %v2027 = vadd.f32 0.0, %v2026
        %v2028 = vpop.f32.mrf.mxu0
        %v2029 = vadd.f32 0.0, %v2028
        %2030 = vmatmul.bf16.gmra.mxu0 %v1918
        %v2031 = vpop.f32.mrf.mxu0
        %v2032 = vadd.f32 0.0, %v2031
        %v2033 = vpop.f32.mrf.mxu0
        %v2034 = vadd.f32 0.0, %v2033
        %2035 = vmatmul.bf16.gmra.mxu0 %v1919
        %v2036 = vpop.f32.mrf.mxu0
        %v2037 = vadd.f32 0.0, %v2036
        %v2038 = vpop.f32.mrf.mxu0
        %v2039 = vadd.f32 0.0, %v2038
        %2040 = vmatmul.bf16.gmra.mxu0 %v1920
        %v2041 = vpop.f32.mrf.mxu0
        %v2042 = vadd.f32 0.0, %v2041
        %v2043 = vpop.f32.mrf.mxu0
        %v2044 = vadd.f32 0.0, %v2043
        %2045 = vmatmul.bf16.gmra.mxu0 %v1921
        %v2046 = vpop.f32.mrf.mxu0
        %v2047 = vadd.f32 0.0, %v2046
        %v2048 = vpop.f32.mrf.mxu0
        %v2049 = vadd.f32 0.0, %v2048
        %2050 = vmatmul.bf16.gmra.mxu0 %v1922
        %v2051 = vpop.f32.mrf.mxu0
        %v2052 = vadd.f32 0.0, %v2051
        %v2053 = vpop.f32.mrf.mxu0
        %v2054 = vadd.f32 0.0, %v2053
        %2055 = vmatmul.bf16.gmra.mxu0 %v1923
        %v2056 = vpop.f32.mrf.mxu0
        %v2057 = vadd.f32 0.0, %v2056
        %v2058 = vpop.f32.mrf.mxu0
        %v2059 = vadd.f32 0.0, %v2058
        %2060 = vmatmul.bf16.gmra.mxu0 %v1924
        %v2061 = vpop.f32.mrf.mxu0
        %v2062 = vadd.f32 0.0, %v2061
        %v2063 = vpop.f32.mrf.mxu0
        %v2064 = vadd.f32 0.0, %v2063
        %2065 = vmatmul.bf16.gmra.mxu0 %v1925
        %v2066 = vpop.f32.mrf.mxu0
        %v2067 = vadd.f32 0.0, %v2066
        %v2068 = vpop.f32.mrf.mxu0
        %v2069 = vadd.f32 0.0, %v2068
        %2070 = vmatmul.bf16.gmra.mxu0 %v1926
        %v2071 = vpop.f32.mrf.mxu0
        %v2072 = vadd.f32 0.0, %v2071
        %v2073 = vpop.f32.mrf.mxu0
        %v2074 = vadd.f32 0.0, %v2073
        %2075 = vmatmul.bf16.gmra.mxu0 %v1927
        %v2076 = vpop.f32.mrf.mxu0
        %v2077 = vadd.f32 0.0, %v2076
        %v2078 = vpop.f32.mrf.mxu0
        %v2079 = vadd.f32 0.0, %v2078
        %2080 = vdwg.mxu0
        %v2081 = vadd.f32 %v1766, %v2002
        %v2082 = vadd.f32 %v1767, %v2004
        %v2083 = vadd.f32 %v1768, %v2007
        %v2084 = vadd.f32 %v1769, %v2009
        %v2085 = vadd.f32 %v1770, %v2012
        %v2086 = vadd.f32 %v1771, %v2014
        %v2087 = vadd.f32 %v1772, %v2017
        %v2088 = vadd.f32 %v1773, %v2019
        %v2089 = vadd.f32 %v1774, %v2022
        %v2090 = vadd.f32 %v1775, %v2024
        %v2091 = vadd.f32 %v1776, %v2027
        %v2092 = vadd.f32 %v1777, %v2029
        %v2093 = vadd.f32 %v1778, %v2032
        %v2094 = vadd.f32 %v1779, %v2034
        %v2095 = vadd.f32 %v1780, %v2037
        %v2096 = vadd.f32 %v1781, %v2039
        %v2097 = vadd.f32 %v1782, %v2042
        %v2098 = vadd.f32 %v1783, %v2044
        %v2099 = vadd.f32 %v1784, %v2047
        %v2100 = vadd.f32 %v1785, %v2049
        %v2101 = vadd.f32 %v1786, %v2052
        %v2102 = vadd.f32 %v1787, %v2054
        %v2103 = vadd.f32 %v1788, %v2057
        %v2104 = vadd.f32 %v1789, %v2059
        %v2105 = vadd.f32 %v1790, %v2062
        %v2106 = vadd.f32 %v1791, %v2064
        %v2107 = vadd.f32 %v1792, %v2067
        %v2108 = vadd.f32 %v1793, %v2069
        %v2109 = vadd.f32 %v1794, %v2072
        %v2110 = vadd.f32 %v1795, %v2074
        %v2111 = vadd.f32 %v1796, %v2077
        %v2112 = vadd.f32 %v1797, %v2079
        %s2113 = scalar_lea.vmem [#allocation2], 152
        %v2114 = vld [vmem:[%s2113] sm:$0xf]
        %v2115 = vld [vmem:[%s2113 + $0x4] sm:$0xf]
        %v2116 = vld [vmem:[%s2113 + $0x8] sm:$0xf]
        %v2117 = vld [vmem:[%s2113 + $0xc] sm:$0xf]
        %v2118 = vld [vmem:[%s2113 + $0x10] sm:$0xf]
        %v2119 = vld [vmem:[%s2113 + $0x14] sm:$0xf]
        %v2120 = vld [vmem:[%s2113 + $0x18] sm:$0xf]
        %v2121 = vld [vmem:[%s2113 + $0x1c] sm:$0xf]
        %v2122 = vld [vmem:[%s2113 + $0x20] sm:$0xf]
        %v2123 = vld [vmem:[%s2113 + $0x24] sm:$0xf]
        %v2124 = vld [vmem:[%s2113 + $0x28] sm:$0xf]
        %v2125 = vld [vmem:[%s2113 + $0x2c] sm:$0xf]
        %v2126 = vld [vmem:[%s2113 + $0x30] sm:$0xf]
        %v2127 = vld [vmem:[%s2113 + $0x34] sm:$0xf]
        %v2128 = vld [vmem:[%s2113 + $0x38] sm:$0xf]
        %v2129 = vld [vmem:[%s2113 + $0x3c] sm:$0xf]
        %v2130 = vld [vmem:[%s2113 + $0x40] sm:$0xf]
        %v2131 = vld [vmem:[%s2113 + $0x44] sm:$0xf]
        %v2132 = vld [vmem:[%s2113 + $0x48] sm:$0xf]
        %v2133 = vld [vmem:[%s2113 + $0x4c] sm:$0xf]
        %v2134 = vld [vmem:[%s2113 + $0x50] sm:$0xf]
        %v2135 = vld [vmem:[%s2113 + $0x54] sm:$0xf]
        %v2136 = vld [vmem:[%s2113 + $0x58] sm:$0xf]
        %v2137 = vld [vmem:[%s2113 + $0x5c] sm:$0xf]
        %v2138 = vld [vmem:[%s2113 + $0x60] sm:$0xf]
        %v2139 = vld [vmem:[%s2113 + $0x64] sm:$0xf]
        %v2140 = vld [vmem:[%s2113 + $0x68] sm:$0xf]
        %v2141 = vld [vmem:[%s2113 + $0x6c] sm:$0xf]
        %v2142 = vld [vmem:[%s2113 + $0x70] sm:$0xf]
        %v2143 = vld [vmem:[%s2113 + $0x74] sm:$0xf]
        %v2144 = vld [vmem:[%s2113 + $0x78] sm:$0xf]
        %v2145 = vld [vmem:[%s2113 + $0x7c] sm:$0xf]
        %s2146 = scalar_lea.vmem [#allocation6], 256
        %v2147 = vld [vmem:[%s2146] sm:$0xf]
        %v2148 = vld [vmem:[%s2146 + $0x4] sm:$0xf]
        %v2149 = vld [vmem:[%s2146 + $0x8] sm:$0xf]
        %v2150 = vld [vmem:[%s2146 + $0xc] sm:$0xf]
        %v2151 = vld [vmem:[%s2146 + $0x10] sm:$0xf]
        %v2152 = vld [vmem:[%s2146 + $0x14] sm:$0xf]
        %v2153 = vld [vmem:[%s2146 + $0x18] sm:$0xf]
        %v2154 = vld [vmem:[%s2146 + $0x1c] sm:$0xf]
        %v2155 = vld [vmem:[%s2146 + $0x20] sm:$0xf]
        %v2156 = vld [vmem:[%s2146 + $0x24] sm:$0xf]
        %v2157 = vld [vmem:[%s2146 + $0x28] sm:$0xf]
        %v2158 = vld [vmem:[%s2146 + $0x2c] sm:$0xf]
        %v2159 = vld [vmem:[%s2146 + $0x30] sm:$0xf]
        %v2160 = vld [vmem:[%s2146 + $0x34] sm:$0xf]
        %v2161 = vld [vmem:[%s2146 + $0x38] sm:$0xf]
        %v2162 = vld [vmem:[%s2146 + $0x3c] sm:$0xf]
        %v2195 = vunpack.c.l.b16 %v2114
        %v2196 = vunpack.c.l.b16 %v2115
        %v2197 = vunpack.c.l.b16 %v2116
        %v2198 = vunpack.c.l.b16 %v2117
        %v2199 = vunpack.c.l.b16 %v2118
        %v2200 = vunpack.c.l.b16 %v2119
        %v2201 = vunpack.c.l.b16 %v2120
        %v2202 = vunpack.c.l.b16 %v2121
        %v2203 = vunpack.c.l.b16 %v2122
        %v2204 = vunpack.c.l.b16 %v2123
        %v2205 = vunpack.c.l.b16 %v2124
        %v2206 = vunpack.c.l.b16 %v2125
        %v2207 = vunpack.c.l.b16 %v2126
        %v2208 = vunpack.c.l.b16 %v2127
        %v2209 = vunpack.c.l.b16 %v2128
        %v2210 = vunpack.c.l.b16 %v2129
        %v2211 = vunpack.c.l.b16 %v2130
        %v2212 = vunpack.c.l.b16 %v2131
        %v2213 = vunpack.c.l.b16 %v2132
        %v2214 = vunpack.c.l.b16 %v2133
        %v2215 = vunpack.c.l.b16 %v2134
        %v2216 = vunpack.c.l.b16 %v2135
        %v2217 = vunpack.c.l.b16 %v2136
        %v2218 = vunpack.c.l.b16 %v2137
        %v2219 = vunpack.c.l.b16 %v2138
        %v2220 = vunpack.c.l.b16 %v2139
        %v2221 = vunpack.c.l.b16 %v2140
        %v2222 = vunpack.c.l.b16 %v2141
        %v2223 = vunpack.c.l.b16 %v2142
        %v2224 = vunpack.c.l.b16 %v2143
        %v2225 = vunpack.c.l.b16 %v2144
        %v2226 = vunpack.c.l.b16 %v2145
        %v2227 = vpack.c.b16 %v2196, %v2195
        %v2228 = vpack.c.b16 %v2198, %v2197
        %v2229 = vpack.c.b16 %v2200, %v2199
        %v2230 = vpack.c.b16 %v2202, %v2201
        %v2231 = vpack.c.b16 %v2204, %v2203
        %v2232 = vpack.c.b16 %v2206, %v2205
        %v2233 = vpack.c.b16 %v2208, %v2207
        %v2234 = vpack.c.b16 %v2210, %v2209
        %v2235 = vpack.c.b16 %v2212, %v2211
        %v2236 = vpack.c.b16 %v2214, %v2213
        %v2237 = vpack.c.b16 %v2216, %v2215
        %v2238 = vpack.c.b16 %v2218, %v2217
        %v2239 = vpack.c.b16 %v2220, %v2219
        %v2240 = vpack.c.b16 %v2222, %v2221
        %v2241 = vpack.c.b16 %v2224, %v2223
        %v2242 = vpack.c.b16 %v2226, %v2225
        %v2275 = vunpack.c.l.b16 %v2147
        %v2276 = vunpack.c.l.b16 %v2148
        %v2277 = vunpack.c.l.b16 %v2149
        %v2278 = vunpack.c.l.b16 %v2150
        %v2279 = vunpack.c.l.b16 %v2151
        %v2280 = vunpack.c.l.b16 %v2152
        %v2281 = vunpack.c.l.b16 %v2153
        %v2282 = vunpack.c.l.b16 %v2154
        %v2283 = vunpack.c.l.b16 %v2155
        %v2284 = vunpack.c.l.b16 %v2156
        %v2285 = vunpack.c.l.b16 %v2157
        %v2286 = vunpack.c.l.b16 %v2158
        %v2287 = vunpack.c.l.b16 %v2159
        %v2288 = vunpack.c.l.b16 %v2160
        %v2289 = vunpack.c.l.b16 %v2161
        %v2290 = vunpack.c.l.b16 %v2162
        %v2291 = vpack.c.b16 %v2276, %v2275
        %v2292 = vpack.c.b16 %v2278, %v2277
        %v2293 = vpack.c.b16 %v2280, %v2279
        %v2294 = vpack.c.b16 %v2282, %v2281
        %v2295 = vpack.c.b16 %v2284, %v2283
        %v2296 = vpack.c.b16 %v2286, %v2285
        %v2297 = vpack.c.b16 %v2288, %v2287
        %v2298 = vpack.c.b16 %v2290, %v2289
        %2307 = vmatpush.bf16.msra.mxu0 %v2298
        %2308 = vmatpush.bf16.msra.mxu0 %v2297
        %2309 = vmatpush.bf16.msra.mxu0 %v2296
        %2310 = vmatpush.bf16.msra.mxu0 %v2295
        %2311 = vmatpush.bf16.msra.mxu0 %v2294
        %2312 = vmatpush.bf16.msra.mxu0 %v2293
        %2313 = vmatpush.bf16.msra.mxu0 %v2292
        %2314 = vmatpush.bf16.msra.mxu0 %v2291
        %2315 = vmatmul.bf16.gmra.mxu0 %v2227
        %v2316 = vpop.f32.mrf.mxu0
        %v2317 = vadd.f32 0.0, %v2316
        %v2318 = vpop.f32.mrf.mxu0
        %v2319 = vadd.f32 0.0, %v2318
        %2320 = vmatmul.bf16.gmra.mxu0 %v2228
        %v2321 = vpop.f32.mrf.mxu0
        %v2322 = vadd.f32 0.0, %v2321
        %v2323 = vpop.f32.mrf.mxu0
        %v2324 = vadd.f32 0.0, %v2323
        %2325 = vmatmul.bf16.gmra.mxu0 %v2229
        %v2326 = vpop.f32.mrf.mxu0
        %v2327 = vadd.f32 0.0, %v2326
        %v2328 = vpop.f32.mrf.mxu0
        %v2329 = vadd.f32 0.0, %v2328
        %2330 = vmatmul.bf16.gmra.mxu0 %v2230
        %v2331 = vpop.f32.mrf.mxu0
        %v2332 = vadd.f32 0.0, %v2331
        %v2333 = vpop.f32.mrf.mxu0
        %v2334 = vadd.f32 0.0, %v2333
        %2335 = vmatmul.bf16.gmra.mxu0 %v2231
        %v2336 = vpop.f32.mrf.mxu0
        %v2337 = vadd.f32 0.0, %v2336
        %v2338 = vpop.f32.mrf.mxu0
        %v2339 = vadd.f32 0.0, %v2338
        %2340 = vmatmul.bf16.gmra.mxu0 %v2232
        %v2341 = vpop.f32.mrf.mxu0
        %v2342 = vadd.f32 0.0, %v2341
        %v2343 = vpop.f32.mrf.mxu0
        %v2344 = vadd.f32 0.0, %v2343
        %2345 = vmatmul.bf16.gmra.mxu0 %v2233
        %v2346 = vpop.f32.mrf.mxu0
        %v2347 = vadd.f32 0.0, %v2346
        %v2348 = vpop.f32.mrf.mxu0
        %v2349 = vadd.f32 0.0, %v2348
        %2350 = vmatmul.bf16.gmra.mxu0 %v2234
        %v2351 = vpop.f32.mrf.mxu0
        %v2352 = vadd.f32 0.0, %v2351
        %v2353 = vpop.f32.mrf.mxu0
        %v2354 = vadd.f32 0.0, %v2353
        %2355 = vmatmul.bf16.gmra.mxu0 %v2235
        %v2356 = vpop.f32.mrf.mxu0
        %v2357 = vadd.f32 0.0, %v2356
        %v2358 = vpop.f32.mrf.mxu0
        %v2359 = vadd.f32 0.0, %v2358
        %2360 = vmatmul.bf16.gmra.mxu0 %v2236
        %v2361 = vpop.f32.mrf.mxu0
        %v2362 = vadd.f32 0.0, %v2361
        %v2363 = vpop.f32.mrf.mxu0
        %v2364 = vadd.f32 0.0, %v2363
        %2365 = vmatmul.bf16.gmra.mxu0 %v2237
        %v2366 = vpop.f32.mrf.mxu0
        %v2367 = vadd.f32 0.0, %v2366
        %v2368 = vpop.f32.mrf.mxu0
        %v2369 = vadd.f32 0.0, %v2368
        %2370 = vmatmul.bf16.gmra.mxu0 %v2238
        %v2371 = vpop.f32.mrf.mxu0
        %v2372 = vadd.f32 0.0, %v2371
        %v2373 = vpop.f32.mrf.mxu0
        %v2374 = vadd.f32 0.0, %v2373
        %2375 = vmatmul.bf16.gmra.mxu0 %v2239
        %v2376 = vpop.f32.mrf.mxu0
        %v2377 = vadd.f32 0.0, %v2376
        %v2378 = vpop.f32.mrf.mxu0
        %v2379 = vadd.f32 0.0, %v2378
        %2380 = vmatmul.bf16.gmra.mxu0 %v2240
        %v2381 = vpop.f32.mrf.mxu0
        %v2382 = vadd.f32 0.0, %v2381
        %v2383 = vpop.f32.mrf.mxu0
        %v2384 = vadd.f32 0.0, %v2383
        %2385 = vmatmul.bf16.gmra.mxu0 %v2241
        %v2386 = vpop.f32.mrf.mxu0
        %v2387 = vadd.f32 0.0, %v2386
        %v2388 = vpop.f32.mrf.mxu0
        %v2389 = vadd.f32 0.0, %v2388
        %2390 = vmatmul.bf16.gmra.mxu0 %v2242
        %v2391 = vpop.f32.mrf.mxu0
        %v2392 = vadd.f32 0.0, %v2391
        %v2393 = vpop.f32.mrf.mxu0
        %v2394 = vadd.f32 0.0, %v2393
        %2395 = vdwg.mxu0
        %v2396 = vadd.f32 %v2081, %v2317
        %v2397 = vadd.f32 %v2082, %v2319
        %v2398 = vadd.f32 %v2083, %v2322
        %v2399 = vadd.f32 %v2084, %v2324
        %v2400 = vadd.f32 %v2085, %v2327
        %v2401 = vadd.f32 %v2086, %v2329
        %v2402 = vadd.f32 %v2087, %v2332
        %v2403 = vadd.f32 %v2088, %v2334
        %v2404 = vadd.f32 %v2089, %v2337
        %v2405 = vadd.f32 %v2090, %v2339
        %v2406 = vadd.f32 %v2091, %v2342
        %v2407 = vadd.f32 %v2092, %v2344
        %v2408 = vadd.f32 %v2093, %v2347
        %v2409 = vadd.f32 %v2094, %v2349
        %v2410 = vadd.f32 %v2095, %v2352
        %v2411 = vadd.f32 %v2096, %v2354
        %v2412 = vadd.f32 %v2097, %v2357
        %v2413 = vadd.f32 %v2098, %v2359
        %v2414 = vadd.f32 %v2099, %v2362
        %v2415 = vadd.f32 %v2100, %v2364
        %v2416 = vadd.f32 %v2101, %v2367
        %v2417 = vadd.f32 %v2102, %v2369
        %v2418 = vadd.f32 %v2103, %v2372
        %v2419 = vadd.f32 %v2104, %v2374
        %v2420 = vadd.f32 %v2105, %v2377
        %v2421 = vadd.f32 %v2106, %v2379
        %v2422 = vadd.f32 %v2107, %v2382
        %v2423 = vadd.f32 %v2108, %v2384
        %v2424 = vadd.f32 %v2109, %v2387
        %v2425 = vadd.f32 %v2110, %v2389
        %v2426 = vadd.f32 %v2111, %v2392
        %v2427 = vadd.f32 %v2112, %v2394
        %s2428 = scalar_lea.vmem [#allocation2], 296
        %v2429 = vld [vmem:[%s2428] sm:$0xf]
        %v2430 = vld [vmem:[%s2428 + $0x4] sm:$0xf]
        %v2431 = vld [vmem:[%s2428 + $0x8] sm:$0xf]
        %v2432 = vld [vmem:[%s2428 + $0xc] sm:$0xf]
        %v2433 = vld [vmem:[%s2428 + $0x10] sm:$0xf]
        %v2434 = vld [vmem:[%s2428 + $0x14] sm:$0xf]
        %v2435 = vld [vmem:[%s2428 + $0x18] sm:$0xf]
        %v2436 = vld [vmem:[%s2428 + $0x1c] sm:$0xf]
        %v2437 = vld [vmem:[%s2428 + $0x20] sm:$0xf]
        %v2438 = vld [vmem:[%s2428 + $0x24] sm:$0xf]
        %v2439 = vld [vmem:[%s2428 + $0x28] sm:$0xf]
        %v2440 = vld [vmem:[%s2428 + $0x2c] sm:$0xf]
        %v2441 = vld [vmem:[%s2428 + $0x30] sm:$0xf]
        %v2442 = vld [vmem:[%s2428 + $0x34] sm:$0xf]
        %v2443 = vld [vmem:[%s2428 + $0x38] sm:$0xf]
        %v2444 = vld [vmem:[%s2428 + $0x3c] sm:$0xf]
        %v2445 = vld [vmem:[%s2428 + $0x40] sm:$0xf]
        %v2446 = vld [vmem:[%s2428 + $0x44] sm:$0xf]
        %v2447 = vld [vmem:[%s2428 + $0x48] sm:$0xf]
        %v2448 = vld [vmem:[%s2428 + $0x4c] sm:$0xf]
        %v2449 = vld [vmem:[%s2428 + $0x50] sm:$0xf]
        %v2450 = vld [vmem:[%s2428 + $0x54] sm:$0xf]
        %v2451 = vld [vmem:[%s2428 + $0x58] sm:$0xf]
        %v2452 = vld [vmem:[%s2428 + $0x5c] sm:$0xf]
        %v2453 = vld [vmem:[%s2428 + $0x60] sm:$0xf]
        %v2454 = vld [vmem:[%s2428 + $0x64] sm:$0xf]
        %v2455 = vld [vmem:[%s2428 + $0x68] sm:$0xf]
        %v2456 = vld [vmem:[%s2428 + $0x6c] sm:$0xf]
        %v2457 = vld [vmem:[%s2428 + $0x70] sm:$0xf]
        %v2458 = vld [vmem:[%s2428 + $0x74] sm:$0xf]
        %v2459 = vld [vmem:[%s2428 + $0x78] sm:$0xf]
        %v2460 = vld [vmem:[%s2428 + $0x7c] sm:$0xf]
        %s2461 = scalar_lea.vmem [#allocation6], 320
        %v2462 = vld [vmem:[%s2461] sm:$0xf]
        %v2463 = vld [vmem:[%s2461 + $0x4] sm:$0xf]
        %v2464 = vld [vmem:[%s2461 + $0x8] sm:$0xf]
        %v2465 = vld [vmem:[%s2461 + $0xc] sm:$0xf]
        %v2466 = vld [vmem:[%s2461 + $0x10] sm:$0xf]
        %v2467 = vld [vmem:[%s2461 + $0x14] sm:$0xf]
        %v2468 = vld [vmem:[%s2461 + $0x18] sm:$0xf]
        %v2469 = vld [vmem:[%s2461 + $0x1c] sm:$0xf]
        %v2470 = vld [vmem:[%s2461 + $0x20] sm:$0xf]
        %v2471 = vld [vmem:[%s2461 + $0x24] sm:$0xf]
        %v2472 = vld [vmem:[%s2461 + $0x28] sm:$0xf]
        %v2473 = vld [vmem:[%s2461 + $0x2c] sm:$0xf]
        %v2474 = vld [vmem:[%s2461 + $0x30] sm:$0xf]
        %v2475 = vld [vmem:[%s2461 + $0x34] sm:$0xf]
        %v2476 = vld [vmem:[%s2461 + $0x38] sm:$0xf]
        %v2477 = vld [vmem:[%s2461 + $0x3c] sm:$0xf]
        %v2510 = vunpack.c.l.b16 %v2429
        %v2511 = vunpack.c.l.b16 %v2430
        %v2512 = vunpack.c.l.b16 %v2431
        %v2513 = vunpack.c.l.b16 %v2432
        %v2514 = vunpack.c.l.b16 %v2433
        %v2515 = vunpack.c.l.b16 %v2434
        %v2516 = vunpack.c.l.b16 %v2435
        %v2517 = vunpack.c.l.b16 %v2436
        %v2518 = vunpack.c.l.b16 %v2437
        %v2519 = vunpack.c.l.b16 %v2438
        %v2520 = vunpack.c.l.b16 %v2439
        %v2521 = vunpack.c.l.b16 %v2440
        %v2522 = vunpack.c.l.b16 %v2441
        %v2523 = vunpack.c.l.b16 %v2442
        %v2524 = vunpack.c.l.b16 %v2443
        %v2525 = vunpack.c.l.b16 %v2444
        %v2526 = vunpack.c.l.b16 %v2445
        %v2527 = vunpack.c.l.b16 %v2446
        %v2528 = vunpack.c.l.b16 %v2447
        %v2529 = vunpack.c.l.b16 %v2448
        %v2530 = vunpack.c.l.b16 %v2449
        %v2531 = vunpack.c.l.b16 %v2450
        %v2532 = vunpack.c.l.b16 %v2451
        %v2533 = vunpack.c.l.b16 %v2452
        %v2534 = vunpack.c.l.b16 %v2453
        %v2535 = vunpack.c.l.b16 %v2454
        %v2536 = vunpack.c.l.b16 %v2455
        %v2537 = vunpack.c.l.b16 %v2456
        %v2538 = vunpack.c.l.b16 %v2457
        %v2539 = vunpack.c.l.b16 %v2458
        %v2540 = vunpack.c.l.b16 %v2459
        %v2541 = vunpack.c.l.b16 %v2460
        %v2542 = vpack.c.b16 %v2511, %v2510
        %v2543 = vpack.c.b16 %v2513, %v2512
        %v2544 = vpack.c.b16 %v2515, %v2514
        %v2545 = vpack.c.b16 %v2517, %v2516
        %v2546 = vpack.c.b16 %v2519, %v2518
        %v2547 = vpack.c.b16 %v2521, %v2520
        %v2548 = vpack.c.b16 %v2523, %v2522
        %v2549 = vpack.c.b16 %v2525, %v2524
        %v2550 = vpack.c.b16 %v2527, %v2526
        %v2551 = vpack.c.b16 %v2529, %v2528
        %v2552 = vpack.c.b16 %v2531, %v2530
        %v2553 = vpack.c.b16 %v2533, %v2532
        %v2554 = vpack.c.b16 %v2535, %v2534
        %v2555 = vpack.c.b16 %v2537, %v2536
        %v2556 = vpack.c.b16 %v2539, %v2538
        %v2557 = vpack.c.b16 %v2541, %v2540
        %v2590 = vunpack.c.l.b16 %v2462
        %v2591 = vunpack.c.l.b16 %v2463
        %v2592 = vunpack.c.l.b16 %v2464
        %v2593 = vunpack.c.l.b16 %v2465
        %v2594 = vunpack.c.l.b16 %v2466
        %v2595 = vunpack.c.l.b16 %v2467
        %v2596 = vunpack.c.l.b16 %v2468
        %v2597 = vunpack.c.l.b16 %v2469
        %v2598 = vunpack.c.l.b16 %v2470
        %v2599 = vunpack.c.l.b16 %v2471
        %v2600 = vunpack.c.l.b16 %v2472
        %v2601 = vunpack.c.l.b16 %v2473
        %v2602 = vunpack.c.l.b16 %v2474
        %v2603 = vunpack.c.l.b16 %v2475
        %v2604 = vunpack.c.l.b16 %v2476
        %v2605 = vunpack.c.l.b16 %v2477
        %v2606 = vpack.c.b16 %v2591, %v2590
        %v2607 = vpack.c.b16 %v2593, %v2592
        %v2608 = vpack.c.b16 %v2595, %v2594
        %v2609 = vpack.c.b16 %v2597, %v2596
        %v2610 = vpack.c.b16 %v2599, %v2598
        %v2611 = vpack.c.b16 %v2601, %v2600
        %v2612 = vpack.c.b16 %v2603, %v2602
        %v2613 = vpack.c.b16 %v2605, %v2604
        %2622 = vmatpush.bf16.msra.mxu0 %v2613
        %2623 = vmatpush.bf16.msra.mxu0 %v2612
        %2624 = vmatpush.bf16.msra.mxu0 %v2611
        %2625 = vmatpush.bf16.msra.mxu0 %v2610
        %2626 = vmatpush.bf16.msra.mxu0 %v2609
        %2627 = vmatpush.bf16.msra.mxu0 %v2608
        %2628 = vmatpush.bf16.msra.mxu0 %v2607
        %2629 = vmatpush.bf16.msra.mxu0 %v2606
        %2630 = vmatmul.bf16.gmra.mxu0 %v2542
        %v2631 = vpop.f32.mrf.mxu0
        %v2632 = vadd.f32 0.0, %v2631
        %v2633 = vpop.f32.mrf.mxu0
        %v2634 = vadd.f32 0.0, %v2633
        %2635 = vmatmul.bf16.gmra.mxu0 %v2543
        %v2636 = vpop.f32.mrf.mxu0
        %v2637 = vadd.f32 0.0, %v2636
        %v2638 = vpop.f32.mrf.mxu0
        %v2639 = vadd.f32 0.0, %v2638
        %2640 = vmatmul.bf16.gmra.mxu0 %v2544
        %v2641 = vpop.f32.mrf.mxu0
        %v2642 = vadd.f32 0.0, %v2641
        %v2643 = vpop.f32.mrf.mxu0
        %v2644 = vadd.f32 0.0, %v2643
        %2645 = vmatmul.bf16.gmra.mxu0 %v2545
        %v2646 = vpop.f32.mrf.mxu0
        %v2647 = vadd.f32 0.0, %v2646
        %v2648 = vpop.f32.mrf.mxu0
        %v2649 = vadd.f32 0.0, %v2648
        %2650 = vmatmul.bf16.gmra.mxu0 %v2546
        %v2651 = vpop.f32.mrf.mxu0
        %v2652 = vadd.f32 0.0, %v2651
        %v2653 = vpop.f32.mrf.mxu0
        %v2654 = vadd.f32 0.0, %v2653
        %2655 = vmatmul.bf16.gmra.mxu0 %v2547
        %v2656 = vpop.f32.mrf.mxu0
        %v2657 = vadd.f32 0.0, %v2656
        %v2658 = vpop.f32.mrf.mxu0
        %v2659 = vadd.f32 0.0, %v2658
        %2660 = vmatmul.bf16.gmra.mxu0 %v2548
        %v2661 = vpop.f32.mrf.mxu0
        %v2662 = vadd.f32 0.0, %v2661
        %v2663 = vpop.f32.mrf.mxu0
        %v2664 = vadd.f32 0.0, %v2663
        %2665 = vmatmul.bf16.gmra.mxu0 %v2549
        %v2666 = vpop.f32.mrf.mxu0
        %v2667 = vadd.f32 0.0, %v2666
        %v2668 = vpop.f32.mrf.mxu0
        %v2669 = vadd.f32 0.0, %v2668
        %2670 = vmatmul.bf16.gmra.mxu0 %v2550
        %v2671 = vpop.f32.mrf.mxu0
        %v2672 = vadd.f32 0.0, %v2671
        %v2673 = vpop.f32.mrf.mxu0
        %v2674 = vadd.f32 0.0, %v2673
        %2675 = vmatmul.bf16.gmra.mxu0 %v2551
        %v2676 = vpop.f32.mrf.mxu0
        %v2677 = vadd.f32 0.0, %v2676
        %v2678 = vpop.f32.mrf.mxu0
        %v2679 = vadd.f32 0.0, %v2678
        %2680 = vmatmul.bf16.gmra.mxu0 %v2552
        %v2681 = vpop.f32.mrf.mxu0
        %v2682 = vadd.f32 0.0, %v2681
        %v2683 = vpop.f32.mrf.mxu0
        %v2684 = vadd.f32 0.0, %v2683
        %2685 = vmatmul.bf16.gmra.mxu0 %v2553
        %v2686 = vpop.f32.mrf.mxu0
        %v2687 = vadd.f32 0.0, %v2686
        %v2688 = vpop.f32.mrf.mxu0
        %v2689 = vadd.f32 0.0, %v2688
        %2690 = vmatmul.bf16.gmra.mxu0 %v2554
        %v2691 = vpop.f32.mrf.mxu0
        %v2692 = vadd.f32 0.0, %v2691
        %v2693 = vpop.f32.mrf.mxu0
        %v2694 = vadd.f32 0.0, %v2693
        %2695 = vmatmul.bf16.gmra.mxu0 %v2555
        %v2696 = vpop.f32.mrf.mxu0
        %v2697 = vadd.f32 0.0, %v2696
        %v2698 = vpop.f32.mrf.mxu0
        %v2699 = vadd.f32 0.0, %v2698
        %2700 = vmatmul.bf16.gmra.mxu0 %v2556
        %v2701 = vpop.f32.mrf.mxu0
        %v2702 = vadd.f32 0.0, %v2701
        %v2703 = vpop.f32.mrf.mxu0
        %v2704 = vadd.f32 0.0, %v2703
        %2705 = vmatmul.bf16.gmra.mxu0 %v2557
        %v2706 = vpop.f32.mrf.mxu0
        %v2707 = vadd.f32 0.0, %v2706
        %v2708 = vpop.f32.mrf.mxu0
        %v2709 = vadd.f32 0.0, %v2708
        %2710 = vdwg.mxu0
        %v2711 = vadd.f32 %v2396, %v2632
        %v2712 = vadd.f32 %v2397, %v2634
        %v2713 = vadd.f32 %v2398, %v2637
        %v2714 = vadd.f32 %v2399, %v2639
        %v2715 = vadd.f32 %v2400, %v2642
        %v2716 = vadd.f32 %v2401, %v2644
        %v2717 = vadd.f32 %v2402, %v2647
        %v2718 = vadd.f32 %v2403, %v2649
        %v2719 = vadd.f32 %v2404, %v2652
        %v2720 = vadd.f32 %v2405, %v2654
        %v2721 = vadd.f32 %v2406, %v2657
        %v2722 = vadd.f32 %v2407, %v2659
        %v2723 = vadd.f32 %v2408, %v2662
        %v2724 = vadd.f32 %v2409, %v2664
        %v2725 = vadd.f32 %v2410, %v2667
        %v2726 = vadd.f32 %v2411, %v2669
        %v2727 = vadd.f32 %v2412, %v2672
        %v2728 = vadd.f32 %v2413, %v2674
        %v2729 = vadd.f32 %v2414, %v2677
        %v2730 = vadd.f32 %v2415, %v2679
        %v2731 = vadd.f32 %v2416, %v2682
        %v2732 = vadd.f32 %v2417, %v2684
        %v2733 = vadd.f32 %v2418, %v2687
        %v2734 = vadd.f32 %v2419, %v2689
        %v2735 = vadd.f32 %v2420, %v2692
        %v2736 = vadd.f32 %v2421, %v2694
        %v2737 = vadd.f32 %v2422, %v2697
        %v2738 = vadd.f32 %v2423, %v2699
        %v2739 = vadd.f32 %v2424, %v2702
        %v2740 = vadd.f32 %v2425, %v2704
        %v2741 = vadd.f32 %v2426, %v2707
        %v2742 = vadd.f32 %v2427, %v2709
        %s2743 = scalar_lea.vmem [#allocation2], 16
        %v2744 = vld [vmem:[%s2743] sm:$0xf]
        %v2745 = vld [vmem:[%s2743 + $0x4] sm:$0xf]
        %v2746 = vld [vmem:[%s2743 + $0x8] sm:$0xf]
        %v2747 = vld [vmem:[%s2743 + $0xc] sm:$0xf]
        %v2748 = vld [vmem:[%s2743 + $0x10] sm:$0xf]
        %v2749 = vld [vmem:[%s2743 + $0x14] sm:$0xf]
        %v2750 = vld [vmem:[%s2743 + $0x18] sm:$0xf]
        %v2751 = vld [vmem:[%s2743 + $0x1c] sm:$0xf]
        %v2752 = vld [vmem:[%s2743 + $0x20] sm:$0xf]
        %v2753 = vld [vmem:[%s2743 + $0x24] sm:$0xf]
        %v2754 = vld [vmem:[%s2743 + $0x28] sm:$0xf]
        %v2755 = vld [vmem:[%s2743 + $0x2c] sm:$0xf]
        %v2756 = vld [vmem:[%s2743 + $0x30] sm:$0xf]
        %v2757 = vld [vmem:[%s2743 + $0x34] sm:$0xf]
        %v2758 = vld [vmem:[%s2743 + $0x38] sm:$0xf]
        %v2759 = vld [vmem:[%s2743 + $0x3c] sm:$0xf]
        %v2760 = vld [vmem:[%s2743 + $0x40] sm:$0xf]
        %v2761 = vld [vmem:[%s2743 + $0x44] sm:$0xf]
        %v2762 = vld [vmem:[%s2743 + $0x48] sm:$0xf]
        %v2763 = vld [vmem:[%s2743 + $0x4c] sm:$0xf]
        %v2764 = vld [vmem:[%s2743 + $0x50] sm:$0xf]
        %v2765 = vld [vmem:[%s2743 + $0x54] sm:$0xf]
        %v2766 = vld [vmem:[%s2743 + $0x58] sm:$0xf]
        %v2767 = vld [vmem:[%s2743 + $0x5c] sm:$0xf]
        %v2768 = vld [vmem:[%s2743 + $0x60] sm:$0xf]
        %v2769 = vld [vmem:[%s2743 + $0x64] sm:$0xf]
        %v2770 = vld [vmem:[%s2743 + $0x68] sm:$0xf]
        %v2771 = vld [vmem:[%s2743 + $0x6c] sm:$0xf]
        %v2772 = vld [vmem:[%s2743 + $0x70] sm:$0xf]
        %v2773 = vld [vmem:[%s2743 + $0x74] sm:$0xf]
        %v2774 = vld [vmem:[%s2743 + $0x78] sm:$0xf]
        %v2775 = vld [vmem:[%s2743 + $0x7c] sm:$0xf]
        %s2776 = scalar_lea.vmem [#allocation6], 384
        %v2777 = vld [vmem:[%s2776] sm:$0xf]
        %v2778 = vld [vmem:[%s2776 + $0x4] sm:$0xf]
        %v2779 = vld [vmem:[%s2776 + $0x8] sm:$0xf]
        %v2780 = vld [vmem:[%s2776 + $0xc] sm:$0xf]
        %v2781 = vld [vmem:[%s2776 + $0x10] sm:$0xf]
        %v2782 = vld [vmem:[%s2776 + $0x14] sm:$0xf]
        %v2783 = vld [vmem:[%s2776 + $0x18] sm:$0xf]
        %v2784 = vld [vmem:[%s2776 + $0x1c] sm:$0xf]
        %v2785 = vld [vmem:[%s2776 + $0x20] sm:$0xf]
        %v2786 = vld [vmem:[%s2776 + $0x24] sm:$0xf]
        %v2787 = vld [vmem:[%s2776 + $0x28] sm:$0xf]
        %v2788 = vld [vmem:[%s2776 + $0x2c] sm:$0xf]
        %v2789 = vld [vmem:[%s2776 + $0x30] sm:$0xf]
        %v2790 = vld [vmem:[%s2776 + $0x34] sm:$0xf]
        %v2791 = vld [vmem:[%s2776 + $0x38] sm:$0xf]
        %v2792 = vld [vmem:[%s2776 + $0x3c] sm:$0xf]
        %v2825 = vunpack.c.l.b16 %v2744
        %v2826 = vunpack.c.l.b16 %v2745
        %v2827 = vunpack.c.l.b16 %v2746
        %v2828 = vunpack.c.l.b16 %v2747
        %v2829 = vunpack.c.l.b16 %v2748
        %v2830 = vunpack.c.l.b16 %v2749
        %v2831 = vunpack.c.l.b16 %v2750
        %v2832 = vunpack.c.l.b16 %v2751
        %v2833 = vunpack.c.l.b16 %v2752
        %v2834 = vunpack.c.l.b16 %v2753
        %v2835 = vunpack.c.l.b16 %v2754
        %v2836 = vunpack.c.l.b16 %v2755
        %v2837 = vunpack.c.l.b16 %v2756
        %v2838 = vunpack.c.l.b16 %v2757
        %v2839 = vunpack.c.l.b16 %v2758
        %v2840 = vunpack.c.l.b16 %v2759
        %v2841 = vunpack.c.l.b16 %v2760
        %v2842 = vunpack.c.l.b16 %v2761
        %v2843 = vunpack.c.l.b16 %v2762
        %v2844 = vunpack.c.l.b16 %v2763
        %v2845 = vunpack.c.l.b16 %v2764
        %v2846 = vunpack.c.l.b16 %v2765
        %v2847 = vunpack.c.l.b16 %v2766
        %v2848 = vunpack.c.l.b16 %v2767
        %v2849 = vunpack.c.l.b16 %v2768
        %v2850 = vunpack.c.l.b16 %v2769
        %v2851 = vunpack.c.l.b16 %v2770
        %v2852 = vunpack.c.l.b16 %v2771
        %v2853 = vunpack.c.l.b16 %v2772
        %v2854 = vunpack.c.l.b16 %v2773
        %v2855 = vunpack.c.l.b16 %v2774
        %v2856 = vunpack.c.l.b16 %v2775
        %v2857 = vpack.c.b16 %v2826, %v2825
        %v2858 = vpack.c.b16 %v2828, %v2827
        %v2859 = vpack.c.b16 %v2830, %v2829
        %v2860 = vpack.c.b16 %v2832, %v2831
        %v2861 = vpack.c.b16 %v2834, %v2833
        %v2862 = vpack.c.b16 %v2836, %v2835
        %v2863 = vpack.c.b16 %v2838, %v2837
        %v2864 = vpack.c.b16 %v2840, %v2839
        %v2865 = vpack.c.b16 %v2842, %v2841
        %v2866 = vpack.c.b16 %v2844, %v2843
        %v2867 = vpack.c.b16 %v2846, %v2845
        %v2868 = vpack.c.b16 %v2848, %v2847
        %v2869 = vpack.c.b16 %v2850, %v2849
        %v2870 = vpack.c.b16 %v2852, %v2851
        %v2871 = vpack.c.b16 %v2854, %v2853
        %v2872 = vpack.c.b16 %v2856, %v2855
        %v2905 = vunpack.c.l.b16 %v2777
        %v2906 = vunpack.c.l.b16 %v2778
        %v2907 = vunpack.c.l.b16 %v2779
        %v2908 = vunpack.c.l.b16 %v2780
        %v2909 = vunpack.c.l.b16 %v2781
        %v2910 = vunpack.c.l.b16 %v2782
        %v2911 = vunpack.c.l.b16 %v2783
        %v2912 = vunpack.c.l.b16 %v2784
        %v2913 = vunpack.c.l.b16 %v2785
        %v2914 = vunpack.c.l.b16 %v2786
        %v2915 = vunpack.c.l.b16 %v2787
        %v2916 = vunpack.c.l.b16 %v2788
        %v2917 = vunpack.c.l.b16 %v2789
        %v2918 = vunpack.c.l.b16 %v2790
        %v2919 = vunpack.c.l.b16 %v2791
        %v2920 = vunpack.c.l.b16 %v2792
        %v2921 = vpack.c.b16 %v2906, %v2905
        %v2922 = vpack.c.b16 %v2908, %v2907
        %v2923 = vpack.c.b16 %v2910, %v2909
        %v2924 = vpack.c.b16 %v2912, %v2911
        %v2925 = vpack.c.b16 %v2914, %v2913
        %v2926 = vpack.c.b16 %v2916, %v2915
        %v2927 = vpack.c.b16 %v2918, %v2917
        %v2928 = vpack.c.b16 %v2920, %v2919
        %2937 = vmatpush.bf16.msra.mxu0 %v2928
        %2938 = vmatpush.bf16.msra.mxu0 %v2927
        %2939 = vmatpush.bf16.msra.mxu0 %v2926
        %2940 = vmatpush.bf16.msra.mxu0 %v2925
        %2941 = vmatpush.bf16.msra.mxu0 %v2924
        %2942 = vmatpush.bf16.msra.mxu0 %v2923
        %2943 = vmatpush.bf16.msra.mxu0 %v2922
        %2944 = vmatpush.bf16.msra.mxu0 %v2921
        %2945 = vmatmul.bf16.gmra.mxu0 %v2857
        %v2946 = vpop.f32.mrf.mxu0
        %v2947 = vadd.f32 0.0, %v2946
        %v2948 = vpop.f32.mrf.mxu0
        %v2949 = vadd.f32 0.0, %v2948
        %2950 = vmatmul.bf16.gmra.mxu0 %v2858
        %v2951 = vpop.f32.mrf.mxu0
        %v2952 = vadd.f32 0.0, %v2951
        %v2953 = vpop.f32.mrf.mxu0
        %v2954 = vadd.f32 0.0, %v2953
        %2955 = vmatmul.bf16.gmra.mxu0 %v2859
        %v2956 = vpop.f32.mrf.mxu0
        %v2957 = vadd.f32 0.0, %v2956
        %v2958 = vpop.f32.mrf.mxu0
        %v2959 = vadd.f32 0.0, %v2958
        %2960 = vmatmul.bf16.gmra.mxu0 %v2860
        %v2961 = vpop.f32.mrf.mxu0
        %v2962 = vadd.f32 0.0, %v2961
        %v2963 = vpop.f32.mrf.mxu0
        %v2964 = vadd.f32 0.0, %v2963
        %2965 = vmatmul.bf16.gmra.mxu0 %v2861
        %v2966 = vpop.f32.mrf.mxu0
        %v2967 = vadd.f32 0.0, %v2966
        %v2968 = vpop.f32.mrf.mxu0
        %v2969 = vadd.f32 0.0, %v2968
        %2970 = vmatmul.bf16.gmra.mxu0 %v2862
        %v2971 = vpop.f32.mrf.mxu0
        %v2972 = vadd.f32 0.0, %v2971
        %v2973 = vpop.f32.mrf.mxu0
        %v2974 = vadd.f32 0.0, %v2973
        %2975 = vmatmul.bf16.gmra.mxu0 %v2863
        %v2976 = vpop.f32.mrf.mxu0
        %v2977 = vadd.f32 0.0, %v2976
        %v2978 = vpop.f32.mrf.mxu0
        %v2979 = vadd.f32 0.0, %v2978
        %2980 = vmatmul.bf16.gmra.mxu0 %v2864
        %v2981 = vpop.f32.mrf.mxu0
        %v2982 = vadd.f32 0.0, %v2981
        %v2983 = vpop.f32.mrf.mxu0
        %v2984 = vadd.f32 0.0, %v2983
        %2985 = vmatmul.bf16.gmra.mxu0 %v2865
        %v2986 = vpop.f32.mrf.mxu0
        %v2987 = vadd.f32 0.0, %v2986
        %v2988 = vpop.f32.mrf.mxu0
        %v2989 = vadd.f32 0.0, %v2988
        %2990 = vmatmul.bf16.gmra.mxu0 %v2866
        %v2991 = vpop.f32.mrf.mxu0
        %v2992 = vadd.f32 0.0, %v2991
        %v2993 = vpop.f32.mrf.mxu0
        %v2994 = vadd.f32 0.0, %v2993
        %2995 = vmatmul.bf16.gmra.mxu0 %v2867
        %v2996 = vpop.f32.mrf.mxu0
        %v2997 = vadd.f32 0.0, %v2996
        %v2998 = vpop.f32.mrf.mxu0
        %v2999 = vadd.f32 0.0, %v2998
        %3000 = vmatmul.bf16.gmra.mxu0 %v2868
        %v3001 = vpop.f32.mrf.mxu0
        %v3002 = vadd.f32 0.0, %v3001
        %v3003 = vpop.f32.mrf.mxu0
        %v3004 = vadd.f32 0.0, %v3003
        %3005 = vmatmul.bf16.gmra.mxu0 %v2869
        %v3006 = vpop.f32.mrf.mxu0
        %v3007 = vadd.f32 0.0, %v3006
        %v3008 = vpop.f32.mrf.mxu0
        %v3009 = vadd.f32 0.0, %v3008
        %3010 = vmatmul.bf16.gmra.mxu0 %v2870
        %v3011 = vpop.f32.mrf.mxu0
        %v3012 = vadd.f32 0.0, %v3011
        %v3013 = vpop.f32.mrf.mxu0
        %v3014 = vadd.f32 0.0, %v3013
        %3015 = vmatmul.bf16.gmra.mxu0 %v2871
        %v3016 = vpop.f32.mrf.mxu0
        %v3017 = vadd.f32 0.0, %v3016
        %v3018 = vpop.f32.mrf.mxu0
        %v3019 = vadd.f32 0.0, %v3018
        %3020 = vmatmul.bf16.gmra.mxu0 %v2872
        %v3021 = vpop.f32.mrf.mxu0
        %v3022 = vadd.f32 0.0, %v3021
        %v3023 = vpop.f32.mrf.mxu0
        %v3024 = vadd.f32 0.0, %v3023
        %3025 = vdwg.mxu0
        %v3026 = vadd.f32 %v2711, %v2947
        %v3027 = vadd.f32 %v2712, %v2949
        %v3028 = vadd.f32 %v2713, %v2952
        %v3029 = vadd.f32 %v2714, %v2954
        %v3030 = vadd.f32 %v2715, %v2957
        %v3031 = vadd.f32 %v2716, %v2959
        %v3032 = vadd.f32 %v2717, %v2962
        %v3033 = vadd.f32 %v2718, %v2964
        %v3034 = vadd.f32 %v2719, %v2967
        %v3035 = vadd.f32 %v2720, %v2969
        %v3036 = vadd.f32 %v2721, %v2972
        %v3037 = vadd.f32 %v2722, %v2974
        %v3038 = vadd.f32 %v2723, %v2977
        %v3039 = vadd.f32 %v2724, %v2979
        %v3040 = vadd.f32 %v2725, %v2982
        %v3041 = vadd.f32 %v2726, %v2984
        %v3042 = vadd.f32 %v2727, %v2987
        %v3043 = vadd.f32 %v2728, %v2989
        %v3044 = vadd.f32 %v2729, %v2992
        %v3045 = vadd.f32 %v2730, %v2994
        %v3046 = vadd.f32 %v2731, %v2997
        %v3047 = vadd.f32 %v2732, %v2999
        %v3048 = vadd.f32 %v2733, %v3002
        %v3049 = vadd.f32 %v2734, %v3004
        %v3050 = vadd.f32 %v2735, %v3007
        %v3051 = vadd.f32 %v2736, %v3009
        %v3052 = vadd.f32 %v2737, %v3012
        %v3053 = vadd.f32 %v2738, %v3014
        %v3054 = vadd.f32 %v2739, %v3017
        %v3055 = vadd.f32 %v2740, %v3019
        %v3056 = vadd.f32 %v2741, %v3022
        %v3057 = vadd.f32 %v2742, %v3024
        %s3058 = scalar_lea.vmem [#allocation2], 160
        %v3059 = vld [vmem:[%s3058] sm:$0xf]
        %v3060 = vld [vmem:[%s3058 + $0x4] sm:$0xf]
        %v3061 = vld [vmem:[%s3058 + $0x8] sm:$0xf]
        %v3062 = vld [vmem:[%s3058 + $0xc] sm:$0xf]
        %v3063 = vld [vmem:[%s3058 + $0x10] sm:$0xf]
        %v3064 = vld [vmem:[%s3058 + $0x14] sm:$0xf]
        %v3065 = vld [vmem:[%s3058 + $0x18] sm:$0xf]
        %v3066 = vld [vmem:[%s3058 + $0x1c] sm:$0xf]
        %v3067 = vld [vmem:[%s3058 + $0x20] sm:$0xf]
        %v3068 = vld [vmem:[%s3058 + $0x24] sm:$0xf]
        %v3069 = vld [vmem:[%s3058 + $0x28] sm:$0xf]
        %v3070 = vld [vmem:[%s3058 + $0x2c] sm:$0xf]
        %v3071 = vld [vmem:[%s3058 + $0x30] sm:$0xf]
        %v3072 = vld [vmem:[%s3058 + $0x34] sm:$0xf]
        %v3073 = vld [vmem:[%s3058 + $0x38] sm:$0xf]
        %v3074 = vld [vmem:[%s3058 + $0x3c] sm:$0xf]
        %v3075 = vld [vmem:[%s3058 + $0x40] sm:$0xf]
        %v3076 = vld [vmem:[%s3058 + $0x44] sm:$0xf]
        %v3077 = vld [vmem:[%s3058 + $0x48] sm:$0xf]
        %v3078 = vld [vmem:[%s3058 + $0x4c] sm:$0xf]
        %v3079 = vld [vmem:[%s3058 + $0x50] sm:$0xf]
        %v3080 = vld [vmem:[%s3058 + $0x54] sm:$0xf]
        %v3081 = vld [vmem:[%s3058 + $0x58] sm:$0xf]
        %v3082 = vld [vmem:[%s3058 + $0x5c] sm:$0xf]
        %v3083 = vld [vmem:[%s3058 + $0x60] sm:$0xf]
        %v3084 = vld [vmem:[%s3058 + $0x64] sm:$0xf]
        %v3085 = vld [vmem:[%s3058 + $0x68] sm:$0xf]
        %v3086 = vld [vmem:[%s3058 + $0x6c] sm:$0xf]
        %v3087 = vld [vmem:[%s3058 + $0x70] sm:$0xf]
        %v3088 = vld [vmem:[%s3058 + $0x74] sm:$0xf]
        %v3089 = vld [vmem:[%s3058 + $0x78] sm:$0xf]
        %v3090 = vld [vmem:[%s3058 + $0x7c] sm:$0xf]
        %s3091 = scalar_lea.vmem [#allocation6], 448
        %v3092 = vld [vmem:[%s3091] sm:$0xf]
        %v3093 = vld [vmem:[%s3091 + $0x4] sm:$0xf]
        %v3094 = vld [vmem:[%s3091 + $0x8] sm:$0xf]
        %v3095 = vld [vmem:[%s3091 + $0xc] sm:$0xf]
        %v3096 = vld [vmem:[%s3091 + $0x10] sm:$0xf]
        %v3097 = vld [vmem:[%s3091 + $0x14] sm:$0xf]
        %v3098 = vld [vmem:[%s3091 + $0x18] sm:$0xf]
        %v3099 = vld [vmem:[%s3091 + $0x1c] sm:$0xf]
        %v3100 = vld [vmem:[%s3091 + $0x20] sm:$0xf]
        %v3101 = vld [vmem:[%s3091 + $0x24] sm:$0xf]
        %v3102 = vld [vmem:[%s3091 + $0x28] sm:$0xf]
        %v3103 = vld [vmem:[%s3091 + $0x2c] sm:$0xf]
        %v3104 = vld [vmem:[%s3091 + $0x30] sm:$0xf]
        %v3105 = vld [vmem:[%s3091 + $0x34] sm:$0xf]
        %v3106 = vld [vmem:[%s3091 + $0x38] sm:$0xf]
        %v3107 = vld [vmem:[%s3091 + $0x3c] sm:$0xf]
        %v3140 = vunpack.c.l.b16 %v3059
        %v3141 = vunpack.c.l.b16 %v3060
        %v3142 = vunpack.c.l.b16 %v3061
        %v3143 = vunpack.c.l.b16 %v3062
        %v3144 = vunpack.c.l.b16 %v3063
        %v3145 = vunpack.c.l.b16 %v3064
        %v3146 = vunpack.c.l.b16 %v3065
        %v3147 = vunpack.c.l.b16 %v3066
        %v3148 = vunpack.c.l.b16 %v3067
        %v3149 = vunpack.c.l.b16 %v3068
        %v3150 = vunpack.c.l.b16 %v3069
        %v3151 = vunpack.c.l.b16 %v3070
        %v3152 = vunpack.c.l.b16 %v3071
        %v3153 = vunpack.c.l.b16 %v3072
        %v3154 = vunpack.c.l.b16 %v3073
        %v3155 = vunpack.c.l.b16 %v3074
        %v3156 = vunpack.c.l.b16 %v3075
        %v3157 = vunpack.c.l.b16 %v3076
        %v3158 = vunpack.c.l.b16 %v3077
        %v3159 = vunpack.c.l.b16 %v3078
        %v3160 = vunpack.c.l.b16 %v3079
        %v3161 = vunpack.c.l.b16 %v3080
        %v3162 = vunpack.c.l.b16 %v3081
        %v3163 = vunpack.c.l.b16 %v3082
        %v3164 = vunpack.c.l.b16 %v3083
        %v3165 = vunpack.c.l.b16 %v3084
        %v3166 = vunpack.c.l.b16 %v3085
        %v3167 = vunpack.c.l.b16 %v3086
        %v3168 = vunpack.c.l.b16 %v3087
        %v3169 = vunpack.c.l.b16 %v3088
        %v3170 = vunpack.c.l.b16 %v3089
        %v3171 = vunpack.c.l.b16 %v3090
        %v3172 = vpack.c.b16 %v3141, %v3140
        %v3173 = vpack.c.b16 %v3143, %v3142
        %v3174 = vpack.c.b16 %v3145, %v3144
        %v3175 = vpack.c.b16 %v3147, %v3146
        %v3176 = vpack.c.b16 %v3149, %v3148
        %v3177 = vpack.c.b16 %v3151, %v3150
        %v3178 = vpack.c.b16 %v3153, %v3152
        %v3179 = vpack.c.b16 %v3155, %v3154
        %v3180 = vpack.c.b16 %v3157, %v3156
        %v3181 = vpack.c.b16 %v3159, %v3158
        %v3182 = vpack.c.b16 %v3161, %v3160
        %v3183 = vpack.c.b16 %v3163, %v3162
        %v3184 = vpack.c.b16 %v3165, %v3164
        %v3185 = vpack.c.b16 %v3167, %v3166
        %v3186 = vpack.c.b16 %v3169, %v3168
        %v3187 = vpack.c.b16 %v3171, %v3170
        %v3220 = vunpack.c.l.b16 %v3092
        %v3221 = vunpack.c.l.b16 %v3093
        %v3222 = vunpack.c.l.b16 %v3094
        %v3223 = vunpack.c.l.b16 %v3095
        %v3224 = vunpack.c.l.b16 %v3096
        %v3225 = vunpack.c.l.b16 %v3097
        %v3226 = vunpack.c.l.b16 %v3098
        %v3227 = vunpack.c.l.b16 %v3099
        %v3228 = vunpack.c.l.b16 %v3100
        %v3229 = vunpack.c.l.b16 %v3101
        %v3230 = vunpack.c.l.b16 %v3102
        %v3231 = vunpack.c.l.b16 %v3103
        %v3232 = vunpack.c.l.b16 %v3104
        %v3233 = vunpack.c.l.b16 %v3105
        %v3234 = vunpack.c.l.b16 %v3106
        %v3235 = vunpack.c.l.b16 %v3107
        %v3236 = vpack.c.b16 %v3221, %v3220
        %v3237 = vpack.c.b16 %v3223, %v3222
        %v3238 = vpack.c.b16 %v3225, %v3224
        %v3239 = vpack.c.b16 %v3227, %v3226
        %v3240 = vpack.c.b16 %v3229, %v3228
        %v3241 = vpack.c.b16 %v3231, %v3230
        %v3242 = vpack.c.b16 %v3233, %v3232
        %v3243 = vpack.c.b16 %v3235, %v3234
        %3252 = vmatpush.bf16.msra.mxu0 %v3243
        %3253 = vmatpush.bf16.msra.mxu0 %v3242
        %3254 = vmatpush.bf16.msra.mxu0 %v3241
        %3255 = vmatpush.bf16.msra.mxu0 %v3240
        %3256 = vmatpush.bf16.msra.mxu0 %v3239
        %3257 = vmatpush.bf16.msra.mxu0 %v3238
        %3258 = vmatpush.bf16.msra.mxu0 %v3237
        %3259 = vmatpush.bf16.msra.mxu0 %v3236
        %3260 = vmatmul.bf16.gmra.mxu0 %v3172
        %v3261 = vpop.f32.mrf.mxu0
        %v3262 = vadd.f32 0.0, %v3261
        %v3263 = vpop.f32.mrf.mxu0
        %v3264 = vadd.f32 0.0, %v3263
        %3265 = vmatmul.bf16.gmra.mxu0 %v3173
        %v3266 = vpop.f32.mrf.mxu0
        %v3267 = vadd.f32 0.0, %v3266
        %v3268 = vpop.f32.mrf.mxu0
        %v3269 = vadd.f32 0.0, %v3268
        %3270 = vmatmul.bf16.gmra.mxu0 %v3174
        %v3271 = vpop.f32.mrf.mxu0
        %v3272 = vadd.f32 0.0, %v3271
        %v3273 = vpop.f32.mrf.mxu0
        %v3274 = vadd.f32 0.0, %v3273
        %3275 = vmatmul.bf16.gmra.mxu0 %v3175
        %v3276 = vpop.f32.mrf.mxu0
        %v3277 = vadd.f32 0.0, %v3276
        %v3278 = vpop.f32.mrf.mxu0
        %v3279 = vadd.f32 0.0, %v3278
        %3280 = vmatmul.bf16.gmra.mxu0 %v3176
        %v3281 = vpop.f32.mrf.mxu0
        %v3282 = vadd.f32 0.0, %v3281
        %v3283 = vpop.f32.mrf.mxu0
        %v3284 = vadd.f32 0.0, %v3283
        %3285 = vmatmul.bf16.gmra.mxu0 %v3177
        %v3286 = vpop.f32.mrf.mxu0
        %v3287 = vadd.f32 0.0, %v3286
        %v3288 = vpop.f32.mrf.mxu0
        %v3289 = vadd.f32 0.0, %v3288
        %3290 = vmatmul.bf16.gmra.mxu0 %v3178
        %v3291 = vpop.f32.mrf.mxu0
        %v3292 = vadd.f32 0.0, %v3291
        %v3293 = vpop.f32.mrf.mxu0
        %v3294 = vadd.f32 0.0, %v3293
        %3295 = vmatmul.bf16.gmra.mxu0 %v3179
        %v3296 = vpop.f32.mrf.mxu0
        %v3297 = vadd.f32 0.0, %v3296
        %v3298 = vpop.f32.mrf.mxu0
        %v3299 = vadd.f32 0.0, %v3298
        %3300 = vmatmul.bf16.gmra.mxu0 %v3180
        %v3301 = vpop.f32.mrf.mxu0
        %v3302 = vadd.f32 0.0, %v3301
        %v3303 = vpop.f32.mrf.mxu0
        %v3304 = vadd.f32 0.0, %v3303
        %3305 = vmatmul.bf16.gmra.mxu0 %v3181
        %v3306 = vpop.f32.mrf.mxu0
        %v3307 = vadd.f32 0.0, %v3306
        %v3308 = vpop.f32.mrf.mxu0
        %v3309 = vadd.f32 0.0, %v3308
        %3310 = vmatmul.bf16.gmra.mxu0 %v3182
        %v3311 = vpop.f32.mrf.mxu0
        %v3312 = vadd.f32 0.0, %v3311
        %v3313 = vpop.f32.mrf.mxu0
        %v3314 = vadd.f32 0.0, %v3313
        %3315 = vmatmul.bf16.gmra.mxu0 %v3183
        %v3316 = vpop.f32.mrf.mxu0
        %v3317 = vadd.f32 0.0, %v3316
        %v3318 = vpop.f32.mrf.mxu0
        %v3319 = vadd.f32 0.0, %v3318
        %3320 = vmatmul.bf16.gmra.mxu0 %v3184
        %v3321 = vpop.f32.mrf.mxu0
        %v3322 = vadd.f32 0.0, %v3321
        %v3323 = vpop.f32.mrf.mxu0
        %v3324 = vadd.f32 0.0, %v3323
        %3325 = vmatmul.bf16.gmra.mxu0 %v3185
        %v3326 = vpop.f32.mrf.mxu0
        %v3327 = vadd.f32 0.0, %v3326
        %v3328 = vpop.f32.mrf.mxu0
        %v3329 = vadd.f32 0.0, %v3328
        %3330 = vmatmul.bf16.gmra.mxu0 %v3186
        %v3331 = vpop.f32.mrf.mxu0
        %v3332 = vadd.f32 0.0, %v3331
        %v3333 = vpop.f32.mrf.mxu0
        %v3334 = vadd.f32 0.0, %v3333
        %3335 = vmatmul.bf16.gmra.mxu0 %v3187
        %v3336 = vpop.f32.mrf.mxu0
        %v3337 = vadd.f32 0.0, %v3336
        %v3338 = vpop.f32.mrf.mxu0
        %v3339 = vadd.f32 0.0, %v3338
        %3340 = vdwg.mxu0
        %v3341 = vadd.f32 %v3026, %v3262
        %v3342 = vadd.f32 %v3027, %v3264
        %v3343 = vadd.f32 %v3028, %v3267
        %v3344 = vadd.f32 %v3029, %v3269
        %v3345 = vadd.f32 %v3030, %v3272
        %v3346 = vadd.f32 %v3031, %v3274
        %v3347 = vadd.f32 %v3032, %v3277
        %v3348 = vadd.f32 %v3033, %v3279
        %v3349 = vadd.f32 %v3034, %v3282
        %v3350 = vadd.f32 %v3035, %v3284
        %v3351 = vadd.f32 %v3036, %v3287
        %v3352 = vadd.f32 %v3037, %v3289
        %v3353 = vadd.f32 %v3038, %v3292
        %v3354 = vadd.f32 %v3039, %v3294
        %v3355 = vadd.f32 %v3040, %v3297
        %v3356 = vadd.f32 %v3041, %v3299
        %v3357 = vadd.f32 %v3042, %v3302
        %v3358 = vadd.f32 %v3043, %v3304
        %v3359 = vadd.f32 %v3044, %v3307
        %v3360 = vadd.f32 %v3045, %v3309
        %v3361 = vadd.f32 %v3046, %v3312
        %v3362 = vadd.f32 %v3047, %v3314
        %v3363 = vadd.f32 %v3048, %v3317
        %v3364 = vadd.f32 %v3049, %v3319
        %v3365 = vadd.f32 %v3050, %v3322
        %v3366 = vadd.f32 %v3051, %v3324
        %v3367 = vadd.f32 %v3052, %v3327
        %v3368 = vadd.f32 %v3053, %v3329
        %v3369 = vadd.f32 %v3054, %v3332
        %v3370 = vadd.f32 %v3055, %v3334
        %v3371 = vadd.f32 %v3056, %v3337
        %v3372 = vadd.f32 %v3057, %v3339
        %s3373 = scalar_lea.vmem [#allocation2], 304
        %v3374 = vld [vmem:[%s3373] sm:$0xf]
        %v3375 = vld [vmem:[%s3373 + $0x4] sm:$0xf]
        %v3376 = vld [vmem:[%s3373 + $0x8] sm:$0xf]
        %v3377 = vld [vmem:[%s3373 + $0xc] sm:$0xf]
        %v3378 = vld [vmem:[%s3373 + $0x10] sm:$0xf]
        %v3379 = vld [vmem:[%s3373 + $0x14] sm:$0xf]
        %v3380 = vld [vmem:[%s3373 + $0x18] sm:$0xf]
        %v3381 = vld [vmem:[%s3373 + $0x1c] sm:$0xf]
        %v3382 = vld [vmem:[%s3373 + $0x20] sm:$0xf]
        %v3383 = vld [vmem:[%s3373 + $0x24] sm:$0xf]
        %v3384 = vld [vmem:[%s3373 + $0x28] sm:$0xf]
        %v3385 = vld [vmem:[%s3373 + $0x2c] sm:$0xf]
        %v3386 = vld [vmem:[%s3373 + $0x30] sm:$0xf]
        %v3387 = vld [vmem:[%s3373 + $0x34] sm:$0xf]
        %v3388 = vld [vmem:[%s3373 + $0x38] sm:$0xf]
        %v3389 = vld [vmem:[%s3373 + $0x3c] sm:$0xf]
        %v3390 = vld [vmem:[%s3373 + $0x40] sm:$0xf]
        %v3391 = vld [vmem:[%s3373 + $0x44] sm:$0xf]
        %v3392 = vld [vmem:[%s3373 + $0x48] sm:$0xf]
        %v3393 = vld [vmem:[%s3373 + $0x4c] sm:$0xf]
        %v3394 = vld [vmem:[%s3373 + $0x50] sm:$0xf]
        %v3395 = vld [vmem:[%s3373 + $0x54] sm:$0xf]
        %v3396 = vld [vmem:[%s3373 + $0x58] sm:$0xf]
        %v3397 = vld [vmem:[%s3373 + $0x5c] sm:$0xf]
        %v3398 = vld [vmem:[%s3373 + $0x60] sm:$0xf]
        %v3399 = vld [vmem:[%s3373 + $0x64] sm:$0xf]
        %v3400 = vld [vmem:[%s3373 + $0x68] sm:$0xf]
        %v3401 = vld [vmem:[%s3373 + $0x6c] sm:$0xf]
        %v3402 = vld [vmem:[%s3373 + $0x70] sm:$0xf]
        %v3403 = vld [vmem:[%s3373 + $0x74] sm:$0xf]
        %v3404 = vld [vmem:[%s3373 + $0x78] sm:$0xf]
        %v3405 = vld [vmem:[%s3373 + $0x7c] sm:$0xf]
        %s3406 = scalar_lea.vmem [#allocation6], 512
        %v3407 = vld [vmem:[%s3406] sm:$0xf]
        %v3408 = vld [vmem:[%s3406 + $0x4] sm:$0xf]
        %v3409 = vld [vmem:[%s3406 + $0x8] sm:$0xf]
        %v3410 = vld [vmem:[%s3406 + $0xc] sm:$0xf]
        %v3411 = vld [vmem:[%s3406 + $0x10] sm:$0xf]
        %v3412 = vld [vmem:[%s3406 + $0x14] sm:$0xf]
        %v3413 = vld [vmem:[%s3406 + $0x18] sm:$0xf]
        %v3414 = vld [vmem:[%s3406 + $0x1c] sm:$0xf]
        %v3415 = vld [vmem:[%s3406 + $0x20] sm:$0xf]
        %v3416 = vld [vmem:[%s3406 + $0x24] sm:$0xf]
        %v3417 = vld [vmem:[%s3406 + $0x28] sm:$0xf]
        %v3418 = vld [vmem:[%s3406 + $0x2c] sm:$0xf]
        %v3419 = vld [vmem:[%s3406 + $0x30] sm:$0xf]
        %v3420 = vld [vmem:[%s3406 + $0x34] sm:$0xf]
        %v3421 = vld [vmem:[%s3406 + $0x38] sm:$0xf]
        %v3422 = vld [vmem:[%s3406 + $0x3c] sm:$0xf]
        %v3455 = vunpack.c.l.b16 %v3374
        %v3456 = vunpack.c.l.b16 %v3375
        %v3457 = vunpack.c.l.b16 %v3376
        %v3458 = vunpack.c.l.b16 %v3377
        %v3459 = vunpack.c.l.b16 %v3378
        %v3460 = vunpack.c.l.b16 %v3379
        %v3461 = vunpack.c.l.b16 %v3380
        %v3462 = vunpack.c.l.b16 %v3381
        %v3463 = vunpack.c.l.b16 %v3382
        %v3464 = vunpack.c.l.b16 %v3383
        %v3465 = vunpack.c.l.b16 %v3384
        %v3466 = vunpack.c.l.b16 %v3385
        %v3467 = vunpack.c.l.b16 %v3386
        %v3468 = vunpack.c.l.b16 %v3387
        %v3469 = vunpack.c.l.b16 %v3388
        %v3470 = vunpack.c.l.b16 %v3389
        %v3471 = vunpack.c.l.b16 %v3390
        %v3472 = vunpack.c.l.b16 %v3391
        %v3473 = vunpack.c.l.b16 %v3392
        %v3474 = vunpack.c.l.b16 %v3393
        %v3475 = vunpack.c.l.b16 %v3394
        %v3476 = vunpack.c.l.b16 %v3395
        %v3477 = vunpack.c.l.b16 %v3396
        %v3478 = vunpack.c.l.b16 %v3397
        %v3479 = vunpack.c.l.b16 %v3398
        %v3480 = vunpack.c.l.b16 %v3399
        %v3481 = vunpack.c.l.b16 %v3400
        %v3482 = vunpack.c.l.b16 %v3401
        %v3483 = vunpack.c.l.b16 %v3402
        %v3484 = vunpack.c.l.b16 %v3403
        %v3485 = vunpack.c.l.b16 %v3404
        %v3486 = vunpack.c.l.b16 %v3405
        %v3487 = vpack.c.b16 %v3456, %v3455
        %v3488 = vpack.c.b16 %v3458, %v3457
        %v3489 = vpack.c.b16 %v3460, %v3459
        %v3490 = vpack.c.b16 %v3462, %v3461
        %v3491 = vpack.c.b16 %v3464, %v3463
        %v3492 = vpack.c.b16 %v3466, %v3465
        %v3493 = vpack.c.b16 %v3468, %v3467
        %v3494 = vpack.c.b16 %v3470, %v3469
        %v3495 = vpack.c.b16 %v3472, %v3471
        %v3496 = vpack.c.b16 %v3474, %v3473
        %v3497 = vpack.c.b16 %v3476, %v3475
        %v3498 = vpack.c.b16 %v3478, %v3477
        %v3499 = vpack.c.b16 %v3480, %v3479
        %v3500 = vpack.c.b16 %v3482, %v3481
        %v3501 = vpack.c.b16 %v3484, %v3483
        %v3502 = vpack.c.b16 %v3486, %v3485
        %v3535 = vunpack.c.l.b16 %v3407
        %v3536 = vunpack.c.l.b16 %v3408
        %v3537 = vunpack.c.l.b16 %v3409
        %v3538 = vunpack.c.l.b16 %v3410
        %v3539 = vunpack.c.l.b16 %v3411
        %v3540 = vunpack.c.l.b16 %v3412
        %v3541 = vunpack.c.l.b16 %v3413
        %v3542 = vunpack.c.l.b16 %v3414
        %v3543 = vunpack.c.l.b16 %v3415
        %v3544 = vunpack.c.l.b16 %v3416
        %v3545 = vunpack.c.l.b16 %v3417
        %v3546 = vunpack.c.l.b16 %v3418
        %v3547 = vunpack.c.l.b16 %v3419
        %v3548 = vunpack.c.l.b16 %v3420
        %v3549 = vunpack.c.l.b16 %v3421
        %v3550 = vunpack.c.l.b16 %v3422
        %v3551 = vpack.c.b16 %v3536, %v3535
        %v3552 = vpack.c.b16 %v3538, %v3537
        %v3553 = vpack.c.b16 %v3540, %v3539
        %v3554 = vpack.c.b16 %v3542, %v3541
        %v3555 = vpack.c.b16 %v3544, %v3543
        %v3556 = vpack.c.b16 %v3546, %v3545
        %v3557 = vpack.c.b16 %v3548, %v3547
        %v3558 = vpack.c.b16 %v3550, %v3549
        %3567 = vmatpush.bf16.msra.mxu0 %v3558
        %3568 = vmatpush.bf16.msra.mxu0 %v3557
        %3569 = vmatpush.bf16.msra.mxu0 %v3556
        %3570 = vmatpush.bf16.msra.mxu0 %v3555
        %3571 = vmatpush.bf16.msra.mxu0 %v3554
        %3572 = vmatpush.bf16.msra.mxu0 %v3553
        %3573 = vmatpush.bf16.msra.mxu0 %v3552
        %3574 = vmatpush.bf16.msra.mxu0 %v3551
        %3575 = vmatmul.bf16.gmra.mxu0 %v3487
        %v3576 = vpop.f32.mrf.mxu0
        %v3577 = vadd.f32 0.0, %v3576
        %v3578 = vpop.f32.mrf.mxu0
        %v3579 = vadd.f32 0.0, %v3578
        %3580 = vmatmul.bf16.gmra.mxu0 %v3488
        %v3581 = vpop.f32.mrf.mxu0
        %v3582 = vadd.f32 0.0, %v3581
        %v3583 = vpop.f32.mrf.mxu0
        %v3584 = vadd.f32 0.0, %v3583
        %3585 = vmatmul.bf16.gmra.mxu0 %v3489
        %v3586 = vpop.f32.mrf.mxu0
        %v3587 = vadd.f32 0.0, %v3586
        %v3588 = vpop.f32.mrf.mxu0
        %v3589 = vadd.f32 0.0, %v3588
        %3590 = vmatmul.bf16.gmra.mxu0 %v3490
        %v3591 = vpop.f32.mrf.mxu0
        %v3592 = vadd.f32 0.0, %v3591
        %v3593 = vpop.f32.mrf.mxu0
        %v3594 = vadd.f32 0.0, %v3593
        %3595 = vmatmul.bf16.gmra.mxu0 %v3491
        %v3596 = vpop.f32.mrf.mxu0
        %v3597 = vadd.f32 0.0, %v3596
        %v3598 = vpop.f32.mrf.mxu0
        %v3599 = vadd.f32 0.0, %v3598
        %3600 = vmatmul.bf16.gmra.mxu0 %v3492
        %v3601 = vpop.f32.mrf.mxu0
        %v3602 = vadd.f32 0.0, %v3601
        %v3603 = vpop.f32.mrf.mxu0
        %v3604 = vadd.f32 0.0, %v3603
        %3605 = vmatmul.bf16.gmra.mxu0 %v3493
        %v3606 = vpop.f32.mrf.mxu0
        %v3607 = vadd.f32 0.0, %v3606
        %v3608 = vpop.f32.mrf.mxu0
        %v3609 = vadd.f32 0.0, %v3608
        %3610 = vmatmul.bf16.gmra.mxu0 %v3494
        %v3611 = vpop.f32.mrf.mxu0
        %v3612 = vadd.f32 0.0, %v3611
        %v3613 = vpop.f32.mrf.mxu0
        %v3614 = vadd.f32 0.0, %v3613
        %3615 = vmatmul.bf16.gmra.mxu0 %v3495
        %v3616 = vpop.f32.mrf.mxu0
        %v3617 = vadd.f32 0.0, %v3616
        %v3618 = vpop.f32.mrf.mxu0
        %v3619 = vadd.f32 0.0, %v3618
        %3620 = vmatmul.bf16.gmra.mxu0 %v3496
        %v3621 = vpop.f32.mrf.mxu0
        %v3622 = vadd.f32 0.0, %v3621
        %v3623 = vpop.f32.mrf.mxu0
        %v3624 = vadd.f32 0.0, %v3623
        %3625 = vmatmul.bf16.gmra.mxu0 %v3497
        %v3626 = vpop.f32.mrf.mxu0
        %v3627 = vadd.f32 0.0, %v3626
        %v3628 = vpop.f32.mrf.mxu0
        %v3629 = vadd.f32 0.0, %v3628
        %3630 = vmatmul.bf16.gmra.mxu0 %v3498
        %v3631 = vpop.f32.mrf.mxu0
        %v3632 = vadd.f32 0.0, %v3631
        %v3633 = vpop.f32.mrf.mxu0
        %v3634 = vadd.f32 0.0, %v3633
        %3635 = vmatmul.bf16.gmra.mxu0 %v3499
        %v3636 = vpop.f32.mrf.mxu0
        %v3637 = vadd.f32 0.0, %v3636
        %v3638 = vpop.f32.mrf.mxu0
        %v3639 = vadd.f32 0.0, %v3638
        %3640 = vmatmul.bf16.gmra.mxu0 %v3500
        %v3641 = vpop.f32.mrf.mxu0
        %v3642 = vadd.f32 0.0, %v3641
        %v3643 = vpop.f32.mrf.mxu0
        %v3644 = vadd.f32 0.0, %v3643
        %3645 = vmatmul.bf16.gmra.mxu0 %v3501
        %v3646 = vpop.f32.mrf.mxu0
        %v3647 = vadd.f32 0.0, %v3646
        %v3648 = vpop.f32.mrf.mxu0
        %v3649 = vadd.f32 0.0, %v3648
        %3650 = vmatmul.bf16.gmra.mxu0 %v3502
        %v3651 = vpop.f32.mrf.mxu0
        %v3652 = vadd.f32 0.0, %v3651
        %v3653 = vpop.f32.mrf.mxu0
        %v3654 = vadd.f32 0.0, %v3653
        %3655 = vdwg.mxu0
        %v3656 = vadd.f32 %v3341, %v3577
        %v3657 = vadd.f32 %v3342, %v3579
        %v3658 = vadd.f32 %v3343, %v3582
        %v3659 = vadd.f32 %v3344, %v3584
        %v3660 = vadd.f32 %v3345, %v3587
        %v3661 = vadd.f32 %v3346, %v3589
        %v3662 = vadd.f32 %v3347, %v3592
        %v3663 = vadd.f32 %v3348, %v3594
        %v3664 = vadd.f32 %v3349, %v3597
        %v3665 = vadd.f32 %v3350, %v3599
        %v3666 = vadd.f32 %v3351, %v3602
        %v3667 = vadd.f32 %v3352, %v3604
        %v3668 = vadd.f32 %v3353, %v3607
        %v3669 = vadd.f32 %v3354, %v3609
        %v3670 = vadd.f32 %v3355, %v3612
        %v3671 = vadd.f32 %v3356, %v3614
        %v3672 = vadd.f32 %v3357, %v3617
        %v3673 = vadd.f32 %v3358, %v3619
        %v3674 = vadd.f32 %v3359, %v3622
        %v3675 = vadd.f32 %v3360, %v3624
        %v3676 = vadd.f32 %v3361, %v3627
        %v3677 = vadd.f32 %v3362, %v3629
        %v3678 = vadd.f32 %v3363, %v3632
        %v3679 = vadd.f32 %v3364, %v3634
        %v3680 = vadd.f32 %v3365, %v3637
        %v3681 = vadd.f32 %v3366, %v3639
        %v3682 = vadd.f32 %v3367, %v3642
        %v3683 = vadd.f32 %v3368, %v3644
        %v3684 = vadd.f32 %v3369, %v3647
        %v3685 = vadd.f32 %v3370, %v3649
        %v3686 = vadd.f32 %v3371, %v3652
        %v3687 = vadd.f32 %v3372, %v3654
        %3688 = vmatpush.msra.mxu0 %v3671
        %3689 = vmatpush.msra.mxu0 %v3670
        %3690 = vmatpush.msra.mxu0 %v3669
        %3691 = vmatpush.msra.mxu0 %v3668
        %3692 = vmatpush.msra.mxu0 %v3667
        %3693 = vmatpush.msra.mxu0 %v3666
        %3694 = vmatpush.msra.mxu0 %v3665
        %3695 = vmatpush.msra.mxu0 %v3664
        %3696 = vmatpush.msra.mxu0 %v3663
        %3697 = vmatpush.msra.mxu0 %v3662
        %3698 = vmatpush.msra.mxu0 %v3661
        %3699 = vmatpush.msra.mxu0 %v3660
        %3700 = vmatpush.msra.mxu0 %v3659
        %3701 = vmatpush.msra.mxu0 %v3658
        %3702 = vmatpush.msra.mxu0 %v3657
        %3703 = vmatpush.msra.mxu0 %v3656
        %3704 = vmatmul.f32.gmra.mxu0 1.0
        %v3705 = vpop.f32.mrf.mxu0
        %v3706 = vadd.f32 0.0, %v3705
        %3707 = vdwg.mxu0
        %3708 = vmatpush.msra.mxu0 %v3687
        %3709 = vmatpush.msra.mxu0 %v3686
        %3710 = vmatpush.msra.mxu0 %v3685
        %3711 = vmatpush.msra.mxu0 %v3684
        %3712 = vmatpush.msra.mxu0 %v3683
        %3713 = vmatpush.msra.mxu0 %v3682
        %3714 = vmatpush.msra.mxu0 %v3681
        %3715 = vmatpush.msra.mxu0 %v3680
        %3716 = vmatpush.msra.mxu0 %v3679
        %3717 = vmatpush.msra.mxu0 %v3678
        %3718 = vmatpush.msra.mxu0 %v3677
        %3719 = vmatpush.msra.mxu0 %v3676
        %3720 = vmatpush.msra.mxu0 %v3675
        %3721 = vmatpush.msra.mxu0 %v3674
        %3722 = vmatpush.msra.mxu0 %v3673
        %3723 = vmatpush.msra.mxu0 %v3672
        %3724 = vmatmul.f32.gmra.mxu0 1.0
        %v3725 = vpop.f32.mrf.mxu0
        %v3726 = vadd.f32 %v3706, %v3725
        %3727 = vdwg.mxu0
        %v3728 = vmul.f32 %v3656, %v3656
        %v3729 = vmul.f32 %v3657, %v3657
        %v3730 = vmul.f32 %v3658, %v3658
        %v3731 = vmul.f32 %v3659, %v3659
        %v3732 = vmul.f32 %v3660, %v3660
        %v3733 = vmul.f32 %v3661, %v3661
        %v3734 = vmul.f32 %v3662, %v3662
        %v3735 = vmul.f32 %v3663, %v3663
        %v3736 = vmul.f32 %v3664, %v3664
        %v3737 = vmul.f32 %v3665, %v3665
        %v3738 = vmul.f32 %v3666, %v3666
        %v3739 = vmul.f32 %v3667, %v3667
        %v3740 = vmul.f32 %v3668, %v3668
        %v3741 = vmul.f32 %v3669, %v3669
        %v3742 = vmul.f32 %v3670, %v3670
        %v3743 = vmul.f32 %v3671, %v3671
        %v3744 = vmul.f32 %v3672, %v3672
        %v3745 = vmul.f32 %v3673, %v3673
        %v3746 = vmul.f32 %v3674, %v3674
        %v3747 = vmul.f32 %v3675, %v3675
        %v3748 = vmul.f32 %v3676, %v3676
        %v3749 = vmul.f32 %v3677, %v3677
        %v3750 = vmul.f32 %v3678, %v3678
        %v3751 = vmul.f32 %v3679, %v3679
        %v3752 = vmul.f32 %v3680, %v3680
        %v3753 = vmul.f32 %v3681, %v3681
        %v3754 = vmul.f32 %v3682, %v3682
        %v3755 = vmul.f32 %v3683, %v3683
        %v3756 = vmul.f32 %v3684, %v3684
        %v3757 = vmul.f32 %v3685, %v3685
        %v3758 = vmul.f32 %v3686, %v3686
        %v3759 = vmul.f32 %v3687, %v3687
        %3760 = vmatpush.msra.mxu0 %v3743
        %3761 = vmatpush.msra.mxu0 %v3742
        %3762 = vmatpush.msra.mxu0 %v3741
        %3763 = vmatpush.msra.mxu0 %v3740
        %3764 = vmatpush.msra.mxu0 %v3739
        %3765 = vmatpush.msra.mxu0 %v3738
        %3766 = vmatpush.msra.mxu0 %v3737
        %3767 = vmatpush.msra.mxu0 %v3736
        %3768 = vmatpush.msra.mxu0 %v3735
        %3769 = vmatpush.msra.mxu0 %v3734
        %3770 = vmatpush.msra.mxu0 %v3733
        %3771 = vmatpush.msra.mxu0 %v3732
        %3772 = vmatpush.msra.mxu0 %v3731
        %3773 = vmatpush.msra.mxu0 %v3730
        %3774 = vmatpush.msra.mxu0 %v3729
        %3775 = vmatpush.msra.mxu0 %v3728
        %3776 = vmatmul.f32.gmra.mxu0 1.0
        %v3777 = vpop.f32.mrf.mxu0
        %v3778 = vadd.f32 0.0, %v3777
        %3779 = vdwg.mxu0
        %3780 = vmatpush.msra.mxu0 %v3759
        %3781 = vmatpush.msra.mxu0 %v3758
        %3782 = vmatpush.msra.mxu0 %v3757
        %3783 = vmatpush.msra.mxu0 %v3756
        %3784 = vmatpush.msra.mxu0 %v3755
        %3785 = vmatpush.msra.mxu0 %v3754
        %3786 = vmatpush.msra.mxu0 %v3753
        %3787 = vmatpush.msra.mxu0 %v3752
        %3788 = vmatpush.msra.mxu0 %v3751
        %3789 = vmatpush.msra.mxu0 %v3750
        %3790 = vmatpush.msra.mxu0 %v3749
        %3791 = vmatpush.msra.mxu0 %v3748
        %3792 = vmatpush.msra.mxu0 %v3747
        %3793 = vmatpush.msra.mxu0 %v3746
        %3794 = vmatpush.msra.mxu0 %v3745
        %3795 = vmatpush.msra.mxu0 %v3744
        %3796 = vmatmul.f32.gmra.mxu0 1.0
        %v3797 = vpop.f32.mrf.mxu0
        %v3798 = vadd.f32 %v3778, %v3797
        %3799 = vdwg.mxu0
        %v3801 = vrot.slane %v3798, 7
        %vm3803 = vcmask 1040384
        %v3804 = vsel %vm3803, %v3726, %v3801
        %3805 = vst [vmem:[%s288] sm:$0x3] %v3804
        %v3806 = vpack.c.bf16 %v3656, %v3656
        %v3807 = vpack.c.bf16 %v3657, %v3657
        %v3808 = vpack.c.bf16 %v3658, %v3658
        %v3809 = vpack.c.bf16 %v3659, %v3659
        %v3810 = vpack.c.bf16 %v3660, %v3660
        %v3811 = vpack.c.bf16 %v3661, %v3661
        %v3812 = vpack.c.bf16 %v3662, %v3662
        %v3813 = vpack.c.bf16 %v3663, %v3663
        %v3814 = vpack.c.bf16 %v3664, %v3664
        %v3815 = vpack.c.bf16 %v3665, %v3665
        %v3816 = vpack.c.bf16 %v3666, %v3666
        %v3817 = vpack.c.bf16 %v3667, %v3667
        %v3818 = vpack.c.bf16 %v3668, %v3668
        %v3819 = vpack.c.bf16 %v3669, %v3669
        %v3820 = vpack.c.bf16 %v3670, %v3670
        %v3821 = vpack.c.bf16 %v3671, %v3671
        %v3822 = vpack.c.bf16 %v3672, %v3672
        %v3823 = vpack.c.bf16 %v3673, %v3673
        %v3824 = vpack.c.bf16 %v3674, %v3674
        %v3825 = vpack.c.bf16 %v3675, %v3675
        %v3826 = vpack.c.bf16 %v3676, %v3676
        %v3827 = vpack.c.bf16 %v3677, %v3677
        %v3828 = vpack.c.bf16 %v3678, %v3678
        %v3829 = vpack.c.bf16 %v3679, %v3679
        %v3830 = vpack.c.bf16 %v3680, %v3680
        %v3831 = vpack.c.bf16 %v3681, %v3681
        %v3832 = vpack.c.bf16 %v3682, %v3682
        %v3833 = vpack.c.bf16 %v3683, %v3683
        %v3834 = vpack.c.bf16 %v3684, %v3684
        %v3835 = vpack.c.bf16 %v3685, %v3685
        %v3836 = vpack.c.bf16 %v3686, %v3686
        %v3837 = vpack.c.bf16 %v3687, %v3687
        %3838 = vst [vmem:[%s281] sm:$0xf] %v3806
        %3839 = vst [vmem:[%s281 + $0x4] sm:$0xf] %v3807
        %3840 = vst [vmem:[%s281 + $0x8] sm:$0xf] %v3808
        %3841 = vst [vmem:[%s281 + $0xc] sm:$0xf] %v3809
        %3842 = vst [vmem:[%s281 + $0x10] sm:$0xf] %v3810
        %3843 = vst [vmem:[%s281 + $0x14] sm:$0xf] %v3811
        %3844 = vst [vmem:[%s281 + $0x18] sm:$0xf] %v3812
        %3845 = vst [vmem:[%s281 + $0x1c] sm:$0xf] %v3813
        %3846 = vst [vmem:[%s281 + $0x20] sm:$0xf] %v3814
        %3847 = vst [vmem:[%s281 + $0x24] sm:$0xf] %v3815
        %3848 = vst [vmem:[%s281 + $0x28] sm:$0xf] %v3816
        %3849 = vst [vmem:[%s281 + $0x2c] sm:$0xf] %v3817
        %3850 = vst [vmem:[%s281 + $0x30] sm:$0xf] %v3818
        %3851 = vst [vmem:[%s281 + $0x34] sm:$0xf] %v3819
        %3852 = vst [vmem:[%s281 + $0x38] sm:$0xf] %v3820
        %3853 = vst [vmem:[%s281 + $0x3c] sm:$0xf] %v3821
        %3854 = vst [vmem:[%s281 + $0x40] sm:$0xf] %v3822
        %3855 = vst [vmem:[%s281 + $0x44] sm:$0xf] %v3823
        %3856 = vst [vmem:[%s281 + $0x48] sm:$0xf] %v3824
        %3857 = vst [vmem:[%s281 + $0x4c] sm:$0xf] %v3825
        %3858 = vst [vmem:[%s281 + $0x50] sm:$0xf] %v3826
        %3859 = vst [vmem:[%s281 + $0x54] sm:$0xf] %v3827
        %3860 = vst [vmem:[%s281 + $0x58] sm:$0xf] %v3828
        %3861 = vst [vmem:[%s281 + $0x5c] sm:$0xf] %v3829
        %3862 = vst [vmem:[%s281 + $0x60] sm:$0xf] %v3830
        %3863 = vst [vmem:[%s281 + $0x64] sm:$0xf] %v3831
        %3864 = vst [vmem:[%s281 + $0x68] sm:$0xf] %v3832
        %3865 = vst [vmem:[%s281 + $0x6c] sm:$0xf] %v3833
        %3866 = vst [vmem:[%s281 + $0x70] sm:$0xf] %v3834
        %3867 = vst [vmem:[%s281 + $0x74] sm:$0xf] %v3835
        %3868 = vst [vmem:[%s281 + $0x78] sm:$0xf] %v3836
        %3869 = vst [vmem:[%s281 + $0x7c] sm:$0xf] %v3837
        %s3870 = sand.u32 %s138, 1
        %s3871 = scalar_lea.sflag [#allocation5], %s3870
        %s3872 = sand.u32 %s138, 1
        %s3873 = smul.addr %s3872, 128
        %s3874 = scalar_lea.vmem [#allocation8], %s3873
        %s3875 = sand.u32 %s166, 1
        %s3876 = scalar_lea.sflag [#allocation10], %s3875
        %s3877 = sand.u32 %s166, 1
        %s3878 = smul.addr %s3877, 2
        %s3879 = scalar_lea.vmem [#allocation9], %s3878
        // Predicated region
        $region45: #{tpu_custom_call.1} parent=35 // pred_check
          %p3880 = pneg %p148
        $region46: #{tpu_custom_call.1} parent=35 // pred_check_branch
          %3882 = sbr.rel (%p3880) target = $region48
        $region47: #{tpu_custom_call.1} parent=35 // pred_region
          %s3883 = smul.u32 16, %s32
          %3885 = vsyncadd %s3871, 0
          %s3886 = smul.addr %s3883, 2
          %s3887 = smul.addr %s31, 32
          %s3888 = sadd.s32 %s3886, %s3887
          %s3889 = smul.addr %s3888, 4
          %s3890 = scalar_lea.hbm %s4, %s3889
          %s3891 = sshll.u32 %s3874, 4
          %s3892 = int_to_ptr.vmem [resolvable:$true] %s3891
          %s3893 = sshll.u32 %s3890, 4
          %s3894 = int_to_ptr.hbm [resolvable:$true] %s3893
          %3899 = dma.vmem_to_hbm [thread:$0]  %s3892, 2048, %s3894, %s3871, 64, 64, 4
        $region48: #{tpu_custom_call.1} parent=35 // pred_fallthru
          _
        // Predicated region
        $region49: #{tpu_custom_call.1} parent=35 // pred_check
          %p3900 = pneg %p176
        $region50: #{tpu_custom_call.1} parent=35 // pred_check_branch
          %3902 = sbr.rel (%p3900) target = $region52
        $region51: #{tpu_custom_call.1} parent=35 // pred_region
          %3904 = vsyncadd %s3876, 0
          %s3905 = sadd.s32 %s32, %s31
          %s3906 = smul.addr %s3905, 2
          %s3907 = scalar_lea.hbm %s5, %s3906
          %s3909 = sshll.u32 %s3879, 4
          %s3910 = int_to_ptr.vmem [resolvable:$true] %s3909
          %s3911 = sshll.u32 %s3907, 4
          %s3912 = int_to_ptr.hbm [resolvable:$true] %s3911
          %3914 = dma.vmem_to_hbm [thread:$0]  %s3910, 32, %s3912, %s3876
        $region52: #{tpu_custom_call.1} parent=35 // pred_fallthru
          _
      $region36: #{tpu_custom_call.1} parent=5 // pred_fallthru
        _
      %p3915 = scmp.le.s32.totalorder 2, %s22
      // Predicated region
      $region53: #{tpu_custom_call.1} parent=5 // pred_check
        %p3916 = pneg %p3915
      $region54: #{tpu_custom_call.1} parent=5 // pred_check_branch
        %3918 = sbr.rel (%p3916) target = $region56
      $region55: #{tpu_custom_call.1} parent=5 // pred_region
        %s3919 = ssub.s32 %s22, 2
        // Predicated region
        $region57: #{tpu_custom_call.1} parent=55 // pred_check
          %p3920 = pneg %p154
        $region58: #{tpu_custom_call.1} parent=55 // pred_check_branch
          %3922 = sbr.rel (%p3920) target = $region60
        $region59: #{tpu_custom_call.1} parent=55 // pred_region
          %s3923 = sand.u32 %s139, 1
          %s3924 = scalar_lea.sflag [#allocation5], %s3923
          %s3925 = sand.u32 %s139, 1
          %s3926 = smul.addr %s3925, 128
          %s3927 = scalar_lea.vmem [#allocation8], %s3926
          %3929 = dma.done %s3924, 2048
        $region60: #{tpu_custom_call.1} parent=55 // pred_fallthru
          _
        // Predicated region
        $region61: #{tpu_custom_call.1} parent=55 // pred_check
          %p3930 = pneg %p182
        $region62: #{tpu_custom_call.1} parent=55 // pred_check_branch
          %3932 = sbr.rel (%p3930) target = $region64
        $region63: #{tpu_custom_call.1} parent=55 // pred_region
          %s3933 = sand.u32 %s167, 1
          %s3934 = scalar_lea.sflag [#allocation10], %s3933
          %s3935 = sand.u32 %s167, 1
          %s3936 = smul.addr %s3935, 2
          %s3937 = scalar_lea.vmem [#allocation9], %s3936
          %3939 = dma.done %s3934, 32
        $region64: #{tpu_custom_call.1} parent=55 // pred_fallthru
          _
      $region56: #{tpu_custom_call.1} parent=5 // pred_fallthru
        _
    $region6: #{tpu_custom_call.1} parent=1 // loop_footer
      %s26 = sadd.s32 1, %s22
    $region7: #{tpu_custom_call.1} parent=1 // loop_footer_branch
      %21 = sbr.rel target = $region3
    $region8: #{tpu_custom_call.1} parent=1 // loop_exit
      _
    %3940 = vsyncpa [#allocation4], 1
    %s3941 = scalar_lea.sflag [#allocation4], 1
    %3942 = vsyncpa %s3941, 1
    %3943 = vsyncpa [#allocation7], 1
    %3944 = vsyncpa [#allocation5], 1
    %s3945 = scalar_lea.sflag [#allocation5], 1
    %3946 = vsyncpa %s3945, 1
    %3947 = vsyncpa [#allocation10], 1
    %s3948 = scalar_lea.sflag [#allocation10], 1
    %3949 = vsyncpa %s3948, 1

</llo_original>
